<compile_context>
chip_gen: v5e
topology: v5e:2x2
jax: 0.10.0
libtpu: 0.0.40
codegen_flags: <defaults>
</compile_context>

<pallas_src>
import jax
import jax.numpy as jnp
from jax.experimental import pallas as pl
from jax.experimental.pallas import tpu as pltpu


def _round_up(v, m):
    return (v + m - 1) // m * m


def arm_kernel(x_hbm, w1_ref, b1_ref, wa_ref, b2_ref, out_ref,
               xs_scr, xb_scr, acc_scr, copy_sem):
    # x_hbm : (N, H*W, Cp) f32 in HBM (memory_space=ANY), manual DMA
    # w1_ref: (9, Cp, Cq) bf16   conv3x3 weight, tap-major, BN1 scale folded in
    # b1_ref: (1, Cq) f32        folded BN1 bias
    # wa_ref: (Cq, Cq) f32       conv1x1 weight (y = pooled @ wa), BN2 scale folded
    # b2_ref: (1, Cq) f32        folded BN2 bias
    # out_ref: (1, H, W, Cq)
    # xs_scr: (2*F32PAD + H*W, Cp) f32   staging buffer (image + guard rows)
    # xb_scr: (3, 2*BHALO + H*W, Cp) bf16  dx = -1/0/+1 planes with zero halos
    # acc_scr: (H*W, Cq) f32             conv accumulator
    _, H, W, Cq = out_ref.shape
    Cp = xs_scr.shape[1]
    HW = H * W
    F32PAD = (xs_scr.shape[0] - HW) // 2
    BHALO = (xb_scr.shape[1] - HW) // 2
    n = pl.program_id(0)

    # --- stage this batch item: direct HBM -> VMEM DMA into the f32 buffer ---
    cp = pltpu.make_async_copy(x_hbm.at[n], xs_scr.at[pl.ds(F32PAD, HW)],
                               copy_sem)
    cp.start()

    # Zero the guard rows / halo bands while the DMA is in flight.  These are
    # re-zeroed every grid step so correctness does not depend on grid order
    # or the megacore split (scratch is uninitialized per core).
    fz = jnp.zeros((F32PAD, Cp), jnp.float32)
    xs_scr[0:F32PAD, :] = fz
    xs_scr[F32PAD + HW:, :] = fz
    bz = jnp.zeros((BHALO, Cp), jnp.bfloat16)
    for p in range(3):
        xb_scr[p, 0:BHALO, :] = bz
        xb_scr[p, BHALO + HW:, :] = bz

    # Horizontal edge masks (flat-row shift wraps at image-row boundaries).
    col = jax.lax.broadcasted_iota(jnp.int32, (H, W, 1), 1).reshape(HW, 1)
    not_left = col > 0           # rows where a dx = -1 read is valid
    not_right = col < W - 1      # rows where a dx = +1 read is valid

    cp.wait()

    # --- build the three bf16 dx planes (one cast pass each) ---------------
    # plane kx stores shift_{dx}(x) (dx = kx-1), edge-masked, so that every
    # conv tap becomes an *aligned* read at row offset BHALO + dy*W.
    center_f32 = xs_scr[F32PAD:F32PAD + HW, :]
    left_f32 = jnp.where(not_left, xs_scr[F32PAD - 1:F32PAD - 1 + HW, :], 0.0)
    right_f32 = jnp.where(not_right, xs_scr[F32PAD + 1:F32PAD + 1 + HW, :], 0.0)
    xb_scr[0, BHALO:BHALO + HW, :] = left_f32.astype(jnp.bfloat16)
    xb_scr[1, BHALO:BHALO + HW, :] = center_f32.astype(jnp.bfloat16)
    xb_scr[2, BHALO:BHALO + HW, :] = right_f32.astype(jnp.bfloat16)

    # --- 3x3 conv: 9 aligned (HW, Cp) @ (Cp, Cq) bf16 matmuls, f32 acc ------
    for t in range(9):
        ky, kx = divmod(t, 3)                 # dy = ky - 1, dx = kx - 1
        off = BHALO + (ky - 1) * W            # multiple of 8: aligned slice
        operand = xb_scr[kx, off:off + HW, :]
        prod = jnp.dot(operand, w1_ref[t], preferred_element_type=jnp.float32)
        if t == 0:
            acc_scr[...] = prod
        else:
            acc_scr[...] += prod

    # --- BN1 bias (scale already folded into w1) + LeakyReLU(0.01) ----------
    feat = acc_scr[...] + b1_ref[...]                       # (HW, Cq) f32
    feat = jnp.maximum(feat, 0.01 * feat)

    # --- global average pool + 1x1 conv (BN2 scale folded) + bias + sigmoid -
    pooled = jnp.sum(feat, axis=0, keepdims=True) * (1.0 / HW)   # (1, Cq)
    atten = jnp.dot(pooled, wa_ref[...], preferred_element_type=jnp.float32)
    atten = jax.nn.sigmoid(atten + b2_ref[...])                  # (1, Cq)

    # --- out = feat * atten; lane-dense store (Cq multiple of 128) ----------
    out_ref[0] = (feat * atten).reshape(H, W, Cq).astype(out_ref.dtype)


def attention_refinement(x, w1, s1, b1, wa, s2, b2, out_dtype=jnp.float32):
    """x: (N, H, W, Cin) f32 NHWC; w1: (3,3,Cin,Cout) HWIO;
    wa: (Cout, Cout) with y = pooled @ wa.  s*/b* are the folded BN
    scale/bias.  Returns (N, H, W, Cout) in `out_dtype`."""
    N, H, W, Cin = x.shape
    Cout = w1.shape[-1]
    assert W % 8 == 0, "flat-row layout assumes W to be a multiple of 8"

    Cp = _round_up(Cin, 128)                 # lane-dense input channels
    Cq = _round_up(Cout, 128)                # lane-dense output channels
    HW = H * W
    F32PAD = 8                               # guard rows around the f32 image
    BHALO = _round_up(W, 16)                 # zero halo rows in the bf16 planes

    # channel padding (no-op at real BiSeNet channel counts), flat rows for DMA
    xP = x if Cp == Cin else jnp.pad(x, ((0, 0), (0, 0), (0, 0), (0, Cp - Cin)))
    xP = xP.reshape(N, HW, Cp)

    # fold BN1 scale into the conv weight, BN2 scale into the 1x1 weight
    w1f = w1.astype(jnp.float32) * s1.reshape(1, 1, 1, Cout).astype(jnp.float32)
    w1P = jnp.pad(w1f, ((0, 0), (0, 0), (0, Cp - Cin), (0, Cq - Cout)))
    w1P = w1P.reshape(9, Cp, Cq).astype(jnp.bfloat16)
    waf = wa.astype(jnp.float32) * s2.reshape(1, Cout).astype(jnp.float32)
    waP = jnp.pad(waf, ((0, Cq - Cout), (0, Cq - Cout)))
    chan_pad = ((0, 0), (0, Cq - Cout))
    b1P = jnp.pad(b1.reshape(1, Cout).astype(jnp.float32), chan_pad)
    b2P = jnp.pad(b2.reshape(1, Cout).astype(jnp.float32), chan_pad)

    # constant operands: whole-array, single-buffered, resident in VMEM
    const_vmem = pl.BlockSpec(memory_space=pltpu.MemorySpace.VMEM)

    grid_spec = pltpu.PrefetchScalarGridSpec(
        num_scalar_prefetch=0,
        grid=(N,),
        in_specs=[
            pl.BlockSpec(memory_space=pl.ANY),   # x: raw HBM ref, manual DMA
            const_vmem,    # w1
            const_vmem,    # b1
            const_vmem,    # wa
            const_vmem,    # b2
        ],
        out_specs=pl.BlockSpec((1, H, W, Cq), lambda n: (n, 0, 0, 0)),
        scratch_shapes=[
            pltpu.VMEM((2 * F32PAD + HW, Cp), jnp.float32),    # staging
            pltpu.VMEM((3, 2 * BHALO + HW, Cp), jnp.bfloat16),  # dx planes
            pltpu.VMEM((HW, Cq), jnp.float32),                  # conv acc
            pltpu.SemaphoreType.DMA(()),                        # x-copy sem
        ],
    )

    # VMEM limit from actual footprint (+ headroom), not a flat physical cap.
    out_bytes = jnp.dtype(out_dtype).itemsize
    vmem_bytes = (
        2 * HW * Cq * out_bytes              # double-buffered output block
        + (2 * F32PAD + HW) * Cp * 4         # f32 staging scratch
        + 3 * (2 * BHALO + HW) * Cp * 2      # bf16 tap planes
        + HW * Cq * 4                        # f32 conv accumulator
        + 9 * Cp * Cq * 2                    # conv weights (bf16)
        + Cq * Cq * 4 + 2 * Cq * 4           # attention weight + biases
    )
    vmem_limit = min(100 * 1024 * 1024,
                     max(32 * 1024 * 1024, int(vmem_bytes * 1.4) + (2 << 20)))

    outP = pl.pallas_call(
        arm_kernel,
        out_shape=jax.ShapeDtypeStruct((N, H, W, Cq), out_dtype),
        grid_spec=grid_spec,
        compiler_params=pltpu.CompilerParams(
            dimension_semantics=("parallel",),
            vmem_limit_bytes=vmem_limit,
        ),
    )(xP, w1P, b1P, waP, b2P)

    return outP[..., :Cout]


def attention_refinement_ref(x, w1, s1, b1, wa, s2, b2):
    """Pure-JAX f32 reference (same math, XLA conv)."""
    feat = jax.lax.conv_general_dilated(
        x, w1, window_strides=(1, 1), padding="SAME",
        dimension_numbers=("NHWC", "HWIO", "NHWC"))
    feat = feat * s1.reshape(1, 1, 1, -1) + b1.reshape(1, 1, 1, -1)
    feat = jnp.where(feat >= 0, feat, 0.01 * feat)
    pooled = jnp.mean(feat, axis=(1, 2))                 # (N, Cout)
    atten = pooled @ wa
    atten = jax.nn.sigmoid(atten * s2.reshape(1, -1) + b2.reshape(1, -1))
    return feat * atten[:, None, None, :]


if __name__ == "__main__":
    N, H, W, Cin, Cout = 2, 16, 16, 4, 8
    key = jax.random.PRNGKey(0)
    keys = jax.random.split(key, 10)

    # input activations (NHWC; PyTorch NCHW would just be transposed here)
    x = jax.random.normal(keys[0], (N, H, W, Cin), dtype=jnp.float32)

    # conv3x3 weight, kaiming_normal_(a=1) -> std = 1/sqrt(9*Cin)
    w1 = jax.random.normal(keys[1], (3, 3, Cin, Cout), jnp.float32) / jnp.sqrt(9.0 * Cin)
    # conv1x1 weight (pre-transposed to (Cout, Cout) so y = pooled @ wa)
    wa = jax.random.normal(keys[2], (Cout, Cout), jnp.float32) / jnp.sqrt(float(Cout))

    eps = 1e-5
    # BN1 (ConvBNReLU's BatchNorm2d, leaky_relu) -- inference stats, folded
    g1 = 1.0 + 0.1 * jax.random.normal(keys[3], (Cout,), jnp.float32)
    be1 = 0.1 * jax.random.normal(keys[4], (Cout,), jnp.float32)
    rm1 = 0.1 * jax.random.normal(keys[5], (Cout,), jnp.float32)
    rv1 = 1.0 + 0.1 * jnp.abs(jax.random.normal(keys[6], (Cout,), jnp.float32))
    s1 = g1 / jnp.sqrt(rv1 + eps)
    b1 = be1 - rm1 * s1

    # BN2 (bn_atten, activation='none') -- inference stats, folded
    g2 = 1.0 + 0.1 * jax.random.normal(keys[7], (Cout,), jnp.float32)
    be2 = 0.1 * jax.random.normal(keys[8], (Cout,), jnp.float32)
    rm2 = 0.1 * jax.random.normal(keys[9], (Cout,), jnp.float32)
    rv2 = jnp.ones((Cout,), jnp.float32)
    s2 = g2 / jnp.sqrt(rv2 + eps)
    b2 = be2 - rm2 * s2

    out = attention_refinement(x, w1, s1, b1, wa, s2, b2)
    out = jax.block_until_ready(out)

    ref = attention_refinement_ref(x, w1, s1, b1, wa, s2, b2)
    assert out.shape == (N, H, W, Cout)
    err = float(jnp.max(jnp.abs(out - ref)))
    # bf16 conv operands (f32 accumulation) vs f32 reference: relaxed tolerance
    assert jnp.allclose(out, ref, rtol=2e-2, atol=2e-2), f"max abs err = {err}"

    print("KERNEL_OK")
</pallas_src>

<mosaic_0001>
module attributes {stable_mosaic.version = 11 : i64} {
  func.func @arm_kernel(%arg0: i32, %arg1: memref<2x256x128xf32, #tpu.memory_space<any>>, %arg2: memref<9x128x128xbf16, #tpu.memory_space<vmem>>, %arg3: memref<1x128xf32, #tpu.memory_space<vmem>>, %arg4: memref<128x128xf32, #tpu.memory_space<vmem>>, %arg5: memref<1x128xf32, #tpu.memory_space<vmem>>, %arg6: memref<1x16x16x128xf32, #tpu.memory_space<vmem>>, %arg7: memref<272x128xf32, #tpu.memory_space<vmem>>, %arg8: memref<3x288x128xbf16, #tpu.memory_space<vmem>>, %arg9: memref<256x128xf32, #tpu.memory_space<vmem>>, %arg10: memref<!tpu.dma_semaphore, #tpu.memory_space<semaphore_mem>>) attributes {dimension_semantics = [#tpu.dimension_semantics<parallel>], iteration_bounds = array<i64: 2>, scalar_prefetch = 0 : i64, scratch_operands = 4 : i64, tpu.core_type = #tpu.core_type<tc>, window_params = [{}, {pipeline_mode = #tpu.pipeline_mode<synchronous>, transform_indices = @transform_1, window_bounds = array<i64: 9, 128, 128>}, {pipeline_mode = #tpu.pipeline_mode<synchronous>, transform_indices = @transform_2, window_bounds = array<i64: 1, 128>}, {pipeline_mode = #tpu.pipeline_mode<synchronous>, transform_indices = @transform_3, window_bounds = array<i64: 128, 128>}, {pipeline_mode = #tpu.pipeline_mode<synchronous>, transform_indices = @transform_4, window_bounds = array<i64: 1, 128>}, {transform_indices = @transform_5, window_bounds = array<i64: 1, 16, 16, 128>}]} {
    %c0_i32 = arith.constant 0 : i32
    %c0_i32_0 = arith.constant 0 : i32
    %0 = tpu.memref_slice %arg1[%arg0, %c0_i32, %c0_i32_0] : memref<2x256x128xf32, #tpu.memory_space<any>> -> memref<1x256x128xf32, #tpu.memory_space<any>>
    %1 = tpu.memref_squeeze %0 : memref<1x256x128xf32, #tpu.memory_space<any>> -> memref<256x128xf32, #tpu.memory_space<any>>
    %c8_i32 = arith.constant 8 : i32
    %c0_i32_1 = arith.constant 0 : i32
    %2 = tpu.memref_slice %arg7[%c8_i32, %c0_i32_1] : memref<272x128xf32, #tpu.memory_space<vmem>> -> memref<256x128xf32, #tpu.memory_space<vmem>>
    tpu.enqueue_dma source(%1 : memref<256x128xf32, #tpu.memory_space<any>>) target(%2 : memref<256x128xf32, #tpu.memory_space<vmem>>) target_semaphore(%arg10 : memref<!tpu.dma_semaphore, #tpu.memory_space<semaphore_mem>>)
    %cst = arith.constant 0.000000e+00 : f32
    %3 = vector.broadcast %cst : f32 to vector<8x128xf32>
    %c0 = arith.constant 0 : index
    %c0_2 = arith.constant 0 : index
    %4 = vector.load %arg7[%c0, %c0_2] : memref<272x128xf32, #tpu.memory_space<vmem>>, vector<8x128xf32>
    tpu.vector_store %arg7[%c0, %c0_2], %3 {strides = array<i32>} : memref<272x128xf32, #tpu.memory_space<vmem>>, vector<8x128xf32>,
    %c264 = arith.constant 264 : index
    %c0_3 = arith.constant 0 : index
    %5 = vector.load %arg7[%c264, %c0_3] : memref<272x128xf32, #tpu.memory_space<vmem>>, vector<8x128xf32>
    tpu.vector_store %arg7[%c264, %c0_3], %3 {strides = array<i32>} : memref<272x128xf32, #tpu.memory_space<vmem>>, vector<8x128xf32>,
    %cst_4 = arith.constant 0.000000e+00 : bf16
    %6 = vector.broadcast %cst_4 : bf16 to vector<16x128xbf16>
    %c0_5 = arith.constant 0 : index
    %c0_6 = arith.constant 0 : index
    %c0_7 = arith.constant 0 : index
    %7 = vector.load %arg8[%c0_5, %c0_6, %c0_7] : memref<3x288x128xbf16, #tpu.memory_space<vmem>>, vector<1x16x128xbf16>
    %8 = vector.shape_cast %7 : vector<1x16x128xbf16> to vector<16x128xbf16>
    %9 = vector.shape_cast %6 : vector<16x128xbf16> to vector<1x16x128xbf16>
    tpu.vector_store %arg8[%c0_5, %c0_6, %c0_7], %9 {strides = array<i32>} : memref<3x288x128xbf16, #tpu.memory_space<vmem>>, vector<1x16x128xbf16>,
    %c0_8 = arith.constant 0 : index
    %c272 = arith.constant 272 : index
    %c0_9 = arith.constant 0 : index
    %10 = vector.load %arg8[%c0_8, %c272, %c0_9] : memref<3x288x128xbf16, #tpu.memory_space<vmem>>, vector<1x16x128xbf16>
    %11 = vector.shape_cast %10 : vector<1x16x128xbf16> to vector<16x128xbf16>
    %12 = vector.shape_cast %6 : vector<16x128xbf16> to vector<1x16x128xbf16>
    tpu.vector_store %arg8[%c0_8, %c272, %c0_9], %12 {strides = array<i32>} : memref<3x288x128xbf16, #tpu.memory_space<vmem>>, vector<1x16x128xbf16>,
    %c1 = arith.constant 1 : index
    %c0_10 = arith.constant 0 : index
    %c0_11 = arith.constant 0 : index
    %13 = vector.load %arg8[%c1, %c0_10, %c0_11] : memref<3x288x128xbf16, #tpu.memory_space<vmem>>, vector<1x16x128xbf16>
    %14 = vector.shape_cast %13 : vector<1x16x128xbf16> to vector<16x128xbf16>
    %15 = vector.shape_cast %6 : vector<16x128xbf16> to vector<1x16x128xbf16>
    tpu.vector_store %arg8[%c1, %c0_10, %c0_11], %15 {strides = array<i32>} : memref<3x288x128xbf16, #tpu.memory_space<vmem>>, vector<1x16x128xbf16>,
    %c1_12 = arith.constant 1 : index
    %c272_13 = arith.constant 272 : index
    %c0_14 = arith.constant 0 : index
    %16 = vector.load %arg8[%c1_12, %c272_13, %c0_14] : memref<3x288x128xbf16, #tpu.memory_space<vmem>>, vector<1x16x128xbf16>
    %17 = vector.shape_cast %16 : vector<1x16x128xbf16> to vector<16x128xbf16>
    %18 = vector.shape_cast %6 : vector<16x128xbf16> to vector<1x16x128xbf16>
    tpu.vector_store %arg8[%c1_12, %c272_13, %c0_14], %18 {strides = array<i32>} : memref<3x288x128xbf16, #tpu.memory_space<vmem>>, vector<1x16x128xbf16>,
    %c2 = arith.constant 2 : index
    %c0_15 = arith.constant 0 : index
    %c0_16 = arith.constant 0 : index
    %19 = vector.load %arg8[%c2, %c0_15, %c0_16] : memref<3x288x128xbf16, #tpu.memory_space<vmem>>, vector<1x16x128xbf16>
    %20 = vector.shape_cast %19 : vector<1x16x128xbf16> to vector<16x128xbf16>
    %21 = vector.shape_cast %6 : vector<16x128xbf16> to vector<1x16x128xbf16>
    tpu.vector_store %arg8[%c2, %c0_15, %c0_16], %21 {strides = array<i32>} : memref<3x288x128xbf16, #tpu.memory_space<vmem>>, vector<1x16x128xbf16>,
    %c2_17 = arith.constant 2 : index
    %c272_18 = arith.constant 272 : index
    %c0_19 = arith.constant 0 : index
    %22 = vector.load %arg8[%c2_17, %c272_18, %c0_19] : memref<3x288x128xbf16, #tpu.memory_space<vmem>>, vector<1x16x128xbf16>
    %23 = vector.shape_cast %22 : vector<1x16x128xbf16> to vector<16x128xbf16>
    %24 = vector.shape_cast %6 : vector<16x128xbf16> to vector<1x16x128xbf16>
    tpu.vector_store %arg8[%c2_17, %c272_18, %c0_19], %24 {strides = array<i32>} : memref<3x288x128xbf16, #tpu.memory_space<vmem>>, vector<1x16x128xbf16>,
    %25 = tpu.iota {dimensions = array<i32: 1>} : vector<16x16x1xi32>
    %26 = vector.shape_cast %25 : vector<16x16x1xi32> to vector<256x1xi32>
    %c0_i32_20 = arith.constant 0 : i32
    %27 = vector.broadcast %c0_i32_20 : i32 to vector<256x1xi32>
    %28 = arith.cmpi sgt, %26, %27 : vector<256x1xi32>
    %c15_i32 = arith.constant 15 : i32
    %29 = vector.broadcast %c15_i32 : i32 to vector<256x1xi32>
    %30 = arith.cmpi slt, %26, %29 : vector<256x1xi32>
    %c0_i32_21 = arith.constant 0 : i32
    %c0_i32_22 = arith.constant 0 : i32
    %31 = tpu.memref_slice %arg1[%arg0, %c0_i32_21, %c0_i32_22] : memref<2x256x128xf32, #tpu.memory_space<any>> -> memref<1x256x128xf32, #tpu.memory_space<any>>
    %32 = tpu.memref_squeeze %31 : memref<1x256x128xf32, #tpu.memory_space<any>> -> memref<256x128xf32, #tpu.memory_space<any>>
    %c8_i32_23 = arith.constant 8 : i32
    %c0_i32_24 = arith.constant 0 : i32
    %33 = tpu.memref_slice %arg7[%c8_i32_23, %c0_i32_24] : memref<272x128xf32, #tpu.memory_space<vmem>> -> memref<256x128xf32, #tpu.memory_space<vmem>>
    tpu.wait_dma2 semaphore(%arg10 : memref<!tpu.dma_semaphore, #tpu.memory_space<semaphore_mem>>) src(%32 : memref<256x128xf32, #tpu.memory_space<any>>) dst(%33 : memref<256x128xf32, #tpu.memory_space<vmem>>)
    %c8 = arith.constant 8 : index
    %c0_25 = arith.constant 0 : index
    %34 = vector.load %arg7[%c8, %c0_25] : memref<272x128xf32, #tpu.memory_space<vmem>>, vector<256x128xf32>
    %c7 = arith.constant 7 : index
    %c0_26 = arith.constant 0 : index
    %35 = vector.load %arg7[%c7, %c0_26] : memref<272x128xf32, #tpu.memory_space<vmem>>, vector<256x128xf32>
    %cst_27 = arith.constant 0.000000e+00 : f32
    %36 = vector.shape_cast %28 : vector<256x1xi1> to vector<256x1xi1>
    %37 = vector.broadcast %36 : vector<256x1xi1> to vector<256x128xi1>
    %38 = vector.broadcast %cst_27 : f32 to vector<256x128xf32>
    %39 = arith.select %37, %35, %38 : vector<256x128xi1>, vector<256x128xf32>
    %c9 = arith.constant 9 : index
    %c0_28 = arith.constant 0 : index
    %40 = vector.load %arg7[%c9, %c0_28] : memref<272x128xf32, #tpu.memory_space<vmem>>, vector<256x128xf32>
    %cst_29 = arith.constant 0.000000e+00 : f32
    %41 = vector.shape_cast %30 : vector<256x1xi1> to vector<256x1xi1>
    %42 = vector.broadcast %41 : vector<256x1xi1> to vector<256x128xi1>
    %43 = vector.broadcast %cst_29 : f32 to vector<256x128xf32>
    %44 = arith.select %42, %40, %43 : vector<256x128xi1>, vector<256x128xf32>
    %45 = arith.truncf %39 : vector<256x128xf32> to vector<256x128xbf16>
    %c0_30 = arith.constant 0 : index
    %c16 = arith.constant 16 : index
    %c0_31 = arith.constant 0 : index
    %46 = vector.load %arg8[%c0_30, %c16, %c0_31] : memref<3x288x128xbf16, #tpu.memory_space<vmem>>, vector<1x256x128xbf16>
    %47 = vector.shape_cast %46 : vector<1x256x128xbf16> to vector<256x128xbf16>
    %48 = vector.shape_cast %45 : vector<256x128xbf16> to vector<1x256x128xbf16>
    tpu.vector_store %arg8[%c0_30, %c16, %c0_31], %48 {strides = array<i32>} : memref<3x288x128xbf16, #tpu.memory_space<vmem>>, vector<1x256x128xbf16>,
    %49 = arith.truncf %34 : vector<256x128xf32> to vector<256x128xbf16>
    %c1_32 = arith.constant 1 : index
    %c16_33 = arith.constant 16 : index
    %c0_34 = arith.constant 0 : index
    %50 = vector.load %arg8[%c1_32, %c16_33, %c0_34] : memref<3x288x128xbf16, #tpu.memory_space<vmem>>, vector<1x256x128xbf16>
    %51 = vector.shape_cast %50 : vector<1x256x128xbf16> to vector<256x128xbf16>
    %52 = vector.shape_cast %49 : vector<256x128xbf16> to vector<1x256x128xbf16>
    tpu.vector_store %arg8[%c1_32, %c16_33, %c0_34], %52 {strides = array<i32>} : memref<3x288x128xbf16, #tpu.memory_space<vmem>>, vector<1x256x128xbf16>,
    %53 = arith.truncf %44 : vector<256x128xf32> to vector<256x128xbf16>
    %c2_35 = arith.constant 2 : index
    %c16_36 = arith.constant 16 : index
    %c0_37 = arith.constant 0 : index
    %54 = vector.load %arg8[%c2_35, %c16_36, %c0_37] : memref<3x288x128xbf16, #tpu.memory_space<vmem>>, vector<1x256x128xbf16>
    %55 = vector.shape_cast %54 : vector<1x256x128xbf16> to vector<256x128xbf16>
    %56 = vector.shape_cast %53 : vector<256x128xbf16> to vector<1x256x128xbf16>
    tpu.vector_store %arg8[%c2_35, %c16_36, %c0_37], %56 {strides = array<i32>} : memref<3x288x128xbf16, #tpu.memory_space<vmem>>, vector<1x256x128xbf16>,
    %c0_38 = arith.constant 0 : index
    %c0_39 = arith.constant 0 : index
    %c0_40 = arith.constant 0 : index
    %57 = vector.load %arg8[%c0_38, %c0_39, %c0_40] : memref<3x288x128xbf16, #tpu.memory_space<vmem>>, vector<1x256x128xbf16>
    %58 = vector.shape_cast %57 : vector<1x256x128xbf16> to vector<256x128xbf16>
    %c0_41 = arith.constant 0 : index
    %c0_42 = arith.constant 0 : index
    %c0_43 = arith.constant 0 : index
    %59 = vector.load %arg2[%c0_41, %c0_42, %c0_43] : memref<9x128x128xbf16, #tpu.memory_space<vmem>>, vector<1x128x128xbf16>
    %60 = vector.shape_cast %59 : vector<1x128x128xbf16> to vector<128x128xbf16>
    %cst_44 = arith.constant dense<0.000000e+00> : vector<256x128xf32>
    %61 = tpu.matmul %58, %60, %cst_44 {dimension_numbers = #tpu.dot_dimension_numbers<[1], [0], [0], [1], [0, 0, 1, 1], [], []>} : vector<256x128xbf16>, vector<128x128xbf16>, vector<256x128xf32> -> vector<256x128xf32>
    %c0_45 = arith.constant 0 : index
    %c0_46 = arith.constant 0 : index
    %62 = vector.load %arg9[%c0_45, %c0_46] : memref<256x128xf32, #tpu.memory_space<vmem>>, vector<256x128xf32>
    tpu.vector_store %arg9[%c0_45, %c0_46], %61 {strides = array<i32>} : memref<256x128xf32, #tpu.memory_space<vmem>>, vector<256x128xf32>,
    %c1_47 = arith.constant 1 : index
    %c0_48 = arith.constant 0 : index
    %c0_49 = arith.constant 0 : index
    %63 = vector.load %arg8[%c1_47, %c0_48, %c0_49] : memref<3x288x128xbf16, #tpu.memory_space<vmem>>, vector<1x256x128xbf16>
    %64 = vector.shape_cast %63 : vector<1x256x128xbf16> to vector<256x128xbf16>
    %c1_50 = arith.constant 1 : index
    %c0_51 = arith.constant 0 : index
    %c0_52 = arith.constant 0 : index
    %65 = vector.load %arg2[%c1_50, %c0_51, %c0_52] : memref<9x128x128xbf16, #tpu.memory_space<vmem>>, vector<1x128x128xbf16>
    %66 = vector.shape_cast %65 : vector<1x128x128xbf16> to vector<128x128xbf16>
    %cst_53 = arith.constant dense<0.000000e+00> : vector<256x128xf32>
    %67 = tpu.matmul %64, %66, %cst_53 {dimension_numbers = #tpu.dot_dimension_numbers<[1], [0], [0], [1], [0, 0, 1, 1], [], []>} : vector<256x128xbf16>, vector<128x128xbf16>, vector<256x128xf32> -> vector<256x128xf32>
    %c0_54 = arith.constant 0 : index
    %c0_55 = arith.constant 0 : index
    %68 = vector.load %arg9[%c0_54, %c0_55] : memref<256x128xf32, #tpu.memory_space<vmem>>, vector<256x128xf32>
    %69 = arith.addf %68, %67 : vector<256x128xf32>
    %c0_56 = arith.constant 0 : index
    %c0_57 = arith.constant 0 : index
    %70 = vector.load %arg9[%c0_56, %c0_57] : memref<256x128xf32, #tpu.memory_space<vmem>>, vector<256x128xf32>
    tpu.vector_store %arg9[%c0_56, %c0_57], %69 {strides = array<i32>} : memref<256x128xf32, #tpu.memory_space<vmem>>, vector<256x128xf32>,
    %c2_58 = arith.constant 2 : index
    %c0_59 = arith.constant 0 : index
    %c0_60 = arith.constant 0 : index
    %71 = vector.load %arg8[%c2_58, %c0_59, %c0_60] : memref<3x288x128xbf16, #tpu.memory_space<vmem>>, vector<1x256x128xbf16>
    %72 = vector.shape_cast %71 : vector<1x256x128xbf16> to vector<256x128xbf16>
    %c2_61 = arith.constant 2 : index
    %c0_62 = arith.constant 0 : index
    %c0_63 = arith.constant 0 : index
    %73 = vector.load %arg2[%c2_61, %c0_62, %c0_63] : memref<9x128x128xbf16, #tpu.memory_space<vmem>>, vector<1x128x128xbf16>
    %74 = vector.shape_cast %73 : vector<1x128x128xbf16> to vector<128x128xbf16>
    %cst_64 = arith.constant dense<0.000000e+00> : vector<256x128xf32>
    %75 = tpu.matmul %72, %74, %cst_64 {dimension_numbers = #tpu.dot_dimension_numbers<[1], [0], [0], [1], [0, 0, 1, 1], [], []>} : vector<256x128xbf16>, vector<128x128xbf16>, vector<256x128xf32> -> vector<256x128xf32>
    %c0_65 = arith.constant 0 : index
    %c0_66 = arith.constant 0 : index
    %76 = vector.load %arg9[%c0_65, %c0_66] : memref<256x128xf32, #tpu.memory_space<vmem>>, vector<256x128xf32>
    %77 = arith.addf %76, %75 : vector<256x128xf32>
    %c0_67 = arith.constant 0 : index
    %c0_68 = arith.constant 0 : index
    %78 = vector.load %arg9[%c0_67, %c0_68] : memref<256x128xf32, #tpu.memory_space<vmem>>, vector<256x128xf32>
    tpu.vector_store %arg9[%c0_67, %c0_68], %77 {strides = array<i32>} : memref<256x128xf32, #tpu.memory_space<vmem>>, vector<256x128xf32>,
    %c0_69 = arith.constant 0 : index
    %c16_70 = arith.constant 16 : index
    %c0_71 = arith.constant 0 : index
    %79 = vector.load %arg8[%c0_69, %c16_70, %c0_71] : memref<3x288x128xbf16, #tpu.memory_space<vmem>>, vector<1x256x128xbf16>
    %80 = vector.shape_cast %79 : vector<1x256x128xbf16> to vector<256x128xbf16>
    %c3 = arith.constant 3 : index
    %c0_72 = arith.constant 0 : index
    %c0_73 = arith.constant 0 : index
    %81 = vector.load %arg2[%c3, %c0_72, %c0_73] : memref<9x128x128xbf16, #tpu.memory_space<vmem>>, vector<1x128x128xbf16>
    %82 = vector.shape_cast %81 : vector<1x128x128xbf16> to vector<128x128xbf16>
    %cst_74 = arith.constant dense<0.000000e+00> : vector<256x128xf32>
    %83 = tpu.matmul %80, %82, %cst_74 {dimension_numbers = #tpu.dot_dimension_numbers<[1], [0], [0], [1], [0, 0, 1, 1], [], []>} : vector<256x128xbf16>, vector<128x128xbf16>, vector<256x128xf32> -> vector<256x128xf32>
    %c0_75 = arith.constant 0 : index
    %c0_76 = arith.constant 0 : index
    %84 = vector.load %arg9[%c0_75, %c0_76] : memref<256x128xf32, #tpu.memory_space<vmem>>, vector<256x128xf32>
    %85 = arith.addf %84, %83 : vector<256x128xf32>
    %c0_77 = arith.constant 0 : index
    %c0_78 = arith.constant 0 : index
    %86 = vector.load %arg9[%c0_77, %c0_78] : memref<256x128xf32, #tpu.memory_space<vmem>>, vector<256x128xf32>
    tpu.vector_store %arg9[%c0_77, %c0_78], %85 {strides = array<i32>} : memref<256x128xf32, #tpu.memory_space<vmem>>, vector<256x128xf32>,
    %c1_79 = arith.constant 1 : index
    %c16_80 = arith.constant 16 : index
    %c0_81 = arith.constant 0 : index
    %87 = vector.load %arg8[%c1_79, %c16_80, %c0_81] : memref<3x288x128xbf16, #tpu.memory_space<vmem>>, vector<1x256x128xbf16>
    %88 = vector.shape_cast %87 : vector<1x256x128xbf16> to vector<256x128xbf16>
    %c4 = arith.constant 4 : index
    %c0_82 = arith.constant 0 : index
    %c0_83 = arith.constant 0 : index
    %89 = vector.load %arg2[%c4, %c0_82, %c0_83] : memref<9x128x128xbf16, #tpu.memory_space<vmem>>, vector<1x128x128xbf16>
    %90 = vector.shape_cast %89 : vector<1x128x128xbf16> to vector<128x128xbf16>
    %cst_84 = arith.constant dense<0.000000e+00> : vector<256x128xf32>
    %91 = tpu.matmul %88, %90, %cst_84 {dimension_numbers = #tpu.dot_dimension_numbers<[1], [0], [0], [1], [0, 0, 1, 1], [], []>} : vector<256x128xbf16>, vector<128x128xbf16>, vector<256x128xf32> -> vector<256x128xf32>
    %c0_85 = arith.constant 0 : index
    %c0_86 = arith.constant 0 : index
    %92 = vector.load %arg9[%c0_85, %c0_86] : memref<256x128xf32, #tpu.memory_space<vmem>>, vector<256x128xf32>
    %93 = arith.addf %92, %91 : vector<256x128xf32>
    %c0_87 = arith.constant 0 : index
    %c0_88 = arith.constant 0 : index
    %94 = vector.load %arg9[%c0_87, %c0_88] : memref<256x128xf32, #tpu.memory_space<vmem>>, vector<256x128xf32>
    tpu.vector_store %arg9[%c0_87, %c0_88], %93 {strides = array<i32>} : memref<256x128xf32, #tpu.memory_space<vmem>>, vector<256x128xf32>,
    %c2_89 = arith.constant 2 : index
    %c16_90 = arith.constant 16 : index
    %c0_91 = arith.constant 0 : index
    %95 = vector.load %arg8[%c2_89, %c16_90, %c0_91] : memref<3x288x128xbf16, #tpu.memory_space<vmem>>, vector<1x256x128xbf16>
    %96 = vector.shape_cast %95 : vector<1x256x128xbf16> to vector<256x128xbf16>
    %c5 = arith.constant 5 : index
    %c0_92 = arith.constant 0 : index
    %c0_93 = arith.constant 0 : index
    %97 = vector.load %arg2[%c5, %c0_92, %c0_93] : memref<9x128x128xbf16, #tpu.memory_space<vmem>>, vector<1x128x128xbf16>
    %98 = vector.shape_cast %97 : vector<1x128x128xbf16> to vector<128x128xbf16>
    %cst_94 = arith.constant dense<0.000000e+00> : vector<256x128xf32>
    %99 = tpu.matmul %96, %98, %cst_94 {dimension_numbers = #tpu.dot_dimension_numbers<[1], [0], [0], [1], [0, 0, 1, 1], [], []>} : vector<256x128xbf16>, vector<128x128xbf16>, vector<256x128xf32> -> vector<256x128xf32>
    %c0_95 = arith.constant 0 : index
    %c0_96 = arith.constant 0 : index
    %100 = vector.load %arg9[%c0_95, %c0_96] : memref<256x128xf32, #tpu.memory_space<vmem>>, vector<256x128xf32>
    %101 = arith.addf %100, %99 : vector<256x128xf32>
    %c0_97 = arith.constant 0 : index
    %c0_98 = arith.constant 0 : index
    %102 = vector.load %arg9[%c0_97, %c0_98] : memref<256x128xf32, #tpu.memory_space<vmem>>, vector<256x128xf32>
    tpu.vector_store %arg9[%c0_97, %c0_98], %101 {strides = array<i32>} : memref<256x128xf32, #tpu.memory_space<vmem>>, vector<256x128xf32>,
    %c0_99 = arith.constant 0 : index
    %c32 = arith.constant 32 : index
    %c0_100 = arith.constant 0 : index
    %103 = vector.load %arg8[%c0_99, %c32, %c0_100] : memref<3x288x128xbf16, #tpu.memory_space<vmem>>, vector<1x256x128xbf16>
    %104 = vector.shape_cast %103 : vector<1x256x128xbf16> to vector<256x128xbf16>
    %c6 = arith.constant 6 : index
    %c0_101 = arith.constant 0 : index
    %c0_102 = arith.constant 0 : index
    %105 = vector.load %arg2[%c6, %c0_101, %c0_102] : memref<9x128x128xbf16, #tpu.memory_space<vmem>>, vector<1x128x128xbf16>
    %106 = vector.shape_cast %105 : vector<1x128x128xbf16> to vector<128x128xbf16>
    %cst_103 = arith.constant dense<0.000000e+00> : vector<256x128xf32>
    %107 = tpu.matmul %104, %106, %cst_103 {dimension_numbers = #tpu.dot_dimension_numbers<[1], [0], [0], [1], [0, 0, 1, 1], [], []>} : vector<256x128xbf16>, vector<128x128xbf16>, vector<256x128xf32> -> vector<256x128xf32>
    %c0_104 = arith.constant 0 : index
    %c0_105 = arith.constant 0 : index
    %108 = vector.load %arg9[%c0_104, %c0_105] : memref<256x128xf32, #tpu.memory_space<vmem>>, vector<256x128xf32>
    %109 = arith.addf %108, %107 : vector<256x128xf32>
    %c0_106 = arith.constant 0 : index
    %c0_107 = arith.constant 0 : index
    %110 = vector.load %arg9[%c0_106, %c0_107] : memref<256x128xf32, #tpu.memory_space<vmem>>, vector<256x128xf32>
    tpu.vector_store %arg9[%c0_106, %c0_107], %109 {strides = array<i32>} : memref<256x128xf32, #tpu.memory_space<vmem>>, vector<256x128xf32>,
    %c1_108 = arith.constant 1 : index
    %c32_109 = arith.constant 32 : index
    %c0_110 = arith.constant 0 : index
    %111 = vector.load %arg8[%c1_108, %c32_109, %c0_110] : memref<3x288x128xbf16, #tpu.memory_space<vmem>>, vector<1x256x128xbf16>
    %112 = vector.shape_cast %111 : vector<1x256x128xbf16> to vector<256x128xbf16>
    %c7_111 = arith.constant 7 : index
    %c0_112 = arith.constant 0 : index
    %c0_113 = arith.constant 0 : index
    %113 = vector.load %arg2[%c7_111, %c0_112, %c0_113] : memref<9x128x128xbf16, #tpu.memory_space<vmem>>, vector<1x128x128xbf16>
    %114 = vector.shape_cast %113 : vector<1x128x128xbf16> to vector<128x128xbf16>
    %cst_114 = arith.constant dense<0.000000e+00> : vector<256x128xf32>
    %115 = tpu.matmul %112, %114, %cst_114 {dimension_numbers = #tpu.dot_dimension_numbers<[1], [0], [0], [1], [0, 0, 1, 1], [], []>} : vector<256x128xbf16>, vector<128x128xbf16>, vector<256x128xf32> -> vector<256x128xf32>
    %c0_115 = arith.constant 0 : index
    %c0_116 = arith.constant 0 : index
    %116 = vector.load %arg9[%c0_115, %c0_116] : memref<256x128xf32, #tpu.memory_space<vmem>>, vector<256x128xf32>
    %117 = arith.addf %116, %115 : vector<256x128xf32>
    %c0_117 = arith.constant 0 : index
    %c0_118 = arith.constant 0 : index
    %118 = vector.load %arg9[%c0_117, %c0_118] : memref<256x128xf32, #tpu.memory_space<vmem>>, vector<256x128xf32>
    tpu.vector_store %arg9[%c0_117, %c0_118], %117 {strides = array<i32>} : memref<256x128xf32, #tpu.memory_space<vmem>>, vector<256x128xf32>,
    %c2_119 = arith.constant 2 : index
    %c32_120 = arith.constant 32 : index
    %c0_121 = arith.constant 0 : index
    %119 = vector.load %arg8[%c2_119, %c32_120, %c0_121] : memref<3x288x128xbf16, #tpu.memory_space<vmem>>, vector<1x256x128xbf16>
    %120 = vector.shape_cast %119 : vector<1x256x128xbf16> to vector<256x128xbf16>
    %c8_122 = arith.constant 8 : index
    %c0_123 = arith.constant 0 : index
    %c0_124 = arith.constant 0 : index
    %121 = vector.load %arg2[%c8_122, %c0_123, %c0_124] : memref<9x128x128xbf16, #tpu.memory_space<vmem>>, vector<1x128x128xbf16>
    %122 = vector.shape_cast %121 : vector<1x128x128xbf16> to vector<128x128xbf16>
    %cst_125 = arith.constant dense<0.000000e+00> : vector<256x128xf32>
    %123 = tpu.matmul %120, %122, %cst_125 {dimension_numbers = #tpu.dot_dimension_numbers<[1], [0], [0], [1], [0, 0, 1, 1], [], []>} : vector<256x128xbf16>, vector<128x128xbf16>, vector<256x128xf32> -> vector<256x128xf32>
    %c0_126 = arith.constant 0 : index
    %c0_127 = arith.constant 0 : index
    %124 = vector.load %arg9[%c0_126, %c0_127] : memref<256x128xf32, #tpu.memory_space<vmem>>, vector<256x128xf32>
    %125 = arith.addf %124, %123 : vector<256x128xf32>
    %c0_128 = arith.constant 0 : index
    %c0_129 = arith.constant 0 : index
    %126 = vector.load %arg9[%c0_128, %c0_129] : memref<256x128xf32, #tpu.memory_space<vmem>>, vector<256x128xf32>
    tpu.vector_store %arg9[%c0_128, %c0_129], %125 {strides = array<i32>} : memref<256x128xf32, #tpu.memory_space<vmem>>, vector<256x128xf32>,
    %c0_130 = arith.constant 0 : index
    %c0_131 = arith.constant 0 : index
    %127 = vector.load %arg9[%c0_130, %c0_131] : memref<256x128xf32, #tpu.memory_space<vmem>>, vector<256x128xf32>
    %c0_132 = arith.constant 0 : index
    %c0_133 = arith.constant 0 : index
    %128 = vector.load %arg3[%c0_132, %c0_133] : memref<1x128xf32, #tpu.memory_space<vmem>>, vector<1x128xf32>
    %129 = vector.broadcast %128 : vector<1x128xf32> to vector<256x128xf32>
    %130 = arith.addf %127, %129 : vector<256x128xf32>
    %cst_134 = arith.constant 0.00999999977 : f32
    %131 = vector.broadcast %cst_134 : f32 to vector<256x128xf32>
    %132 = arith.mulf %131, %130 : vector<256x128xf32>
    %133 = arith.maximumf %130, %132 : vector<256x128xf32>
    %cst_135 = arith.constant dense<0.000000e+00> : vector<128xf32>
    %134 = vector.multi_reduction <add>, %133, %cst_135 [0] : vector<256x128xf32> to vector<128xf32>
    %135 = vector.shape_cast %134 : vector<128xf32> to vector<1x128xf32>
    %cst_136 = arith.constant 3.906250e-03 : f32
    %136 = vector.broadcast %cst_136 : f32 to vector<1x128xf32>
    %137 = arith.mulf %135, %136 : vector<1x128xf32>
    %c0_137 = arith.constant 0 : index
    %c0_138 = arith.constant 0 : index
    %138 = vector.load %arg4[%c0_137, %c0_138] : memref<128x128xf32, #tpu.memory_space<vmem>>, vector<128x128xf32>
    %cst_139 = arith.constant dense<0.000000e+00> : vector<1x128xf32>
    %139 = tpu.matmul %137, %138, %cst_139 {dimension_numbers = #tpu.dot_dimension_numbers<[1], [0], [0], [1], [0, 0, 1, 1], [], []>} : vector<1x128xf32>, vector<128x128xf32>, vector<1x128xf32> -> vector<1x128xf32>
    %c0_140 = arith.constant 0 : index
    %c0_141 = arith.constant 0 : index
    %140 = vector.load %arg5[%c0_140, %c0_141] : memref<1x128xf32, #tpu.memory_space<vmem>>, vector<1x128xf32>
    %141 = arith.addf %139, %140 : vector<1x128xf32>
    %142 = arith.negf %141 : vector<1x128xf32>
    %143 = math.exp %142 : vector<1x128xf32>
    %cst_142 = arith.constant 1.000000e+00 : f32
    %144 = vector.broadcast %cst_142 : f32 to vector<1x128xf32>
    %145 = arith.addf %144, %143 : vector<1x128xf32>
    %146 = arith.divf %144, %145 : vector<1x128xf32>
    %147 = vector.broadcast %146 : vector<1x128xf32> to vector<256x128xf32>
    %148 = arith.mulf %133, %147 : vector<256x128xf32>
    %149 = vector.shape_cast %148 : vector<256x128xf32> to vector<16x16x128xf32>
    %c0_143 = arith.constant 0 : index
    %c0_144 = arith.constant 0 : index
    %c0_145 = arith.constant 0 : index
    %c0_146 = arith.constant 0 : index
    %150 = vector.load %arg6[%c0_143, %c0_144, %c0_145, %c0_146] : memref<1x16x16x128xf32, #tpu.memory_space<vmem>>, vector<1x16x16x128xf32>
    %151 = vector.shape_cast %150 : vector<1x16x16x128xf32> to vector<16x16x128xf32>
    %152 = vector.shape_cast %149 : vector<16x16x128xf32> to vector<1x16x16x128xf32>
    tpu.vector_store %arg6[%c0_143, %c0_144, %c0_145, %c0_146], %152 {strides = array<i32>} : memref<1x16x16x128xf32, #tpu.memory_space<vmem>>, vector<1x16x16x128xf32>,
    return
  }
  func.func @transform_1(%arg0: i32) -> (i32, i32, i32) {
    %c0_i32 = arith.constant 0 : i32
    %c0_i32_0 = arith.constant 0 : i32
    %c0_i32_1 = arith.constant 0 : i32
    %c0_i32_2 = arith.constant 0 : i32
    return %c0_i32, %c0_i32_0, %c0_i32_1 : i32, i32, i32
  }
  func.func @transform_2(%arg0: i32) -> (i32, i32) {
    %c0_i32 = arith.constant 0 : i32
    %c0_i32_0 = arith.constant 0 : i32
    %c0_i32_1 = arith.constant 0 : i32
    return %c0_i32, %c0_i32_0 : i32, i32
  }
  func.func @transform_3(%arg0: i32) -> (i32, i32) {
    %c0_i32 = arith.constant 0 : i32
    %c0_i32_0 = arith.constant 0 : i32
    %c0_i32_1 = arith.constant 0 : i32
    return %c0_i32, %c0_i32_0 : i32, i32
  }
  func.func @transform_4(%arg0: i32) -> (i32, i32) {
    %c0_i32 = arith.constant 0 : i32
    %c0_i32_0 = arith.constant 0 : i32
    %c0_i32_1 = arith.constant 0 : i32
    return %c0_i32, %c0_i32_0 : i32, i32
  }
  func.func @transform_5(%arg0: i32) -> (i32, i32, i32, i32) {
    %c0_i32 = arith.constant 0 : i32
    %c0_i32_0 = arith.constant 0 : i32
    %c0_i32_1 = arith.constant 0 : i32
    %c0_i32_2 = arith.constant 0 : i32
    return %arg0, %c0_i32, %c0_i32_0, %c0_i32_1 : i32, i32, i32, i32
  }
}

</mosaic_0001>

<llo_original>
// kernel: tpu_custom_call.1
$region0: #{tpu_custom_call.1}
  #allocation0 [shape = 'u32[]', space=smem, size = 0x4, offset = 0x4, fixed_abs, tag = 'smem constant byte address 0x4 - core index']
  #allocation1 [shape = 'u32[72,128]{1,0:T(1,128)}', space=vmem, size = 0x9000, scoped, tag = 'internal scratch']
  #allocation2 [shape = 'f32[272,128]{1,0:T(8,128)}', space=vmem, size = 0x22000, scoped, tag = 'scratch operand']
  #allocation3 [shape = 'bf16[3,288,128]{2,1,0:T(8,128)(2,1)}', space=vmem, size = 0x36000, scoped, tag = 'scratch operand']
  #allocation4 [shape = 'f32[256,128]{1,0:T(8,128)}', space=vmem, size = 0x20000, scoped, tag = 'scratch operand']
  #allocation5 [shape = 's32[1]{0}', space=sflag, size = 0x4, scoped, tag = 'scratch operand']
  #allocation12 [shape = 's32[]', space=sflag, size = 0x4, offset = 0, fixed_abs, tag = 'sflag constant byte address 0x0 - dummy sync flag']
  #allocation13 [shape = 's32[]', space=sflag, size = 0x4, offset = 0, fixed_abs, tag = 'sflag constant byte address 0x0 - dummy sync flag']
  #allocation14 [shape = 'u32[]', space=smem, size = 0x4, offset = 0x44, fixed_abs, tag = 'smem constant byte address 0x44 - assertion arg 0']
  #allocation15 [shape = 'u32[]', space=smem, size = 0x4, offset = 0x48, fixed_abs, tag = 'smem constant byte address 0x48 - assertion arg 1']
  %s0 = inlined_call_operand.hbm [shape: f32[2,256,128], index: 0, kind: input, shape index: {}]
  %s1 = inlined_call_operand.hbm [shape: bf16[9,128,128], index: 1, kind: input, shape index: {}]
  %s2 = inlined_call_operand.vmem [shape: f32[1,128], index: 2, kind: input, shape index: {}]
  %s3 = inlined_call_operand.hbm [shape: f32[128,128], index: 3, kind: input, shape index: {}]
  %s4 = inlined_call_operand.vmem [shape: f32[1,128], index: 4, kind: input, shape index: {}]
  %s5 = inlined_call_operand.hbm [shape: f32[2,16,16,128], index: 5, kind: output, shape index: {}]
  %s6 = sld [smem:[#allocation0]]
  $region61: #{tpu_custom_call.1} parent=0
    _
  %s8 = ssub.s32 1, %s6
  %s9 = scalar_select 0, %s8, %s6
  $region1: #{tpu_custom_call.1} parent=0
    #allocation6 [shape = 'u8[294912]{0}', space=vmem, size = 0x48000, scoped, tag = 'input window, operand 1, single buffered']
    #allocation7 [shape = 's32[2]{0}', space=sflag, size = 0x8, scoped, tag = 'scoped memory for tpu_custom_call.1']
    #allocation8 [shape = 's32[2]{0}', space=sflag, size = 0x8, scoped, tag = 'scoped memory for tpu_custom_call.1']
    #allocation9 [shape = 'u8[65536]{0}', space=vmem, size = 0x10000, scoped, tag = 'input window, operand 3, single buffered']
    #allocation10 [shape = 's32[1]{0}', space=sflag, size = 0x4, scoped, tag = 'scoped memory for tpu_custom_call.1']
    #allocation11 [shape = 'u8[262144]{0}', space=vmem, size = 0x40000, scoped, tag = 'output window, operand 0']
    %10 = vsyncpa [#allocation7], 0
    %11 = vsyncpa [#allocation10], 0
    %12 = vsyncpa [#allocation8], 0
    %s13 = scalar_lea.sflag [#allocation8], 1
    %14 = vsyncpa %s13, 0
    loop: start=0, step=1, limit=4
    $region2: #{tpu_custom_call.1} parent=1 // loop_pre_header
      _
    $region3: #{tpu_custom_call.1} parent=1 // loop_header
      %s16 = sphi 0, %s20
      %p17 = scmp.ge.s32.totalorder %s16, 4
      %s24 = sphi 0, %s24
      %s26 = sphi 0, %s24
      %s27 = sphi 0, %s26
      %s41 = sphi 0, %s27
      %s45 = sphi 0, %s45
      %s47 = sphi 0, %s45
      %s48 = sphi 0, %s47
      %s62 = sphi 0, %s48
      %s66 = sphi 0, %s66
      %s68 = sphi 0, %s66
      %s69 = sphi 0, %s68
      %s83 = sphi 0, %s69
      %s87 = sphi 0, %s87
      %s89 = sphi 0, %s87
      %s90 = sphi 0, %s89
      %s104 = sphi 0, %s90
      %s110 = sphi 0, %s112
      %s113 = sphi 0, %s110
      %s114 = sphi 0, %s113
      %s130 = sphi 0, %s114
    $region4: #{tpu_custom_call.1} parent=1 // loop_header_branch
      %19 = sbr.rel (%p17) target = $region8
    $region5: #{tpu_custom_call.1} parent=1 // loop_body
      %s21 = ssub.s32 %s16, 1
      %s22 = ssub.s32 %s16, 2
      %s23 = sadd.s32 %s16, 1
      %s25 = sadd.s32 %s24, 1
      %p28 = scmp.eq.s32.totalorder %s16, 1
      %p29 = scmp.ne.s32.totalorder %s24, %s26
      %p30 = scmp.eq.s32.totalorder %s16, 0
      %p31 = por %p29, %p30
      %p32 = scmp.ne.s32.totalorder %s24, %s26
      %p33 = scmp.eq.s32.totalorder %s21, 1
      %p34 = por %p32, %p33
      %p35 = scmp.ne.s32.totalorder %s26, %s27
      %p36 = scmp.eq.s32.totalorder %s21, 0
      %p37 = por %p35, %p36
      %p38 = scmp.ne.s32.totalorder %s26, %s27
      %p39 = scmp.eq.s32.totalorder %s22, 1
      %p40 = por %p38, %p39
      %p42 = scmp.ne.s32.totalorder %s27, %s41
      %p43 = scmp.eq.s32.totalorder %s22, 0
      %p44 = por %p42, %p43
      %s46 = sadd.s32 %s45, 1
      %p49 = scmp.eq.s32.totalorder %s16, 1
      %p50 = scmp.ne.s32.totalorder %s45, %s47
      %p51 = scmp.eq.s32.totalorder %s16, 0
      %p52 = por %p50, %p51
      %p53 = scmp.ne.s32.totalorder %s45, %s47
      %p54 = scmp.eq.s32.totalorder %s21, 1
      %p55 = por %p53, %p54
      %p56 = scmp.ne.s32.totalorder %s47, %s48
      %p57 = scmp.eq.s32.totalorder %s21, 0
      %p58 = por %p56, %p57
      %p59 = scmp.ne.s32.totalorder %s47, %s48
      %p60 = scmp.eq.s32.totalorder %s22, 1
      %p61 = por %p59, %p60
      %p63 = scmp.ne.s32.totalorder %s48, %s62
      %p64 = scmp.eq.s32.totalorder %s22, 0
      %p65 = por %p63, %p64
      %s67 = sadd.s32 %s66, 1
      %p70 = scmp.eq.s32.totalorder %s16, 1
      %p71 = scmp.ne.s32.totalorder %s66, %s68
      %p72 = scmp.eq.s32.totalorder %s16, 0
      %p73 = por %p71, %p72
      %p74 = scmp.ne.s32.totalorder %s66, %s68
      %p75 = scmp.eq.s32.totalorder %s21, 1
      %p76 = por %p74, %p75
      %p77 = scmp.ne.s32.totalorder %s68, %s69
      %p78 = scmp.eq.s32.totalorder %s21, 0
      %p79 = por %p77, %p78
      %p80 = scmp.ne.s32.totalorder %s68, %s69
      %p81 = scmp.eq.s32.totalorder %s22, 1
      %p82 = por %p80, %p81
      %p84 = scmp.ne.s32.totalorder %s69, %s83
      %p85 = scmp.eq.s32.totalorder %s22, 0
      %p86 = por %p84, %p85
      %s88 = sadd.s32 %s87, 1
      %p91 = scmp.eq.s32.totalorder %s16, 1
      %p92 = scmp.ne.s32.totalorder %s87, %s89
      %p93 = scmp.eq.s32.totalorder %s16, 0
      %p94 = por %p92, %p93
      %p95 = scmp.ne.s32.totalorder %s87, %s89
      %p96 = scmp.eq.s32.totalorder %s21, 1
      %p97 = por %p95, %p96
      %p98 = scmp.ne.s32.totalorder %s89, %s90
      %p99 = scmp.eq.s32.totalorder %s21, 0
      %p100 = por %p98, %p99
      %p101 = scmp.ne.s32.totalorder %s89, %s90
      %p102 = scmp.eq.s32.totalorder %s22, 1
      %p103 = por %p101, %p102
      %p105 = scmp.ne.s32.totalorder %s90, %s104
      %p106 = scmp.eq.s32.totalorder %s22, 0
      %p107 = por %p105, %p106
      %s108 = ssub.s32 %s16, %s23
      %p109 = scmp.eq.s32.totalorder %s108, 0
      %s111 = sadd.s32 %s110, 1
      %s112 = scalar_select %p109, %s110, %s111
      %p115 = pneg %p109
      %p116 = scmp.eq.s32.totalorder %s16, 1
      %p117 = por %p115, %p116
      %p118 = scmp.ne.s32.totalorder %s110, %s113
      %p119 = scmp.eq.s32.totalorder %s16, 0
      %p120 = por %p118, %p119
      %p121 = scmp.ne.s32.totalorder %s110, %s113
      %p122 = scmp.eq.s32.totalorder %s21, 1
      %p123 = por %p121, %p122
      %p124 = scmp.ne.s32.totalorder %s113, %s114
      %p125 = scmp.eq.s32.totalorder %s21, 0
      %p126 = por %p124, %p125
      %p127 = scmp.ne.s32.totalorder %s113, %s114
      %p128 = scmp.eq.s32.totalorder %s22, 1
      %p129 = por %p127, %p128
      %p131 = scmp.ne.s32.totalorder %s114, %s130
      %p132 = scmp.eq.s32.totalorder %s22, 0
      %p133 = por %p131, %p132
      %p134 = scmp.le.s32.totalorder 1, %s16
      %p135 = scmp.lt.s32.totalorder %s16, 3
      %p136 = pnand %p134, %p135
      %p137 = pneg %p136
      // Predicated region
      $region9: #{tpu_custom_call.1} parent=5 // pred_check
        _
      $region10: #{tpu_custom_call.1} parent=5 // pred_check_branch
        %139 = sbr.rel (%p136) target = $region12
      $region11: #{tpu_custom_call.1} parent=5 // pred_region
        %s140 = ssub.s32 %s16, 1
        // Predicated region
        $region13: #{tpu_custom_call.1} parent=11 // pred_check
          %p141 = pneg %p37
        $region14: #{tpu_custom_call.1} parent=11 // pred_check_branch
          %143 = sbr.rel (%p141) target = $region16
        $region15: #{tpu_custom_call.1} parent=11 // pred_region
          %145 = vsyncadd [#allocation7], 0
          %s146 = sshll.u32 %s1, 4
          %s147 = int_to_ptr.hbm [resolvable:$true] %s146
          %s148 = sshll.u32 [#allocation6], 4
          %s149 = int_to_ptr.vmem [resolvable:$true] %s148
          %154 = dma.hbm_to_vmem [thread:$0]  %s147, 9216, %s149, [#allocation7], 64, 64, 4
        $region16: #{tpu_custom_call.1} parent=11 // pred_fallthru
          _
        // Predicated region
        $region17: #{tpu_custom_call.1} parent=11 // pred_check
          %p155 = pneg %p58
        $region18: #{tpu_custom_call.1} parent=11 // pred_check_branch
          %157 = sbr.rel (%p155) target = $region20
        $region19: #{tpu_custom_call.1} parent=11 // pred_region
          _
        $region20: #{tpu_custom_call.1} parent=11 // pred_fallthru
          _
        // Predicated region
        $region21: #{tpu_custom_call.1} parent=11 // pred_check
          %p158 = pneg %p79
        $region22: #{tpu_custom_call.1} parent=11 // pred_check_branch
          %160 = sbr.rel (%p158) target = $region24
        $region23: #{tpu_custom_call.1} parent=11 // pred_region
          %162 = vsyncadd [#allocation10], 0
          %s163 = sshll.u32 %s3, 4
          %s164 = int_to_ptr.hbm [resolvable:$true] %s163
          %s165 = sshll.u32 [#allocation9], 4
          %s166 = int_to_ptr.vmem [resolvable:$true] %s165
          %171 = dma.hbm_to_vmem [thread:$0]  %s164, 2048, %s166, [#allocation10], 128, 128, 8
        $region24: #{tpu_custom_call.1} parent=11 // pred_fallthru
          _
        // Predicated region
        $region25: #{tpu_custom_call.1} parent=11 // pred_check
          %p172 = pneg %p100
        $region26: #{tpu_custom_call.1} parent=11 // pred_check_branch
          %174 = sbr.rel (%p172) target = $region28
        $region27: #{tpu_custom_call.1} parent=11 // pred_region
          _
        $region28: #{tpu_custom_call.1} parent=11 // pred_fallthru
          _
      $region12: #{tpu_custom_call.1} parent=5 // pred_fallthru
        _
      %p175 = scmp.lt.s32.totalorder %s16, 2
      // Predicated region
      $region29: #{tpu_custom_call.1} parent=5 // pred_check
        %p176 = pneg %p175
      $region30: #{tpu_custom_call.1} parent=5 // pred_check_branch
        %178 = sbr.rel (%p176) target = $region32
      $region31: #{tpu_custom_call.1} parent=5 // pred_region
        _
      $region32: #{tpu_custom_call.1} parent=5 // pred_fallthru
        _
      %p179 = scmp.le.s32.totalorder 1, %s16
      %p180 = scmp.lt.s32.totalorder %s16, 3
      %p181 = pnand %p179, %p180
      %p182 = pneg %p181
      // Predicated region
      $region33: #{tpu_custom_call.1} parent=5 // pred_check
        _
      $region34: #{tpu_custom_call.1} parent=5 // pred_check_branch
        %184 = sbr.rel (%p181) target = $region36
      $region35: #{tpu_custom_call.1} parent=5 // pred_region
        %s185 = ssub.s32 %s16, 1
        // Predicated region
        $region37: #{tpu_custom_call.1} parent=35 // pred_check
          %p186 = pneg %p37
        $region38: #{tpu_custom_call.1} parent=35 // pred_check_branch
          %188 = sbr.rel (%p186) target = $region40
        $region39: #{tpu_custom_call.1} parent=35 // pred_region
          %190 = dma.done [#allocation7], 9216
        $region40: #{tpu_custom_call.1} parent=35 // pred_fallthru
          _
        // Predicated region
        $region41: #{tpu_custom_call.1} parent=35 // pred_check
          %p191 = pneg %p79
        $region42: #{tpu_custom_call.1} parent=35 // pred_check_branch
          %193 = sbr.rel (%p191) target = $region44
        $region43: #{tpu_custom_call.1} parent=35 // pred_region
          %195 = dma.done [#allocation10], 2048
        $region44: #{tpu_custom_call.1} parent=35 // pred_fallthru
          _
        %p196 = pneg %p37
        %p197 = pneg %p34
        %p198 = pneg %p58
        %p199 = pneg %p55
        %p200 = pneg %p79
        %p201 = pneg %p76
        %p202 = pneg %p100
        %p203 = pneg %p97
        %p204 = pneg %p126
        %p205 = pneg %p123
        %s206 = sand.u32 %s113, 1
        %s207 = scalar_lea.sflag [#allocation8], %s206
        %s208 = sand.u32 %s113, 1
        %s209 = smul.addr %s208, 256
        %s210 = scalar_lea.vmem [#allocation11], %s209
        %s212 = smul.u32 %s21, 256
        %s213 = scalar_lea.hbm %s0, %s212
        %s214 = scalar_lea.vmem [#allocation2], 8
        // Predicated region
        $region45: #{tpu_custom_call.1} parent=35 // pred_check
          _
        $region46: #{tpu_custom_call.1} parent=35 // pred_check_branch
          %216 = sbr.rel target = $region48
        $region47: #{tpu_custom_call.1} parent=35 // pred_region
          %217 = sst [smem:[#allocation14]] [#allocation13]
          %218 = sst [smem:[#allocation15]] [#allocation12]
        $region48: #{tpu_custom_call.1} parent=35 // pred_fallthru
          _
        %220 = shalt.err (0)
        %s222 = sshll.u32 %s213, 4
        %s223 = int_to_ptr.hbm [resolvable:$true] %s222
        %s224 = sshll.u32 %s214, 4
        %s225 = int_to_ptr.vmem [resolvable:$true] %s224
        %227 = dma.hbm_to_vmem [thread:$0]  %s223, 4096, %s225, [#allocation5]
        %228 = vst [vmem:[#allocation2] sm:$0xff] 0.0
        %229 = vst [vmem:[#allocation2 + $0x108] sm:$0xff] 0.0
        %230 = vst [vmem:[#allocation3] sm:$0xf] 0
        %231 = vst [vmem:[#allocation3 + $0x4] sm:$0xf] 0
        %232 = vst [vmem:[#allocation3 + $0x88] sm:$0xf] 0
        %233 = vst [vmem:[#allocation3 + $0x8c] sm:$0xf] 0
        %s234 = scalar_lea.vmem [#allocation3], 144
        %235 = vst [vmem:[%s234] sm:$0xf] 0
        %236 = vst [vmem:[%s234 + $0x4] sm:$0xf] 0
        %237 = vst [vmem:[%s234 + $0x88] sm:$0xf] 0
        %238 = vst [vmem:[%s234 + $0x8c] sm:$0xf] 0
        %s239 = scalar_lea.vmem [#allocation3], 288
        %240 = vst [vmem:[%s239] sm:$0xf] 0
        %241 = vst [vmem:[%s239 + $0x4] sm:$0xf] 0
        %242 = vst [vmem:[%s239 + $0x88] sm:$0xf] 0
        %243 = vst [vmem:[%s239 + $0x8c] sm:$0xf] 0
        %v244 = vlaneseq
        %v245 = vshrl.u32 %v244, 7
        %v246 = vadd.s32 %v245, 8
        %vm247 = vcmp.gt.s32.totalorder %v245, 0
        %vm248 = vcmp.gt.s32.totalorder %v246, 0
        %vm249 = vcmp.lt.s32.totalorder %v245, 15
        %vm250 = vcmp.lt.s32.totalorder %v246, 15
        %s251 = smul.u32 256, 1
        %s252 = sshll.u32 %s251, 4
        %253 = dma.done [#allocation5], %s252
        %v254 = vld [vmem:[#allocation2 + $0x8] sm:$0xff]
        %v255 = vld [vmem:[#allocation2 + $0x10] sm:$0xff]
        %v256 = vld [vmem:[#allocation2 + $0x18] sm:$0xff]
        %v257 = vld [vmem:[#allocation2 + $0x20] sm:$0xff]
        %v258 = vld [vmem:[#allocation2 + $0x28] sm:$0xff]
        %v259 = vld [vmem:[#allocation2 + $0x30] sm:$0xff]
        %v260 = vld [vmem:[#allocation2 + $0x38] sm:$0xff]
        %v261 = vld [vmem:[#allocation2 + $0x40] sm:$0xff]
        %v262 = vld [vmem:[#allocation2 + $0x48] sm:$0xff]
        %v263 = vld [vmem:[#allocation2 + $0x50] sm:$0xff]
        %v264 = vld [vmem:[#allocation2 + $0x58] sm:$0xff]
        %v265 = vld [vmem:[#allocation2 + $0x60] sm:$0xff]
        %v266 = vld [vmem:[#allocation2 + $0x68] sm:$0xff]
        %v267 = vld [vmem:[#allocation2 + $0x70] sm:$0xff]
        %v268 = vld [vmem:[#allocation2 + $0x78] sm:$0xff]
        %v269 = vld [vmem:[#allocation2 + $0x80] sm:$0xff]
        %v270 = vld [vmem:[#allocation2 + $0x88] sm:$0xff]
        %v271 = vld [vmem:[#allocation2 + $0x90] sm:$0xff]
        %v272 = vld [vmem:[#allocation2 + $0x98] sm:$0xff]
        %v273 = vld [vmem:[#allocation2 + $0xa0] sm:$0xff]
        %v274 = vld [vmem:[#allocation2 + $0xa8] sm:$0xff]
        %v275 = vld [vmem:[#allocation2 + $0xb0] sm:$0xff]
        %v276 = vld [vmem:[#allocation2 + $0xb8] sm:$0xff]
        %v277 = vld [vmem:[#allocation2 + $0xc0] sm:$0xff]
        %v278 = vld [vmem:[#allocation2 + $0xc8] sm:$0xff]
        %v279 = vld [vmem:[#allocation2 + $0xd0] sm:$0xff]
        %v280 = vld [vmem:[#allocation2 + $0xd8] sm:$0xff]
        %v281 = vld [vmem:[#allocation2 + $0xe0] sm:$0xff]
        %v282 = vld [vmem:[#allocation2 + $0xe8] sm:$0xff]
        %v283 = vld [vmem:[#allocation2 + $0xf0] sm:$0xff]
        %v284 = vld [vmem:[#allocation2 + $0xf8] sm:$0xff]
        %v285 = vld [vmem:[#allocation2 + $0x100] sm:$0xff]
        %v286 = vld [vmem:[#allocation2 + $0x7] sm:$0xff]
        %v287 = vld [vmem:[#allocation2 + $0xf] sm:$0xff]
        %v288 = vld [vmem:[#allocation2 + $0x17] sm:$0xff]
        %v289 = vld [vmem:[#allocation2 + $0x1f] sm:$0xff]
        %v290 = vld [vmem:[#allocation2 + $0x27] sm:$0xff]
        %v291 = vld [vmem:[#allocation2 + $0x2f] sm:$0xff]
        %v292 = vld [vmem:[#allocation2 + $0x37] sm:$0xff]
        %v293 = vld [vmem:[#allocation2 + $0x3f] sm:$0xff]
        %v294 = vld [vmem:[#allocation2 + $0x47] sm:$0xff]
        %v295 = vld [vmem:[#allocation2 + $0x4f] sm:$0xff]
        %v296 = vld [vmem:[#allocation2 + $0x57] sm:$0xff]
        %v297 = vld [vmem:[#allocation2 + $0x5f] sm:$0xff]
        %v298 = vld [vmem:[#allocation2 + $0x67] sm:$0xff]
        %v299 = vld [vmem:[#allocation2 + $0x6f] sm:$0xff]
        %v300 = vld [vmem:[#allocation2 + $0x77] sm:$0xff]
        %v301 = vld [vmem:[#allocation2 + $0x7f] sm:$0xff]
        %v302 = vld [vmem:[#allocation2 + $0x87] sm:$0xff]
        %v303 = vld [vmem:[#allocation2 + $0x8f] sm:$0xff]
        %v304 = vld [vmem:[#allocation2 + $0x97] sm:$0xff]
        %v305 = vld [vmem:[#allocation2 + $0x9f] sm:$0xff]
        %v306 = vld [vmem:[#allocation2 + $0xa7] sm:$0xff]
        %v307 = vld [vmem:[#allocation2 + $0xaf] sm:$0xff]
        %v308 = vld [vmem:[#allocation2 + $0xb7] sm:$0xff]
        %v309 = vld [vmem:[#allocation2 + $0xbf] sm:$0xff]
        %v310 = vld [vmem:[#allocation2 + $0xc7] sm:$0xff]
        %v311 = vld [vmem:[#allocation2 + $0xcf] sm:$0xff]
        %v312 = vld [vmem:[#allocation2 + $0xd7] sm:$0xff]
        %v313 = vld [vmem:[#allocation2 + $0xdf] sm:$0xff]
        %v314 = vld [vmem:[#allocation2 + $0xe7] sm:$0xff]
        %v315 = vld [vmem:[#allocation2 + $0xef] sm:$0xff]
        %v316 = vld [vmem:[#allocation2 + $0xf7] sm:$0xff]
        %v317 = vld [vmem:[#allocation2 + $0xff] sm:$0xff]
        %v318 = vsel %vm247, 1, 0
        %v319 = vsel %vm248, 1, 0
        %vm320 = vcmp.eq.s32.totalorder %v318, 1
        %vm321 = vcmp.eq.s32.totalorder %v319, 1
        %v322 = vsel %vm320, %v286, 0.0
        %v323 = vsel %vm321, %v287, 0.0
        %v324 = vsel %vm320, %v288, 0.0
        %v325 = vsel %vm321, %v289, 0.0
        %v326 = vsel %vm320, %v290, 0.0
        %v327 = vsel %vm321, %v291, 0.0
        %v328 = vsel %vm320, %v292, 0.0
        %v329 = vsel %vm321, %v293, 0.0
        %v330 = vsel %vm320, %v294, 0.0
        %v331 = vsel %vm321, %v295, 0.0
        %v332 = vsel %vm320, %v296, 0.0
        %v333 = vsel %vm321, %v297, 0.0
        %v334 = vsel %vm320, %v298, 0.0
        %v335 = vsel %vm321, %v299, 0.0
        %v336 = vsel %vm320, %v300, 0.0
        %v337 = vsel %vm321, %v301, 0.0
        %v338 = vsel %vm320, %v302, 0.0
        %v339 = vsel %vm321, %v303, 0.0
        %v340 = vsel %vm320, %v304, 0.0
        %v341 = vsel %vm321, %v305, 0.0
        %v342 = vsel %vm320, %v306, 0.0
        %v343 = vsel %vm321, %v307, 0.0
        %v344 = vsel %vm320, %v308, 0.0
        %v345 = vsel %vm321, %v309, 0.0
        %v346 = vsel %vm320, %v310, 0.0
        %v347 = vsel %vm321, %v311, 0.0
        %v348 = vsel %vm320, %v312, 0.0
        %v349 = vsel %vm321, %v313, 0.0
        %v350 = vsel %vm320, %v314, 0.0
        %v351 = vsel %vm321, %v315, 0.0
        %v352 = vsel %vm320, %v316, 0.0
        %v353 = vsel %vm321, %v317, 0.0
        %v354 = vld [vmem:[#allocation2 + $0x9] sm:$0xff]
        %v355 = vld [vmem:[#allocation2 + $0x11] sm:$0xff]
        %v356 = vld [vmem:[#allocation2 + $0x19] sm:$0xff]
        %v357 = vld [vmem:[#allocation2 + $0x21] sm:$0xff]
        %v358 = vld [vmem:[#allocation2 + $0x29] sm:$0xff]
        %v359 = vld [vmem:[#allocation2 + $0x31] sm:$0xff]
        %v360 = vld [vmem:[#allocation2 + $0x39] sm:$0xff]
        %v361 = vld [vmem:[#allocation2 + $0x41] sm:$0xff]
        %v362 = vld [vmem:[#allocation2 + $0x49] sm:$0xff]
        %v363 = vld [vmem:[#allocation2 + $0x51] sm:$0xff]
        %v364 = vld [vmem:[#allocation2 + $0x59] sm:$0xff]
        %v365 = vld [vmem:[#allocation2 + $0x61] sm:$0xff]
        %v366 = vld [vmem:[#allocation2 + $0x69] sm:$0xff]
        %v367 = vld [vmem:[#allocation2 + $0x71] sm:$0xff]
        %v368 = vld [vmem:[#allocation2 + $0x79] sm:$0xff]
        %v369 = vld [vmem:[#allocation2 + $0x81] sm:$0xff]
        %v370 = vld [vmem:[#allocation2 + $0x89] sm:$0xff]
        %v371 = vld [vmem:[#allocation2 + $0x91] sm:$0xff]
        %v372 = vld [vmem:[#allocation2 + $0x99] sm:$0xff]
        %v373 = vld [vmem:[#allocation2 + $0xa1] sm:$0xff]
        %v374 = vld [vmem:[#allocation2 + $0xa9] sm:$0xff]
        %v375 = vld [vmem:[#allocation2 + $0xb1] sm:$0xff]
        %v376 = vld [vmem:[#allocation2 + $0xb9] sm:$0xff]
        %v377 = vld [vmem:[#allocation2 + $0xc1] sm:$0xff]
        %v378 = vld [vmem:[#allocation2 + $0xc9] sm:$0xff]
        %v379 = vld [vmem:[#allocation2 + $0xd1] sm:$0xff]
        %v380 = vld [vmem:[#allocation2 + $0xd9] sm:$0xff]
        %v381 = vld [vmem:[#allocation2 + $0xe1] sm:$0xff]
        %v382 = vld [vmem:[#allocation2 + $0xe9] sm:$0xff]
        %v383 = vld [vmem:[#allocation2 + $0xf1] sm:$0xff]
        %v384 = vld [vmem:[#allocation2 + $0xf9] sm:$0xff]
        %v385 = vld [vmem:[#allocation2 + $0x101] sm:$0xff]
        %v386 = vsel %vm249, 1, 0
        %v387 = vsel %vm250, 1, 0
        %vm388 = vcmp.eq.s32.totalorder %v386, 1
        %vm389 = vcmp.eq.s32.totalorder %v387, 1
        %v390 = vsel %vm388, %v354, 0.0
        %v391 = vsel %vm389, %v355, 0.0
        %v392 = vsel %vm388, %v356, 0.0
        %v393 = vsel %vm389, %v357, 0.0
        %v394 = vsel %vm388, %v358, 0.0
        %v395 = vsel %vm389, %v359, 0.0
        %v396 = vsel %vm388, %v360, 0.0
        %v397 = vsel %vm389, %v361, 0.0
        %v398 = vsel %vm388, %v362, 0.0
        %v399 = vsel %vm389, %v363, 0.0
        %v400 = vsel %vm388, %v364, 0.0
        %v401 = vsel %vm389, %v365, 0.0
        %v402 = vsel %vm388, %v366, 0.0
        %v403 = vsel %vm389, %v367, 0.0
        %v404 = vsel %vm388, %v368, 0.0
        %v405 = vsel %vm389, %v369, 0.0
        %v406 = vsel %vm388, %v370, 0.0
        %v407 = vsel %vm389, %v371, 0.0
        %v408 = vsel %vm388, %v372, 0.0
        %v409 = vsel %vm389, %v373, 0.0
        %v410 = vsel %vm388, %v374, 0.0
        %v411 = vsel %vm389, %v375, 0.0
        %v412 = vsel %vm388, %v376, 0.0
        %v413 = vsel %vm389, %v377, 0.0
        %v414 = vsel %vm388, %v378, 0.0
        %v415 = vsel %vm389, %v379, 0.0
        %v416 = vsel %vm388, %v380, 0.0
        %v417 = vsel %vm389, %v381, 0.0
        %v418 = vsel %vm388, %v382, 0.0
        %v419 = vsel %vm389, %v383, 0.0
        %v420 = vsel %vm388, %v384, 0.0
        %v421 = vsel %vm389, %v385, 0.0
        %v422 = vpack.c.bf16 %v322, %v322
        %v423 = vpack.c.bf16 %v323, %v323
        %v424 = vpack.c.bf16 %v324, %v324
        %v425 = vpack.c.bf16 %v325, %v325
        %v426 = vpack.c.bf16 %v326, %v326
        %v427 = vpack.c.bf16 %v327, %v327
        %v428 = vpack.c.bf16 %v328, %v328
        %v429 = vpack.c.bf16 %v329, %v329
        %v430 = vpack.c.bf16 %v330, %v330
        %v431 = vpack.c.bf16 %v331, %v331
        %v432 = vpack.c.bf16 %v332, %v332
        %v433 = vpack.c.bf16 %v333, %v333
        %v434 = vpack.c.bf16 %v334, %v334
        %v435 = vpack.c.bf16 %v335, %v335
        %v436 = vpack.c.bf16 %v336, %v336
        %v437 = vpack.c.bf16 %v337, %v337
        %v438 = vpack.c.bf16 %v338, %v338
        %v439 = vpack.c.bf16 %v339, %v339
        %v440 = vpack.c.bf16 %v340, %v340
        %v441 = vpack.c.bf16 %v341, %v341
        %v442 = vpack.c.bf16 %v342, %v342
        %v443 = vpack.c.bf16 %v343, %v343
        %v444 = vpack.c.bf16 %v344, %v344
        %v445 = vpack.c.bf16 %v345, %v345
        %v446 = vpack.c.bf16 %v346, %v346
        %v447 = vpack.c.bf16 %v347, %v347
        %v448 = vpack.c.bf16 %v348, %v348
        %v449 = vpack.c.bf16 %v349, %v349
        %v450 = vpack.c.bf16 %v350, %v350
        %v451 = vpack.c.bf16 %v351, %v351
        %v452 = vpack.c.bf16 %v352, %v352
        %v453 = vpack.c.bf16 %v353, %v353
        %454 = vst [vmem:[#allocation3 + $0x8] sm:$0xf] %v422
        %455 = vst [vmem:[#allocation3 + $0xc] sm:$0xf] %v423
        %456 = vst [vmem:[#allocation3 + $0x10] sm:$0xf] %v424
        %457 = vst [vmem:[#allocation3 + $0x14] sm:$0xf] %v425
        %458 = vst [vmem:[#allocation3 + $0x18] sm:$0xf] %v426
        %459 = vst [vmem:[#allocation3 + $0x1c] sm:$0xf] %v427
        %460 = vst [vmem:[#allocation3 + $0x20] sm:$0xf] %v428
        %461 = vst [vmem:[#allocation3 + $0x24] sm:$0xf] %v429
        %462 = vst [vmem:[#allocation3 + $0x28] sm:$0xf] %v430
        %463 = vst [vmem:[#allocation3 + $0x2c] sm:$0xf] %v431
        %464 = vst [vmem:[#allocation3 + $0x30] sm:$0xf] %v432
        %465 = vst [vmem:[#allocation3 + $0x34] sm:$0xf] %v433
        %466 = vst [vmem:[#allocation3 + $0x38] sm:$0xf] %v434
        %467 = vst [vmem:[#allocation3 + $0x3c] sm:$0xf] %v435
        %468 = vst [vmem:[#allocation3 + $0x40] sm:$0xf] %v436
        %469 = vst [vmem:[#allocation3 + $0x44] sm:$0xf] %v437
        %470 = vst [vmem:[#allocation3 + $0x48] sm:$0xf] %v438
        %471 = vst [vmem:[#allocation3 + $0x4c] sm:$0xf] %v439
        %472 = vst [vmem:[#allocation3 + $0x50] sm:$0xf] %v440
        %473 = vst [vmem:[#allocation3 + $0x54] sm:$0xf] %v441
        %474 = vst [vmem:[#allocation3 + $0x58] sm:$0xf] %v442
        %475 = vst [vmem:[#allocation3 + $0x5c] sm:$0xf] %v443
        %476 = vst [vmem:[#allocation3 + $0x60] sm:$0xf] %v444
        %477 = vst [vmem:[#allocation3 + $0x64] sm:$0xf] %v445
        %478 = vst [vmem:[#allocation3 + $0x68] sm:$0xf] %v446
        %479 = vst [vmem:[#allocation3 + $0x6c] sm:$0xf] %v447
        %480 = vst [vmem:[#allocation3 + $0x70] sm:$0xf] %v448
        %481 = vst [vmem:[#allocation3 + $0x74] sm:$0xf] %v449
        %482 = vst [vmem:[#allocation3 + $0x78] sm:$0xf] %v450
        %483 = vst [vmem:[#allocation3 + $0x7c] sm:$0xf] %v451
        %484 = vst [vmem:[#allocation3 + $0x80] sm:$0xf] %v452
        %485 = vst [vmem:[#allocation3 + $0x84] sm:$0xf] %v453
        %v486 = vpack.c.bf16 %v254, %v254
        %v487 = vpack.c.bf16 %v255, %v255
        %v488 = vpack.c.bf16 %v256, %v256
        %v489 = vpack.c.bf16 %v257, %v257
        %v490 = vpack.c.bf16 %v258, %v258
        %v491 = vpack.c.bf16 %v259, %v259
        %v492 = vpack.c.bf16 %v260, %v260
        %v493 = vpack.c.bf16 %v261, %v261
        %v494 = vpack.c.bf16 %v262, %v262
        %v495 = vpack.c.bf16 %v263, %v263
        %v496 = vpack.c.bf16 %v264, %v264
        %v497 = vpack.c.bf16 %v265, %v265
        %v498 = vpack.c.bf16 %v266, %v266
        %v499 = vpack.c.bf16 %v267, %v267
        %v500 = vpack.c.bf16 %v268, %v268
        %v501 = vpack.c.bf16 %v269, %v269
        %v502 = vpack.c.bf16 %v270, %v270
        %v503 = vpack.c.bf16 %v271, %v271
        %v504 = vpack.c.bf16 %v272, %v272
        %v505 = vpack.c.bf16 %v273, %v273
        %v506 = vpack.c.bf16 %v274, %v274
        %v507 = vpack.c.bf16 %v275, %v275
        %v508 = vpack.c.bf16 %v276, %v276
        %v509 = vpack.c.bf16 %v277, %v277
        %v510 = vpack.c.bf16 %v278, %v278
        %v511 = vpack.c.bf16 %v279, %v279
        %v512 = vpack.c.bf16 %v280, %v280
        %v513 = vpack.c.bf16 %v281, %v281
        %v514 = vpack.c.bf16 %v282, %v282
        %v515 = vpack.c.bf16 %v283, %v283
        %v516 = vpack.c.bf16 %v284, %v284
        %v517 = vpack.c.bf16 %v285, %v285
        %518 = vst [vmem:[%s234 + $0x8] sm:$0xf] %v486
        %519 = vst [vmem:[%s234 + $0xc] sm:$0xf] %v487
        %520 = vst [vmem:[%s234 + $0x10] sm:$0xf] %v488
        %521 = vst [vmem:[%s234 + $0x14] sm:$0xf] %v489
        %522 = vst [vmem:[%s234 + $0x18] sm:$0xf] %v490
        %523 = vst [vmem:[%s234 + $0x1c] sm:$0xf] %v491
        %524 = vst [vmem:[%s234 + $0x20] sm:$0xf] %v492
        %525 = vst [vmem:[%s234 + $0x24] sm:$0xf] %v493
        %526 = vst [vmem:[%s234 + $0x28] sm:$0xf] %v494
        %527 = vst [vmem:[%s234 + $0x2c] sm:$0xf] %v495
        %528 = vst [vmem:[%s234 + $0x30] sm:$0xf] %v496
        %529 = vst [vmem:[%s234 + $0x34] sm:$0xf] %v497
        %530 = vst [vmem:[%s234 + $0x38] sm:$0xf] %v498
        %531 = vst [vmem:[%s234 + $0x3c] sm:$0xf] %v499
        %532 = vst [vmem:[%s234 + $0x40] sm:$0xf] %v500
        %533 = vst [vmem:[%s234 + $0x44] sm:$0xf] %v501
        %534 = vst [vmem:[%s234 + $0x48] sm:$0xf] %v502
        %535 = vst [vmem:[%s234 + $0x4c] sm:$0xf] %v503
        %536 = vst [vmem:[%s234 + $0x50] sm:$0xf] %v504
        %537 = vst [vmem:[%s234 + $0x54] sm:$0xf] %v505
        %538 = vst [vmem:[%s234 + $0x58] sm:$0xf] %v506
        %539 = vst [vmem:[%s234 + $0x5c] sm:$0xf] %v507
        %540 = vst [vmem:[%s234 + $0x60] sm:$0xf] %v508
        %541 = vst [vmem:[%s234 + $0x64] sm:$0xf] %v509
        %542 = vst [vmem:[%s234 + $0x68] sm:$0xf] %v510
        %543 = vst [vmem:[%s234 + $0x6c] sm:$0xf] %v511
        %544 = vst [vmem:[%s234 + $0x70] sm:$0xf] %v512
        %545 = vst [vmem:[%s234 + $0x74] sm:$0xf] %v513
        %546 = vst [vmem:[%s234 + $0x78] sm:$0xf] %v514
        %547 = vst [vmem:[%s234 + $0x7c] sm:$0xf] %v515
        %548 = vst [vmem:[%s234 + $0x80] sm:$0xf] %v516
        %549 = vst [vmem:[%s234 + $0x84] sm:$0xf] %v517
        %v550 = vpack.c.bf16 %v390, %v390
        %v551 = vpack.c.bf16 %v391, %v391
        %v552 = vpack.c.bf16 %v392, %v392
        %v553 = vpack.c.bf16 %v393, %v393
        %v554 = vpack.c.bf16 %v394, %v394
        %v555 = vpack.c.bf16 %v395, %v395
        %v556 = vpack.c.bf16 %v396, %v396
        %v557 = vpack.c.bf16 %v397, %v397
        %v558 = vpack.c.bf16 %v398, %v398
        %v559 = vpack.c.bf16 %v399, %v399
        %v560 = vpack.c.bf16 %v400, %v400
        %v561 = vpack.c.bf16 %v401, %v401
        %v562 = vpack.c.bf16 %v402, %v402
        %v563 = vpack.c.bf16 %v403, %v403
        %v564 = vpack.c.bf16 %v404, %v404
        %v565 = vpack.c.bf16 %v405, %v405
        %v566 = vpack.c.bf16 %v406, %v406
        %v567 = vpack.c.bf16 %v407, %v407
        %v568 = vpack.c.bf16 %v408, %v408
        %v569 = vpack.c.bf16 %v409, %v409
        %v570 = vpack.c.bf16 %v410, %v410
        %v571 = vpack.c.bf16 %v411, %v411
        %v572 = vpack.c.bf16 %v412, %v412
        %v573 = vpack.c.bf16 %v413, %v413
        %v574 = vpack.c.bf16 %v414, %v414
        %v575 = vpack.c.bf16 %v415, %v415
        %v576 = vpack.c.bf16 %v416, %v416
        %v577 = vpack.c.bf16 %v417, %v417
        %v578 = vpack.c.bf16 %v418, %v418
        %v579 = vpack.c.bf16 %v419, %v419
        %v580 = vpack.c.bf16 %v420, %v420
        %v581 = vpack.c.bf16 %v421, %v421
        %582 = vst [vmem:[%s239 + $0x8] sm:$0xf] %v550
        %583 = vst [vmem:[%s239 + $0xc] sm:$0xf] %v551
        %584 = vst [vmem:[%s239 + $0x10] sm:$0xf] %v552
        %585 = vst [vmem:[%s239 + $0x14] sm:$0xf] %v553
        %586 = vst [vmem:[%s239 + $0x18] sm:$0xf] %v554
        %587 = vst [vmem:[%s239 + $0x1c] sm:$0xf] %v555
        %588 = vst [vmem:[%s239 + $0x20] sm:$0xf] %v556
        %589 = vst [vmem:[%s239 + $0x24] sm:$0xf] %v557
        %590 = vst [vmem:[%s239 + $0x28] sm:$0xf] %v558
        %591 = vst [vmem:[%s239 + $0x2c] sm:$0xf] %v559
        %592 = vst [vmem:[%s239 + $0x30] sm:$0xf] %v560
        %593 = vst [vmem:[%s239 + $0x34] sm:$0xf] %v561
        %594 = vst [vmem:[%s239 + $0x38] sm:$0xf] %v562
        %595 = vst [vmem:[%s239 + $0x3c] sm:$0xf] %v563
        %596 = vst [vmem:[%s239 + $0x40] sm:$0xf] %v564
        %597 = vst [vmem:[%s239 + $0x44] sm:$0xf] %v565
        %598 = vst [vmem:[%s239 + $0x48] sm:$0xf] %v566
        %599 = vst [vmem:[%s239 + $0x4c] sm:$0xf] %v567
        %600 = vst [vmem:[%s239 + $0x50] sm:$0xf] %v568
        %601 = vst [vmem:[%s239 + $0x54] sm:$0xf] %v569
        %602 = vst [vmem:[%s239 + $0x58] sm:$0xf] %v570
        %603 = vst [vmem:[%s239 + $0x5c] sm:$0xf] %v571
        %604 = vst [vmem:[%s239 + $0x60] sm:$0xf] %v572
        %605 = vst [vmem:[%s239 + $0x64] sm:$0xf] %v573
        %606 = vst [vmem:[%s239 + $0x68] sm:$0xf] %v574
        %607 = vst [vmem:[%s239 + $0x6c] sm:$0xf] %v575
        %608 = vst [vmem:[%s239 + $0x70] sm:$0xf] %v576
        %609 = vst [vmem:[%s239 + $0x74] sm:$0xf] %v577
        %610 = vst [vmem:[%s239 + $0x78] sm:$0xf] %v578
        %611 = vst [vmem:[%s239 + $0x7c] sm:$0xf] %v579
        %612 = vst [vmem:[%s239 + $0x80] sm:$0xf] %v580
        %613 = vst [vmem:[%s239 + $0x84] sm:$0xf] %v581
        %v614 = vld [vmem:[#allocation3] sm:$0xf]
        %v615 = vld [vmem:[#allocation3 + $0x4] sm:$0xf]
        %v616 = vld [vmem:[#allocation3 + $0x8] sm:$0xf]
        %v617 = vld [vmem:[#allocation3 + $0xc] sm:$0xf]
        %v618 = vld [vmem:[#allocation3 + $0x10] sm:$0xf]
        %v619 = vld [vmem:[#allocation3 + $0x14] sm:$0xf]
        %v620 = vld [vmem:[#allocation3 + $0x18] sm:$0xf]
        %v621 = vld [vmem:[#allocation3 + $0x1c] sm:$0xf]
        %v622 = vld [vmem:[#allocation3 + $0x20] sm:$0xf]
        %v623 = vld [vmem:[#allocation3 + $0x24] sm:$0xf]
        %v624 = vld [vmem:[#allocation3 + $0x28] sm:$0xf]
        %v625 = vld [vmem:[#allocation3 + $0x2c] sm:$0xf]
        %v626 = vld [vmem:[#allocation3 + $0x30] sm:$0xf]
        %v627 = vld [vmem:[#allocation3 + $0x34] sm:$0xf]
        %v628 = vld [vmem:[#allocation3 + $0x38] sm:$0xf]
        %v629 = vld [vmem:[#allocation3 + $0x3c] sm:$0xf]
        %v630 = vld [vmem:[#allocation3 + $0x40] sm:$0xf]
        %v631 = vld [vmem:[#allocation3 + $0x44] sm:$0xf]
        %v632 = vld [vmem:[#allocation3 + $0x48] sm:$0xf]
        %v633 = vld [vmem:[#allocation3 + $0x4c] sm:$0xf]
        %v634 = vld [vmem:[#allocation3 + $0x50] sm:$0xf]
        %v635 = vld [vmem:[#allocation3 + $0x54] sm:$0xf]
        %v636 = vld [vmem:[#allocation3 + $0x58] sm:$0xf]
        %v637 = vld [vmem:[#allocation3 + $0x5c] sm:$0xf]
        %v638 = vld [vmem:[#allocation3 + $0x60] sm:$0xf]
        %v639 = vld [vmem:[#allocation3 + $0x64] sm:$0xf]
        %v640 = vld [vmem:[#allocation3 + $0x68] sm:$0xf]
        %v641 = vld [vmem:[#allocation3 + $0x6c] sm:$0xf]
        %v642 = vld [vmem:[#allocation3 + $0x70] sm:$0xf]
        %v643 = vld [vmem:[#allocation3 + $0x74] sm:$0xf]
        %v644 = vld [vmem:[#allocation3 + $0x78] sm:$0xf]
        %v645 = vld [vmem:[#allocation3 + $0x7c] sm:$0xf]
        %v646 = vld [vmem:[#allocation6] sm:$0xf]
        %v647 = vld [vmem:[#allocation6 + $0x4] sm:$0xf]
        %v648 = vld [vmem:[#allocation6 + $0x8] sm:$0xf]
        %v649 = vld [vmem:[#allocation6 + $0xc] sm:$0xf]
        %v650 = vld [vmem:[#allocation6 + $0x10] sm:$0xf]
        %v651 = vld [vmem:[#allocation6 + $0x14] sm:$0xf]
        %v652 = vld [vmem:[#allocation6 + $0x18] sm:$0xf]
        %v653 = vld [vmem:[#allocation6 + $0x1c] sm:$0xf]
        %v654 = vld [vmem:[#allocation6 + $0x20] sm:$0xf]
        %v655 = vld [vmem:[#allocation6 + $0x24] sm:$0xf]
        %v656 = vld [vmem:[#allocation6 + $0x28] sm:$0xf]
        %v657 = vld [vmem:[#allocation6 + $0x2c] sm:$0xf]
        %v658 = vld [vmem:[#allocation6 + $0x30] sm:$0xf]
        %v659 = vld [vmem:[#allocation6 + $0x34] sm:$0xf]
        %v660 = vld [vmem:[#allocation6 + $0x38] sm:$0xf]
        %v661 = vld [vmem:[#allocation6 + $0x3c] sm:$0xf]
        %v694 = vunpack.c.l.b16 %v614
        %v695 = vunpack.c.l.b16 %v615
        %v696 = vunpack.c.l.b16 %v616
        %v697 = vunpack.c.l.b16 %v617
        %v698 = vunpack.c.l.b16 %v618
        %v699 = vunpack.c.l.b16 %v619
        %v700 = vunpack.c.l.b16 %v620
        %v701 = vunpack.c.l.b16 %v621
        %v702 = vunpack.c.l.b16 %v622
        %v703 = vunpack.c.l.b16 %v623
        %v704 = vunpack.c.l.b16 %v624
        %v705 = vunpack.c.l.b16 %v625
        %v706 = vunpack.c.l.b16 %v626
        %v707 = vunpack.c.l.b16 %v627
        %v708 = vunpack.c.l.b16 %v628
        %v709 = vunpack.c.l.b16 %v629
        %v710 = vunpack.c.l.b16 %v630
        %v711 = vunpack.c.l.b16 %v631
        %v712 = vunpack.c.l.b16 %v632
        %v713 = vunpack.c.l.b16 %v633
        %v714 = vunpack.c.l.b16 %v634
        %v715 = vunpack.c.l.b16 %v635
        %v716 = vunpack.c.l.b16 %v636
        %v717 = vunpack.c.l.b16 %v637
        %v718 = vunpack.c.l.b16 %v638
        %v719 = vunpack.c.l.b16 %v639
        %v720 = vunpack.c.l.b16 %v640
        %v721 = vunpack.c.l.b16 %v641
        %v722 = vunpack.c.l.b16 %v642
        %v723 = vunpack.c.l.b16 %v643
        %v724 = vunpack.c.l.b16 %v644
        %v725 = vunpack.c.l.b16 %v645
        %v726 = vpack.c.b16 %v695, %v694
        %v727 = vpack.c.b16 %v697, %v696
        %v728 = vpack.c.b16 %v699, %v698
        %v729 = vpack.c.b16 %v701, %v700
        %v730 = vpack.c.b16 %v703, %v702
        %v731 = vpack.c.b16 %v705, %v704
        %v732 = vpack.c.b16 %v707, %v706
        %v733 = vpack.c.b16 %v709, %v708
        %v734 = vpack.c.b16 %v711, %v710
        %v735 = vpack.c.b16 %v713, %v712
        %v736 = vpack.c.b16 %v715, %v714
        %v737 = vpack.c.b16 %v717, %v716
        %v738 = vpack.c.b16 %v719, %v718
        %v739 = vpack.c.b16 %v721, %v720
        %v740 = vpack.c.b16 %v723, %v722
        %v741 = vpack.c.b16 %v725, %v724
        %v774 = vunpack.c.l.b16 %v646
        %v775 = vunpack.c.l.b16 %v647
        %v776 = vunpack.c.l.b16 %v648
        %v777 = vunpack.c.l.b16 %v649
        %v778 = vunpack.c.l.b16 %v650
        %v779 = vunpack.c.l.b16 %v651
        %v780 = vunpack.c.l.b16 %v652
        %v781 = vunpack.c.l.b16 %v653
        %v782 = vunpack.c.l.b16 %v654
        %v783 = vunpack.c.l.b16 %v655
        %v784 = vunpack.c.l.b16 %v656
        %v785 = vunpack.c.l.b16 %v657
        %v786 = vunpack.c.l.b16 %v658
        %v787 = vunpack.c.l.b16 %v659
        %v788 = vunpack.c.l.b16 %v660
        %v789 = vunpack.c.l.b16 %v661
        %v790 = vpack.c.b16 %v775, %v774
        %v791 = vpack.c.b16 %v777, %v776
        %v792 = vpack.c.b16 %v779, %v778
        %v793 = vpack.c.b16 %v781, %v780
        %v794 = vpack.c.b16 %v783, %v782
        %v795 = vpack.c.b16 %v785, %v784
        %v796 = vpack.c.b16 %v787, %v786
        %v797 = vpack.c.b16 %v789, %v788
        %806 = vmatpush.bf16.msra.mxu0 %v797
        %807 = vmatpush.bf16.msra.mxu0 %v796
        %808 = vmatpush.bf16.msra.mxu0 %v795
        %809 = vmatpush.bf16.msra.mxu0 %v794
        %810 = vmatpush.bf16.msra.mxu0 %v793
        %811 = vmatpush.bf16.msra.mxu0 %v792
        %812 = vmatpush.bf16.msra.mxu0 %v791
        %813 = vmatpush.bf16.msra.mxu0 %v790
        %814 = vmatmul.bf16.gmra.mxu0 %v726
        %v815 = vpop.f32.mrf.mxu0
        %v816 = vadd.f32 0.0, %v815
        %v817 = vpop.f32.mrf.mxu0
        %v818 = vadd.f32 0.0, %v817
        %819 = vmatmul.bf16.gmra.mxu0 %v727
        %v820 = vpop.f32.mrf.mxu0
        %v821 = vadd.f32 0.0, %v820
        %v822 = vpop.f32.mrf.mxu0
        %v823 = vadd.f32 0.0, %v822
        %824 = vmatmul.bf16.gmra.mxu0 %v728
        %v825 = vpop.f32.mrf.mxu0
        %v826 = vadd.f32 0.0, %v825
        %v827 = vpop.f32.mrf.mxu0
        %v828 = vadd.f32 0.0, %v827
        %829 = vmatmul.bf16.gmra.mxu0 %v729
        %v830 = vpop.f32.mrf.mxu0
        %v831 = vadd.f32 0.0, %v830
        %v832 = vpop.f32.mrf.mxu0
        %v833 = vadd.f32 0.0, %v832
        %834 = vmatmul.bf16.gmra.mxu0 %v730
        %v835 = vpop.f32.mrf.mxu0
        %v836 = vadd.f32 0.0, %v835
        %v837 = vpop.f32.mrf.mxu0
        %v838 = vadd.f32 0.0, %v837
        %839 = vmatmul.bf16.gmra.mxu0 %v731
        %v840 = vpop.f32.mrf.mxu0
        %v841 = vadd.f32 0.0, %v840
        %v842 = vpop.f32.mrf.mxu0
        %v843 = vadd.f32 0.0, %v842
        %844 = vmatmul.bf16.gmra.mxu0 %v732
        %v845 = vpop.f32.mrf.mxu0
        %v846 = vadd.f32 0.0, %v845
        %v847 = vpop.f32.mrf.mxu0
        %v848 = vadd.f32 0.0, %v847
        %849 = vmatmul.bf16.gmra.mxu0 %v733
        %v850 = vpop.f32.mrf.mxu0
        %v851 = vadd.f32 0.0, %v850
        %v852 = vpop.f32.mrf.mxu0
        %v853 = vadd.f32 0.0, %v852
        %854 = vmatmul.bf16.gmra.mxu0 %v734
        %v855 = vpop.f32.mrf.mxu0
        %v856 = vadd.f32 0.0, %v855
        %v857 = vpop.f32.mrf.mxu0
        %v858 = vadd.f32 0.0, %v857
        %859 = vmatmul.bf16.gmra.mxu0 %v735
        %v860 = vpop.f32.mrf.mxu0
        %v861 = vadd.f32 0.0, %v860
        %v862 = vpop.f32.mrf.mxu0
        %v863 = vadd.f32 0.0, %v862
        %864 = vmatmul.bf16.gmra.mxu0 %v736
        %v865 = vpop.f32.mrf.mxu0
        %v866 = vadd.f32 0.0, %v865
        %v867 = vpop.f32.mrf.mxu0
        %v868 = vadd.f32 0.0, %v867
        %869 = vmatmul.bf16.gmra.mxu0 %v737
        %v870 = vpop.f32.mrf.mxu0
        %v871 = vadd.f32 0.0, %v870
        %v872 = vpop.f32.mrf.mxu0
        %v873 = vadd.f32 0.0, %v872
        %874 = vmatmul.bf16.gmra.mxu0 %v738
        %v875 = vpop.f32.mrf.mxu0
        %v876 = vadd.f32 0.0, %v875
        %v877 = vpop.f32.mrf.mxu0
        %v878 = vadd.f32 0.0, %v877
        %879 = vmatmul.bf16.gmra.mxu0 %v739
        %v880 = vpop.f32.mrf.mxu0
        %v881 = vadd.f32 0.0, %v880
        %v882 = vpop.f32.mrf.mxu0
        %v883 = vadd.f32 0.0, %v882
        %884 = vmatmul.bf16.gmra.mxu0 %v740
        %v885 = vpop.f32.mrf.mxu0
        %v886 = vadd.f32 0.0, %v885
        %v887 = vpop.f32.mrf.mxu0
        %v888 = vadd.f32 0.0, %v887
        %889 = vmatmul.bf16.gmra.mxu0 %v741
        %v890 = vpop.f32.mrf.mxu0
        %v891 = vadd.f32 0.0, %v890
        %v892 = vpop.f32.mrf.mxu0
        %v893 = vadd.f32 0.0, %v892
        %894 = vdwg.mxu0
        %895 = vst [vmem:[#allocation4] sm:$0xff] %v816
        %896 = vst [vmem:[#allocation4 + $0x8] sm:$0xff] %v818
        %897 = vst [vmem:[#allocation4 + $0x10] sm:$0xff] %v821
        %898 = vst [vmem:[#allocation4 + $0x18] sm:$0xff] %v823
        %899 = vst [vmem:[#allocation4 + $0x20] sm:$0xff] %v826
        %900 = vst [vmem:[#allocation4 + $0x28] sm:$0xff] %v828
        %901 = vst [vmem:[#allocation4 + $0x30] sm:$0xff] %v831
        %902 = vst [vmem:[#allocation4 + $0x38] sm:$0xff] %v833
        %903 = vst [vmem:[#allocation4 + $0x40] sm:$0xff] %v836
        %904 = vst [vmem:[#allocation4 + $0x48] sm:$0xff] %v838
        %905 = vst [vmem:[#allocation4 + $0x50] sm:$0xff] %v841
        %906 = vst [vmem:[#allocation4 + $0x58] sm:$0xff] %v843
        %907 = vst [vmem:[#allocation4 + $0x60] sm:$0xff] %v846
        %908 = vst [vmem:[#allocation4 + $0x68] sm:$0xff] %v848
        %909 = vst [vmem:[#allocation4 + $0x70] sm:$0xff] %v851
        %910 = vst [vmem:[#allocation4 + $0x78] sm:$0xff] %v853
        %911 = vst [vmem:[#allocation4 + $0x80] sm:$0xff] %v856
        %912 = vst [vmem:[#allocation4 + $0x88] sm:$0xff] %v858
        %913 = vst [vmem:[#allocation4 + $0x90] sm:$0xff] %v861
        %914 = vst [vmem:[#allocation4 + $0x98] sm:$0xff] %v863
        %915 = vst [vmem:[#allocation4 + $0xa0] sm:$0xff] %v866
        %916 = vst [vmem:[#allocation4 + $0xa8] sm:$0xff] %v868
        %917 = vst [vmem:[#allocation4 + $0xb0] sm:$0xff] %v871
        %918 = vst [vmem:[#allocation4 + $0xb8] sm:$0xff] %v873
        %919 = vst [vmem:[#allocation4 + $0xc0] sm:$0xff] %v876
        %920 = vst [vmem:[#allocation4 + $0xc8] sm:$0xff] %v878
        %921 = vst [vmem:[#allocation4 + $0xd0] sm:$0xff] %v881
        %922 = vst [vmem:[#allocation4 + $0xd8] sm:$0xff] %v883
        %923 = vst [vmem:[#allocation4 + $0xe0] sm:$0xff] %v886
        %924 = vst [vmem:[#allocation4 + $0xe8] sm:$0xff] %v888
        %925 = vst [vmem:[#allocation4 + $0xf0] sm:$0xff] %v891
        %926 = vst [vmem:[#allocation4 + $0xf8] sm:$0xff] %v893
        %v927 = vld [vmem:[%s234] sm:$0xf]
        %v928 = vld [vmem:[%s234 + $0x4] sm:$0xf]
        %v929 = vld [vmem:[%s234 + $0x8] sm:$0xf]
        %v930 = vld [vmem:[%s234 + $0xc] sm:$0xf]
        %v931 = vld [vmem:[%s234 + $0x10] sm:$0xf]
        %v932 = vld [vmem:[%s234 + $0x14] sm:$0xf]
        %v933 = vld [vmem:[%s234 + $0x18] sm:$0xf]
        %v934 = vld [vmem:[%s234 + $0x1c] sm:$0xf]
        %v935 = vld [vmem:[%s234 + $0x20] sm:$0xf]
        %v936 = vld [vmem:[%s234 + $0x24] sm:$0xf]
        %v937 = vld [vmem:[%s234 + $0x28] sm:$0xf]
        %v938 = vld [vmem:[%s234 + $0x2c] sm:$0xf]
        %v939 = vld [vmem:[%s234 + $0x30] sm:$0xf]
        %v940 = vld [vmem:[%s234 + $0x34] sm:$0xf]
        %v941 = vld [vmem:[%s234 + $0x38] sm:$0xf]
        %v942 = vld [vmem:[%s234 + $0x3c] sm:$0xf]
        %v943 = vld [vmem:[%s234 + $0x40] sm:$0xf]
        %v944 = vld [vmem:[%s234 + $0x44] sm:$0xf]
        %v945 = vld [vmem:[%s234 + $0x48] sm:$0xf]
        %v946 = vld [vmem:[%s234 + $0x4c] sm:$0xf]
        %v947 = vld [vmem:[%s234 + $0x50] sm:$0xf]
        %v948 = vld [vmem:[%s234 + $0x54] sm:$0xf]
        %v949 = vld [vmem:[%s234 + $0x58] sm:$0xf]
        %v950 = vld [vmem:[%s234 + $0x5c] sm:$0xf]
        %v951 = vld [vmem:[%s234 + $0x60] sm:$0xf]
        %v952 = vld [vmem:[%s234 + $0x64] sm:$0xf]
        %v953 = vld [vmem:[%s234 + $0x68] sm:$0xf]
        %v954 = vld [vmem:[%s234 + $0x6c] sm:$0xf]
        %v955 = vld [vmem:[%s234 + $0x70] sm:$0xf]
        %v956 = vld [vmem:[%s234 + $0x74] sm:$0xf]
        %v957 = vld [vmem:[%s234 + $0x78] sm:$0xf]
        %v958 = vld [vmem:[%s234 + $0x7c] sm:$0xf]
        %s959 = scalar_lea.vmem [#allocation6], 64
        %v960 = vld [vmem:[%s959] sm:$0xf]
        %v961 = vld [vmem:[%s959 + $0x4] sm:$0xf]
        %v962 = vld [vmem:[%s959 + $0x8] sm:$0xf]
        %v963 = vld [vmem:[%s959 + $0xc] sm:$0xf]
        %v964 = vld [vmem:[%s959 + $0x10] sm:$0xf]
        %v965 = vld [vmem:[%s959 + $0x14] sm:$0xf]
        %v966 = vld [vmem:[%s959 + $0x18] sm:$0xf]
        %v967 = vld [vmem:[%s959 + $0x1c] sm:$0xf]
        %v968 = vld [vmem:[%s959 + $0x20] sm:$0xf]
        %v969 = vld [vmem:[%s959 + $0x24] sm:$0xf]
        %v970 = vld [vmem:[%s959 + $0x28] sm:$0xf]
        %v971 = vld [vmem:[%s959 + $0x2c] sm:$0xf]
        %v972 = vld [vmem:[%s959 + $0x30] sm:$0xf]
        %v973 = vld [vmem:[%s959 + $0x34] sm:$0xf]
        %v974 = vld [vmem:[%s959 + $0x38] sm:$0xf]
        %v975 = vld [vmem:[%s959 + $0x3c] sm:$0xf]
        %v1008 = vunpack.c.l.b16 %v927
        %v1009 = vunpack.c.l.b16 %v928
        %v1010 = vunpack.c.l.b16 %v929
        %v1011 = vunpack.c.l.b16 %v930
        %v1012 = vunpack.c.l.b16 %v931
        %v1013 = vunpack.c.l.b16 %v932
        %v1014 = vunpack.c.l.b16 %v933
        %v1015 = vunpack.c.l.b16 %v934
        %v1016 = vunpack.c.l.b16 %v935
        %v1017 = vunpack.c.l.b16 %v936
        %v1018 = vunpack.c.l.b16 %v937
        %v1019 = vunpack.c.l.b16 %v938
        %v1020 = vunpack.c.l.b16 %v939
        %v1021 = vunpack.c.l.b16 %v940
        %v1022 = vunpack.c.l.b16 %v941
        %v1023 = vunpack.c.l.b16 %v942
        %v1024 = vunpack.c.l.b16 %v943
        %v1025 = vunpack.c.l.b16 %v944
        %v1026 = vunpack.c.l.b16 %v945
        %v1027 = vunpack.c.l.b16 %v946
        %v1028 = vunpack.c.l.b16 %v947
        %v1029 = vunpack.c.l.b16 %v948
        %v1030 = vunpack.c.l.b16 %v949
        %v1031 = vunpack.c.l.b16 %v950
        %v1032 = vunpack.c.l.b16 %v951
        %v1033 = vunpack.c.l.b16 %v952
        %v1034 = vunpack.c.l.b16 %v953
        %v1035 = vunpack.c.l.b16 %v954
        %v1036 = vunpack.c.l.b16 %v955
        %v1037 = vunpack.c.l.b16 %v956
        %v1038 = vunpack.c.l.b16 %v957
        %v1039 = vunpack.c.l.b16 %v958
        %v1040 = vpack.c.b16 %v1009, %v1008
        %v1041 = vpack.c.b16 %v1011, %v1010
        %v1042 = vpack.c.b16 %v1013, %v1012
        %v1043 = vpack.c.b16 %v1015, %v1014
        %v1044 = vpack.c.b16 %v1017, %v1016
        %v1045 = vpack.c.b16 %v1019, %v1018
        %v1046 = vpack.c.b16 %v1021, %v1020
        %v1047 = vpack.c.b16 %v1023, %v1022
        %v1048 = vpack.c.b16 %v1025, %v1024
        %v1049 = vpack.c.b16 %v1027, %v1026
        %v1050 = vpack.c.b16 %v1029, %v1028
        %v1051 = vpack.c.b16 %v1031, %v1030
        %v1052 = vpack.c.b16 %v1033, %v1032
        %v1053 = vpack.c.b16 %v1035, %v1034
        %v1054 = vpack.c.b16 %v1037, %v1036
        %v1055 = vpack.c.b16 %v1039, %v1038
        %v1088 = vunpack.c.l.b16 %v960
        %v1089 = vunpack.c.l.b16 %v961
        %v1090 = vunpack.c.l.b16 %v962
        %v1091 = vunpack.c.l.b16 %v963
        %v1092 = vunpack.c.l.b16 %v964
        %v1093 = vunpack.c.l.b16 %v965
        %v1094 = vunpack.c.l.b16 %v966
        %v1095 = vunpack.c.l.b16 %v967
        %v1096 = vunpack.c.l.b16 %v968
        %v1097 = vunpack.c.l.b16 %v969
        %v1098 = vunpack.c.l.b16 %v970
        %v1099 = vunpack.c.l.b16 %v971
        %v1100 = vunpack.c.l.b16 %v972
        %v1101 = vunpack.c.l.b16 %v973
        %v1102 = vunpack.c.l.b16 %v974
        %v1103 = vunpack.c.l.b16 %v975
        %v1104 = vpack.c.b16 %v1089, %v1088
        %v1105 = vpack.c.b16 %v1091, %v1090
        %v1106 = vpack.c.b16 %v1093, %v1092
        %v1107 = vpack.c.b16 %v1095, %v1094
        %v1108 = vpack.c.b16 %v1097, %v1096
        %v1109 = vpack.c.b16 %v1099, %v1098
        %v1110 = vpack.c.b16 %v1101, %v1100
        %v1111 = vpack.c.b16 %v1103, %v1102
        %1120 = vmatpush.bf16.msra.mxu0 %v1111
        %1121 = vmatpush.bf16.msra.mxu0 %v1110
        %1122 = vmatpush.bf16.msra.mxu0 %v1109
        %1123 = vmatpush.bf16.msra.mxu0 %v1108
        %1124 = vmatpush.bf16.msra.mxu0 %v1107
        %1125 = vmatpush.bf16.msra.mxu0 %v1106
        %1126 = vmatpush.bf16.msra.mxu0 %v1105
        %1127 = vmatpush.bf16.msra.mxu0 %v1104
        %1128 = vmatmul.bf16.gmra.mxu0 %v1040
        %v1129 = vpop.f32.mrf.mxu0
        %v1130 = vadd.f32 0.0, %v1129
        %v1131 = vpop.f32.mrf.mxu0
        %v1132 = vadd.f32 0.0, %v1131
        %1133 = vmatmul.bf16.gmra.mxu0 %v1041
        %v1134 = vpop.f32.mrf.mxu0
        %v1135 = vadd.f32 0.0, %v1134
        %v1136 = vpop.f32.mrf.mxu0
        %v1137 = vadd.f32 0.0, %v1136
        %1138 = vmatmul.bf16.gmra.mxu0 %v1042
        %v1139 = vpop.f32.mrf.mxu0
        %v1140 = vadd.f32 0.0, %v1139
        %v1141 = vpop.f32.mrf.mxu0
        %v1142 = vadd.f32 0.0, %v1141
        %1143 = vmatmul.bf16.gmra.mxu0 %v1043
        %v1144 = vpop.f32.mrf.mxu0
        %v1145 = vadd.f32 0.0, %v1144
        %v1146 = vpop.f32.mrf.mxu0
        %v1147 = vadd.f32 0.0, %v1146
        %1148 = vmatmul.bf16.gmra.mxu0 %v1044
        %v1149 = vpop.f32.mrf.mxu0
        %v1150 = vadd.f32 0.0, %v1149
        %v1151 = vpop.f32.mrf.mxu0
        %v1152 = vadd.f32 0.0, %v1151
        %1153 = vmatmul.bf16.gmra.mxu0 %v1045
        %v1154 = vpop.f32.mrf.mxu0
        %v1155 = vadd.f32 0.0, %v1154
        %v1156 = vpop.f32.mrf.mxu0
        %v1157 = vadd.f32 0.0, %v1156
        %1158 = vmatmul.bf16.gmra.mxu0 %v1046
        %v1159 = vpop.f32.mrf.mxu0
        %v1160 = vadd.f32 0.0, %v1159
        %v1161 = vpop.f32.mrf.mxu0
        %v1162 = vadd.f32 0.0, %v1161
        %1163 = vmatmul.bf16.gmra.mxu0 %v1047
        %v1164 = vpop.f32.mrf.mxu0
        %v1165 = vadd.f32 0.0, %v1164
        %v1166 = vpop.f32.mrf.mxu0
        %v1167 = vadd.f32 0.0, %v1166
        %1168 = vmatmul.bf16.gmra.mxu0 %v1048
        %v1169 = vpop.f32.mrf.mxu0
        %v1170 = vadd.f32 0.0, %v1169
        %v1171 = vpop.f32.mrf.mxu0
        %v1172 = vadd.f32 0.0, %v1171
        %1173 = vmatmul.bf16.gmra.mxu0 %v1049
        %v1174 = vpop.f32.mrf.mxu0
        %v1175 = vadd.f32 0.0, %v1174
        %v1176 = vpop.f32.mrf.mxu0
        %v1177 = vadd.f32 0.0, %v1176
        %1178 = vmatmul.bf16.gmra.mxu0 %v1050
        %v1179 = vpop.f32.mrf.mxu0
        %v1180 = vadd.f32 0.0, %v1179
        %v1181 = vpop.f32.mrf.mxu0
        %v1182 = vadd.f32 0.0, %v1181
        %1183 = vmatmul.bf16.gmra.mxu0 %v1051
        %v1184 = vpop.f32.mrf.mxu0
        %v1185 = vadd.f32 0.0, %v1184
        %v1186 = vpop.f32.mrf.mxu0
        %v1187 = vadd.f32 0.0, %v1186
        %1188 = vmatmul.bf16.gmra.mxu0 %v1052
        %v1189 = vpop.f32.mrf.mxu0
        %v1190 = vadd.f32 0.0, %v1189
        %v1191 = vpop.f32.mrf.mxu0
        %v1192 = vadd.f32 0.0, %v1191
        %1193 = vmatmul.bf16.gmra.mxu0 %v1053
        %v1194 = vpop.f32.mrf.mxu0
        %v1195 = vadd.f32 0.0, %v1194
        %v1196 = vpop.f32.mrf.mxu0
        %v1197 = vadd.f32 0.0, %v1196
        %1198 = vmatmul.bf16.gmra.mxu0 %v1054
        %v1199 = vpop.f32.mrf.mxu0
        %v1200 = vadd.f32 0.0, %v1199
        %v1201 = vpop.f32.mrf.mxu0
        %v1202 = vadd.f32 0.0, %v1201
        %1203 = vmatmul.bf16.gmra.mxu0 %v1055
        %v1204 = vpop.f32.mrf.mxu0
        %v1205 = vadd.f32 0.0, %v1204
        %v1206 = vpop.f32.mrf.mxu0
        %v1207 = vadd.f32 0.0, %v1206
        %1208 = vdwg.mxu0
        %v1209 = vld [vmem:[#allocation4] sm:$0xff]
        %v1210 = vld [vmem:[#allocation4 + $0x8] sm:$0xff]
        %v1211 = vld [vmem:[#allocation4 + $0x10] sm:$0xff]
        %v1212 = vld [vmem:[#allocation4 + $0x18] sm:$0xff]
        %v1213 = vld [vmem:[#allocation4 + $0x20] sm:$0xff]
        %v1214 = vld [vmem:[#allocation4 + $0x28] sm:$0xff]
        %v1215 = vld [vmem:[#allocation4 + $0x30] sm:$0xff]
        %v1216 = vld [vmem:[#allocation4 + $0x38] sm:$0xff]
        %v1217 = vld [vmem:[#allocation4 + $0x40] sm:$0xff]
        %v1218 = vld [vmem:[#allocation4 + $0x48] sm:$0xff]
        %v1219 = vld [vmem:[#allocation4 + $0x50] sm:$0xff]
        %v1220 = vld [vmem:[#allocation4 + $0x58] sm:$0xff]
        %v1221 = vld [vmem:[#allocation4 + $0x60] sm:$0xff]
        %v1222 = vld [vmem:[#allocation4 + $0x68] sm:$0xff]
        %v1223 = vld [vmem:[#allocation4 + $0x70] sm:$0xff]
        %v1224 = vld [vmem:[#allocation4 + $0x78] sm:$0xff]
        %v1225 = vld [vmem:[#allocation4 + $0x80] sm:$0xff]
        %v1226 = vld [vmem:[#allocation4 + $0x88] sm:$0xff]
        %v1227 = vld [vmem:[#allocation4 + $0x90] sm:$0xff]
        %v1228 = vld [vmem:[#allocation4 + $0x98] sm:$0xff]
        %v1229 = vld [vmem:[#allocation4 + $0xa0] sm:$0xff]
        %v1230 = vld [vmem:[#allocation4 + $0xa8] sm:$0xff]
        %v1231 = vld [vmem:[#allocation4 + $0xb0] sm:$0xff]
        %v1232 = vld [vmem:[#allocation4 + $0xb8] sm:$0xff]
        %v1233 = vld [vmem:[#allocation4 + $0xc0] sm:$0xff]
        %v1234 = vld [vmem:[#allocation4 + $0xc8] sm:$0xff]
        %v1235 = vld [vmem:[#allocation4 + $0xd0] sm:$0xff]
        %v1236 = vld [vmem:[#allocation4 + $0xd8] sm:$0xff]
        %v1237 = vld [vmem:[#allocation4 + $0xe0] sm:$0xff]
        %v1238 = vld [vmem:[#allocation4 + $0xe8] sm:$0xff]
        %v1239 = vld [vmem:[#allocation4 + $0xf0] sm:$0xff]
        %v1240 = vld [vmem:[#allocation4 + $0xf8] sm:$0xff]
        %v1241 = vadd.f32 %v1209, %v1130
        %v1242 = vadd.f32 %v1210, %v1132
        %v1243 = vadd.f32 %v1211, %v1135
        %v1244 = vadd.f32 %v1212, %v1137
        %v1245 = vadd.f32 %v1213, %v1140
        %v1246 = vadd.f32 %v1214, %v1142
        %v1247 = vadd.f32 %v1215, %v1145
        %v1248 = vadd.f32 %v1216, %v1147
        %v1249 = vadd.f32 %v1217, %v1150
        %v1250 = vadd.f32 %v1218, %v1152
        %v1251 = vadd.f32 %v1219, %v1155
        %v1252 = vadd.f32 %v1220, %v1157
        %v1253 = vadd.f32 %v1221, %v1160
        %v1254 = vadd.f32 %v1222, %v1162
        %v1255 = vadd.f32 %v1223, %v1165
        %v1256 = vadd.f32 %v1224, %v1167
        %v1257 = vadd.f32 %v1225, %v1170
        %v1258 = vadd.f32 %v1226, %v1172
        %v1259 = vadd.f32 %v1227, %v1175
        %v1260 = vadd.f32 %v1228, %v1177
        %v1261 = vadd.f32 %v1229, %v1180
        %v1262 = vadd.f32 %v1230, %v1182
        %v1263 = vadd.f32 %v1231, %v1185
        %v1264 = vadd.f32 %v1232, %v1187
        %v1265 = vadd.f32 %v1233, %v1190
        %v1266 = vadd.f32 %v1234, %v1192
        %v1267 = vadd.f32 %v1235, %v1195
        %v1268 = vadd.f32 %v1236, %v1197
        %v1269 = vadd.f32 %v1237, %v1200
        %v1270 = vadd.f32 %v1238, %v1202
        %v1271 = vadd.f32 %v1239, %v1205
        %v1272 = vadd.f32 %v1240, %v1207
        %1273 = vst [vmem:[#allocation4] sm:$0xff] %v1241
        %1274 = vst [vmem:[#allocation4 + $0x8] sm:$0xff] %v1242
        %1275 = vst [vmem:[#allocation4 + $0x10] sm:$0xff] %v1243
        %1276 = vst [vmem:[#allocation4 + $0x18] sm:$0xff] %v1244
        %1277 = vst [vmem:[#allocation4 + $0x20] sm:$0xff] %v1245
        %1278 = vst [vmem:[#allocation4 + $0x28] sm:$0xff] %v1246
        %1279 = vst [vmem:[#allocation4 + $0x30] sm:$0xff] %v1247
        %1280 = vst [vmem:[#allocation4 + $0x38] sm:$0xff] %v1248
        %1281 = vst [vmem:[#allocation4 + $0x40] sm:$0xff] %v1249
        %1282 = vst [vmem:[#allocation4 + $0x48] sm:$0xff] %v1250
        %1283 = vst [vmem:[#allocation4 + $0x50] sm:$0xff] %v1251
        %1284 = vst [vmem:[#allocation4 + $0x58] sm:$0xff] %v1252
        %1285 = vst [vmem:[#allocation4 + $0x60] sm:$0xff] %v1253
        %1286 = vst [vmem:[#allocation4 + $0x68] sm:$0xff] %v1254
        %1287 = vst [vmem:[#allocation4 + $0x70] sm:$0xff] %v1255
        %1288 = vst [vmem:[#allocation4 + $0x78] sm:$0xff] %v1256
        %1289 = vst [vmem:[#allocation4 + $0x80] sm:$0xff] %v1257
        %1290 = vst [vmem:[#allocation4 + $0x88] sm:$0xff] %v1258
        %1291 = vst [vmem:[#allocation4 + $0x90] sm:$0xff] %v1259
        %1292 = vst [vmem:[#allocation4 + $0x98] sm:$0xff] %v1260
        %1293 = vst [vmem:[#allocation4 + $0xa0] sm:$0xff] %v1261
        %1294 = vst [vmem:[#allocation4 + $0xa8] sm:$0xff] %v1262
        %1295 = vst [vmem:[#allocation4 + $0xb0] sm:$0xff] %v1263
        %1296 = vst [vmem:[#allocation4 + $0xb8] sm:$0xff] %v1264
        %1297 = vst [vmem:[#allocation4 + $0xc0] sm:$0xff] %v1265
        %1298 = vst [vmem:[#allocation4 + $0xc8] sm:$0xff] %v1266
        %1299 = vst [vmem:[#allocation4 + $0xd0] sm:$0xff] %v1267
        %1300 = vst [vmem:[#allocation4 + $0xd8] sm:$0xff] %v1268
        %1301 = vst [vmem:[#allocation4 + $0xe0] sm:$0xff] %v1269
        %1302 = vst [vmem:[#allocation4 + $0xe8] sm:$0xff] %v1270
        %1303 = vst [vmem:[#allocation4 + $0xf0] sm:$0xff] %v1271
        %1304 = vst [vmem:[#allocation4 + $0xf8] sm:$0xff] %v1272
        %v1305 = vld [vmem:[%s239] sm:$0xf]
        %v1306 = vld [vmem:[%s239 + $0x4] sm:$0xf]
        %v1307 = vld [vmem:[%s239 + $0x8] sm:$0xf]
        %v1308 = vld [vmem:[%s239 + $0xc] sm:$0xf]
        %v1309 = vld [vmem:[%s239 + $0x10] sm:$0xf]
        %v1310 = vld [vmem:[%s239 + $0x14] sm:$0xf]
        %v1311 = vld [vmem:[%s239 + $0x18] sm:$0xf]
        %v1312 = vld [vmem:[%s239 + $0x1c] sm:$0xf]
        %v1313 = vld [vmem:[%s239 + $0x20] sm:$0xf]
        %v1314 = vld [vmem:[%s239 + $0x24] sm:$0xf]
        %v1315 = vld [vmem:[%s239 + $0x28] sm:$0xf]
        %v1316 = vld [vmem:[%s239 + $0x2c] sm:$0xf]
        %v1317 = vld [vmem:[%s239 + $0x30] sm:$0xf]
        %v1318 = vld [vmem:[%s239 + $0x34] sm:$0xf]
        %v1319 = vld [vmem:[%s239 + $0x38] sm:$0xf]
        %v1320 = vld [vmem:[%s239 + $0x3c] sm:$0xf]
        %v1321 = vld [vmem:[%s239 + $0x40] sm:$0xf]
        %v1322 = vld [vmem:[%s239 + $0x44] sm:$0xf]
        %v1323 = vld [vmem:[%s239 + $0x48] sm:$0xf]
        %v1324 = vld [vmem:[%s239 + $0x4c] sm:$0xf]
        %v1325 = vld [vmem:[%s239 + $0x50] sm:$0xf]
        %v1326 = vld [vmem:[%s239 + $0x54] sm:$0xf]
        %v1327 = vld [vmem:[%s239 + $0x58] sm:$0xf]
        %v1328 = vld [vmem:[%s239 + $0x5c] sm:$0xf]
        %v1329 = vld [vmem:[%s239 + $0x60] sm:$0xf]
        %v1330 = vld [vmem:[%s239 + $0x64] sm:$0xf]
        %v1331 = vld [vmem:[%s239 + $0x68] sm:$0xf]
        %v1332 = vld [vmem:[%s239 + $0x6c] sm:$0xf]
        %v1333 = vld [vmem:[%s239 + $0x70] sm:$0xf]
        %v1334 = vld [vmem:[%s239 + $0x74] sm:$0xf]
        %v1335 = vld [vmem:[%s239 + $0x78] sm:$0xf]
        %v1336 = vld [vmem:[%s239 + $0x7c] sm:$0xf]
        %s1337 = scalar_lea.vmem [#allocation6], 128
        %v1338 = vld [vmem:[%s1337] sm:$0xf]
        %v1339 = vld [vmem:[%s1337 + $0x4] sm:$0xf]
        %v1340 = vld [vmem:[%s1337 + $0x8] sm:$0xf]
        %v1341 = vld [vmem:[%s1337 + $0xc] sm:$0xf]
        %v1342 = vld [vmem:[%s1337 + $0x10] sm:$0xf]
        %v1343 = vld [vmem:[%s1337 + $0x14] sm:$0xf]
        %v1344 = vld [vmem:[%s1337 + $0x18] sm:$0xf]
        %v1345 = vld [vmem:[%s1337 + $0x1c] sm:$0xf]
        %v1346 = vld [vmem:[%s1337 + $0x20] sm:$0xf]
        %v1347 = vld [vmem:[%s1337 + $0x24] sm:$0xf]
        %v1348 = vld [vmem:[%s1337 + $0x28] sm:$0xf]
        %v1349 = vld [vmem:[%s1337 + $0x2c] sm:$0xf]
        %v1350 = vld [vmem:[%s1337 + $0x30] sm:$0xf]
        %v1351 = vld [vmem:[%s1337 + $0x34] sm:$0xf]
        %v1352 = vld [vmem:[%s1337 + $0x38] sm:$0xf]
        %v1353 = vld [vmem:[%s1337 + $0x3c] sm:$0xf]
        %v1386 = vunpack.c.l.b16 %v1305
        %v1387 = vunpack.c.l.b16 %v1306
        %v1388 = vunpack.c.l.b16 %v1307
        %v1389 = vunpack.c.l.b16 %v1308
        %v1390 = vunpack.c.l.b16 %v1309
        %v1391 = vunpack.c.l.b16 %v1310
        %v1392 = vunpack.c.l.b16 %v1311
        %v1393 = vunpack.c.l.b16 %v1312
        %v1394 = vunpack.c.l.b16 %v1313
        %v1395 = vunpack.c.l.b16 %v1314
        %v1396 = vunpack.c.l.b16 %v1315
        %v1397 = vunpack.c.l.b16 %v1316
        %v1398 = vunpack.c.l.b16 %v1317
        %v1399 = vunpack.c.l.b16 %v1318
        %v1400 = vunpack.c.l.b16 %v1319
        %v1401 = vunpack.c.l.b16 %v1320
        %v1402 = vunpack.c.l.b16 %v1321
        %v1403 = vunpack.c.l.b16 %v1322
        %v1404 = vunpack.c.l.b16 %v1323
        %v1405 = vunpack.c.l.b16 %v1324
        %v1406 = vunpack.c.l.b16 %v1325
        %v1407 = vunpack.c.l.b16 %v1326
        %v1408 = vunpack.c.l.b16 %v1327
        %v1409 = vunpack.c.l.b16 %v1328
        %v1410 = vunpack.c.l.b16 %v1329
        %v1411 = vunpack.c.l.b16 %v1330
        %v1412 = vunpack.c.l.b16 %v1331
        %v1413 = vunpack.c.l.b16 %v1332
        %v1414 = vunpack.c.l.b16 %v1333
        %v1415 = vunpack.c.l.b16 %v1334
        %v1416 = vunpack.c.l.b16 %v1335
        %v1417 = vunpack.c.l.b16 %v1336
        %v1418 = vpack.c.b16 %v1387, %v1386
        %v1419 = vpack.c.b16 %v1389, %v1388
        %v1420 = vpack.c.b16 %v1391, %v1390
        %v1421 = vpack.c.b16 %v1393, %v1392
        %v1422 = vpack.c.b16 %v1395, %v1394
        %v1423 = vpack.c.b16 %v1397, %v1396
        %v1424 = vpack.c.b16 %v1399, %v1398
        %v1425 = vpack.c.b16 %v1401, %v1400
        %v1426 = vpack.c.b16 %v1403, %v1402
        %v1427 = vpack.c.b16 %v1405, %v1404
        %v1428 = vpack.c.b16 %v1407, %v1406
        %v1429 = vpack.c.b16 %v1409, %v1408
        %v1430 = vpack.c.b16 %v1411, %v1410
        %v1431 = vpack.c.b16 %v1413, %v1412
        %v1432 = vpack.c.b16 %v1415, %v1414
        %v1433 = vpack.c.b16 %v1417, %v1416
        %v1466 = vunpack.c.l.b16 %v1338
        %v1467 = vunpack.c.l.b16 %v1339
        %v1468 = vunpack.c.l.b16 %v1340
        %v1469 = vunpack.c.l.b16 %v1341
        %v1470 = vunpack.c.l.b16 %v1342
        %v1471 = vunpack.c.l.b16 %v1343
        %v1472 = vunpack.c.l.b16 %v1344
        %v1473 = vunpack.c.l.b16 %v1345
        %v1474 = vunpack.c.l.b16 %v1346
        %v1475 = vunpack.c.l.b16 %v1347
        %v1476 = vunpack.c.l.b16 %v1348
        %v1477 = vunpack.c.l.b16 %v1349
        %v1478 = vunpack.c.l.b16 %v1350
        %v1479 = vunpack.c.l.b16 %v1351
        %v1480 = vunpack.c.l.b16 %v1352
        %v1481 = vunpack.c.l.b16 %v1353
        %v1482 = vpack.c.b16 %v1467, %v1466
        %v1483 = vpack.c.b16 %v1469, %v1468
        %v1484 = vpack.c.b16 %v1471, %v1470
        %v1485 = vpack.c.b16 %v1473, %v1472
        %v1486 = vpack.c.b16 %v1475, %v1474
        %v1487 = vpack.c.b16 %v1477, %v1476
        %v1488 = vpack.c.b16 %v1479, %v1478
        %v1489 = vpack.c.b16 %v1481, %v1480
        %1498 = vmatpush.bf16.msra.mxu0 %v1489
        %1499 = vmatpush.bf16.msra.mxu0 %v1488
        %1500 = vmatpush.bf16.msra.mxu0 %v1487
        %1501 = vmatpush.bf16.msra.mxu0 %v1486
        %1502 = vmatpush.bf16.msra.mxu0 %v1485
        %1503 = vmatpush.bf16.msra.mxu0 %v1484
        %1504 = vmatpush.bf16.msra.mxu0 %v1483
        %1505 = vmatpush.bf16.msra.mxu0 %v1482
        %1506 = vmatmul.bf16.gmra.mxu0 %v1418
        %v1507 = vpop.f32.mrf.mxu0
        %v1508 = vadd.f32 0.0, %v1507
        %v1509 = vpop.f32.mrf.mxu0
        %v1510 = vadd.f32 0.0, %v1509
        %1511 = vmatmul.bf16.gmra.mxu0 %v1419
        %v1512 = vpop.f32.mrf.mxu0
        %v1513 = vadd.f32 0.0, %v1512
        %v1514 = vpop.f32.mrf.mxu0
        %v1515 = vadd.f32 0.0, %v1514
        %1516 = vmatmul.bf16.gmra.mxu0 %v1420
        %v1517 = vpop.f32.mrf.mxu0
        %v1518 = vadd.f32 0.0, %v1517
        %v1519 = vpop.f32.mrf.mxu0
        %v1520 = vadd.f32 0.0, %v1519
        %1521 = vmatmul.bf16.gmra.mxu0 %v1421
        %v1522 = vpop.f32.mrf.mxu0
        %v1523 = vadd.f32 0.0, %v1522
        %v1524 = vpop.f32.mrf.mxu0
        %v1525 = vadd.f32 0.0, %v1524
        %1526 = vmatmul.bf16.gmra.mxu0 %v1422
        %v1527 = vpop.f32.mrf.mxu0
        %v1528 = vadd.f32 0.0, %v1527
        %v1529 = vpop.f32.mrf.mxu0
        %v1530 = vadd.f32 0.0, %v1529
        %1531 = vmatmul.bf16.gmra.mxu0 %v1423
        %v1532 = vpop.f32.mrf.mxu0
        %v1533 = vadd.f32 0.0, %v1532
        %v1534 = vpop.f32.mrf.mxu0
        %v1535 = vadd.f32 0.0, %v1534
        %1536 = vmatmul.bf16.gmra.mxu0 %v1424
        %v1537 = vpop.f32.mrf.mxu0
        %v1538 = vadd.f32 0.0, %v1537
        %v1539 = vpop.f32.mrf.mxu0
        %v1540 = vadd.f32 0.0, %v1539
        %1541 = vmatmul.bf16.gmra.mxu0 %v1425
        %v1542 = vpop.f32.mrf.mxu0
        %v1543 = vadd.f32 0.0, %v1542
        %v1544 = vpop.f32.mrf.mxu0
        %v1545 = vadd.f32 0.0, %v1544
        %1546 = vmatmul.bf16.gmra.mxu0 %v1426
        %v1547 = vpop.f32.mrf.mxu0
        %v1548 = vadd.f32 0.0, %v1547
        %v1549 = vpop.f32.mrf.mxu0
        %v1550 = vadd.f32 0.0, %v1549
        %1551 = vmatmul.bf16.gmra.mxu0 %v1427
        %v1552 = vpop.f32.mrf.mxu0
        %v1553 = vadd.f32 0.0, %v1552
        %v1554 = vpop.f32.mrf.mxu0
        %v1555 = vadd.f32 0.0, %v1554
        %1556 = vmatmul.bf16.gmra.mxu0 %v1428
        %v1557 = vpop.f32.mrf.mxu0
        %v1558 = vadd.f32 0.0, %v1557
        %v1559 = vpop.f32.mrf.mxu0
        %v1560 = vadd.f32 0.0, %v1559
        %1561 = vmatmul.bf16.gmra.mxu0 %v1429
        %v1562 = vpop.f32.mrf.mxu0
        %v1563 = vadd.f32 0.0, %v1562
        %v1564 = vpop.f32.mrf.mxu0
        %v1565 = vadd.f32 0.0, %v1564
        %1566 = vmatmul.bf16.gmra.mxu0 %v1430
        %v1567 = vpop.f32.mrf.mxu0
        %v1568 = vadd.f32 0.0, %v1567
        %v1569 = vpop.f32.mrf.mxu0
        %v1570 = vadd.f32 0.0, %v1569
        %1571 = vmatmul.bf16.gmra.mxu0 %v1431
        %v1572 = vpop.f32.mrf.mxu0
        %v1573 = vadd.f32 0.0, %v1572
        %v1574 = vpop.f32.mrf.mxu0
        %v1575 = vadd.f32 0.0, %v1574
        %1576 = vmatmul.bf16.gmra.mxu0 %v1432
        %v1577 = vpop.f32.mrf.mxu0
        %v1578 = vadd.f32 0.0, %v1577
        %v1579 = vpop.f32.mrf.mxu0
        %v1580 = vadd.f32 0.0, %v1579
        %1581 = vmatmul.bf16.gmra.mxu0 %v1433
        %v1582 = vpop.f32.mrf.mxu0
        %v1583 = vadd.f32 0.0, %v1582
        %v1584 = vpop.f32.mrf.mxu0
        %v1585 = vadd.f32 0.0, %v1584
        %1586 = vdwg.mxu0
        %v1587 = vld [vmem:[#allocation4] sm:$0xff]
        %v1588 = vld [vmem:[#allocation4 + $0x8] sm:$0xff]
        %v1589 = vld [vmem:[#allocation4 + $0x10] sm:$0xff]
        %v1590 = vld [vmem:[#allocation4 + $0x18] sm:$0xff]
        %v1591 = vld [vmem:[#allocation4 + $0x20] sm:$0xff]
        %v1592 = vld [vmem:[#allocation4 + $0x28] sm:$0xff]
        %v1593 = vld [vmem:[#allocation4 + $0x30] sm:$0xff]
        %v1594 = vld [vmem:[#allocation4 + $0x38] sm:$0xff]
        %v1595 = vld [vmem:[#allocation4 + $0x40] sm:$0xff]
        %v1596 = vld [vmem:[#allocation4 + $0x48] sm:$0xff]
        %v1597 = vld [vmem:[#allocation4 + $0x50] sm:$0xff]
        %v1598 = vld [vmem:[#allocation4 + $0x58] sm:$0xff]
        %v1599 = vld [vmem:[#allocation4 + $0x60] sm:$0xff]
        %v1600 = vld [vmem:[#allocation4 + $0x68] sm:$0xff]
        %v1601 = vld [vmem:[#allocation4 + $0x70] sm:$0xff]
        %v1602 = vld [vmem:[#allocation4 + $0x78] sm:$0xff]
        %v1603 = vld [vmem:[#allocation4 + $0x80] sm:$0xff]
        %v1604 = vld [vmem:[#allocation4 + $0x88] sm:$0xff]
        %v1605 = vld [vmem:[#allocation4 + $0x90] sm:$0xff]
        %v1606 = vld [vmem:[#allocation4 + $0x98] sm:$0xff]
        %v1607 = vld [vmem:[#allocation4 + $0xa0] sm:$0xff]
        %v1608 = vld [vmem:[#allocation4 + $0xa8] sm:$0xff]
        %v1609 = vld [vmem:[#allocation4 + $0xb0] sm:$0xff]
        %v1610 = vld [vmem:[#allocation4 + $0xb8] sm:$0xff]
        %v1611 = vld [vmem:[#allocation4 + $0xc0] sm:$0xff]
        %v1612 = vld [vmem:[#allocation4 + $0xc8] sm:$0xff]
        %v1613 = vld [vmem:[#allocation4 + $0xd0] sm:$0xff]
        %v1614 = vld [vmem:[#allocation4 + $0xd8] sm:$0xff]
        %v1615 = vld [vmem:[#allocation4 + $0xe0] sm:$0xff]
        %v1616 = vld [vmem:[#allocation4 + $0xe8] sm:$0xff]
        %v1617 = vld [vmem:[#allocation4 + $0xf0] sm:$0xff]
        %v1618 = vld [vmem:[#allocation4 + $0xf8] sm:$0xff]
        %v1619 = vadd.f32 %v1587, %v1508
        %v1620 = vadd.f32 %v1588, %v1510
        %v1621 = vadd.f32 %v1589, %v1513
        %v1622 = vadd.f32 %v1590, %v1515
        %v1623 = vadd.f32 %v1591, %v1518
        %v1624 = vadd.f32 %v1592, %v1520
        %v1625 = vadd.f32 %v1593, %v1523
        %v1626 = vadd.f32 %v1594, %v1525
        %v1627 = vadd.f32 %v1595, %v1528
        %v1628 = vadd.f32 %v1596, %v1530
        %v1629 = vadd.f32 %v1597, %v1533
        %v1630 = vadd.f32 %v1598, %v1535
        %v1631 = vadd.f32 %v1599, %v1538
        %v1632 = vadd.f32 %v1600, %v1540
        %v1633 = vadd.f32 %v1601, %v1543
        %v1634 = vadd.f32 %v1602, %v1545
        %v1635 = vadd.f32 %v1603, %v1548
        %v1636 = vadd.f32 %v1604, %v1550
        %v1637 = vadd.f32 %v1605, %v1553
        %v1638 = vadd.f32 %v1606, %v1555
        %v1639 = vadd.f32 %v1607, %v1558
        %v1640 = vadd.f32 %v1608, %v1560
        %v1641 = vadd.f32 %v1609, %v1563
        %v1642 = vadd.f32 %v1610, %v1565
        %v1643 = vadd.f32 %v1611, %v1568
        %v1644 = vadd.f32 %v1612, %v1570
        %v1645 = vadd.f32 %v1613, %v1573
        %v1646 = vadd.f32 %v1614, %v1575
        %v1647 = vadd.f32 %v1615, %v1578
        %v1648 = vadd.f32 %v1616, %v1580
        %v1649 = vadd.f32 %v1617, %v1583
        %v1650 = vadd.f32 %v1618, %v1585
        %1651 = vst [vmem:[#allocation4] sm:$0xff] %v1619
        %1652 = vst [vmem:[#allocation4 + $0x8] sm:$0xff] %v1620
        %1653 = vst [vmem:[#allocation4 + $0x10] sm:$0xff] %v1621
        %1654 = vst [vmem:[#allocation4 + $0x18] sm:$0xff] %v1622
        %1655 = vst [vmem:[#allocation4 + $0x20] sm:$0xff] %v1623
        %1656 = vst [vmem:[#allocation4 + $0x28] sm:$0xff] %v1624
        %1657 = vst [vmem:[#allocation4 + $0x30] sm:$0xff] %v1625
        %1658 = vst [vmem:[#allocation4 + $0x38] sm:$0xff] %v1626
        %1659 = vst [vmem:[#allocation4 + $0x40] sm:$0xff] %v1627
        %1660 = vst [vmem:[#allocation4 + $0x48] sm:$0xff] %v1628
        %1661 = vst [vmem:[#allocation4 + $0x50] sm:$0xff] %v1629
        %1662 = vst [vmem:[#allocation4 + $0x58] sm:$0xff] %v1630
        %1663 = vst [vmem:[#allocation4 + $0x60] sm:$0xff] %v1631
        %1664 = vst [vmem:[#allocation4 + $0x68] sm:$0xff] %v1632
        %1665 = vst [vmem:[#allocation4 + $0x70] sm:$0xff] %v1633
        %1666 = vst [vmem:[#allocation4 + $0x78] sm:$0xff] %v1634
        %1667 = vst [vmem:[#allocation4 + $0x80] sm:$0xff] %v1635
        %1668 = vst [vmem:[#allocation4 + $0x88] sm:$0xff] %v1636
        %1669 = vst [vmem:[#allocation4 + $0x90] sm:$0xff] %v1637
        %1670 = vst [vmem:[#allocation4 + $0x98] sm:$0xff] %v1638
        %1671 = vst [vmem:[#allocation4 + $0xa0] sm:$0xff] %v1639
        %1672 = vst [vmem:[#allocation4 + $0xa8] sm:$0xff] %v1640
        %1673 = vst [vmem:[#allocation4 + $0xb0] sm:$0xff] %v1641
        %1674 = vst [vmem:[#allocation4 + $0xb8] sm:$0xff] %v1642
        %1675 = vst [vmem:[#allocation4 + $0xc0] sm:$0xff] %v1643
        %1676 = vst [vmem:[#allocation4 + $0xc8] sm:$0xff] %v1644
        %1677 = vst [vmem:[#allocation4 + $0xd0] sm:$0xff] %v1645
        %1678 = vst [vmem:[#allocation4 + $0xd8] sm:$0xff] %v1646
        %1679 = vst [vmem:[#allocation4 + $0xe0] sm:$0xff] %v1647
        %1680 = vst [vmem:[#allocation4 + $0xe8] sm:$0xff] %v1648
        %1681 = vst [vmem:[#allocation4 + $0xf0] sm:$0xff] %v1649
        %1682 = vst [vmem:[#allocation4 + $0xf8] sm:$0xff] %v1650
        %v1683 = vld [vmem:[#allocation3 + $0x8] sm:$0xf]
        %v1684 = vld [vmem:[#allocation3 + $0xc] sm:$0xf]
        %v1685 = vld [vmem:[#allocation3 + $0x10] sm:$0xf]
        %v1686 = vld [vmem:[#allocation3 + $0x14] sm:$0xf]
        %v1687 = vld [vmem:[#allocation3 + $0x18] sm:$0xf]
        %v1688 = vld [vmem:[#allocation3 + $0x1c] sm:$0xf]
        %v1689 = vld [vmem:[#allocation3 + $0x20] sm:$0xf]
        %v1690 = vld [vmem:[#allocation3 + $0x24] sm:$0xf]
        %v1691 = vld [vmem:[#allocation3 + $0x28] sm:$0xf]
        %v1692 = vld [vmem:[#allocation3 + $0x2c] sm:$0xf]
        %v1693 = vld [vmem:[#allocation3 + $0x30] sm:$0xf]
        %v1694 = vld [vmem:[#allocation3 + $0x34] sm:$0xf]
        %v1695 = vld [vmem:[#allocation3 + $0x38] sm:$0xf]
        %v1696 = vld [vmem:[#allocation3 + $0x3c] sm:$0xf]
        %v1697 = vld [vmem:[#allocation3 + $0x40] sm:$0xf]
        %v1698 = vld [vmem:[#allocation3 + $0x44] sm:$0xf]
        %v1699 = vld [vmem:[#allocation3 + $0x48] sm:$0xf]
        %v1700 = vld [vmem:[#allocation3 + $0x4c] sm:$0xf]
        %v1701 = vld [vmem:[#allocation3 + $0x50] sm:$0xf]
        %v1702 = vld [vmem:[#allocation3 + $0x54] sm:$0xf]
        %v1703 = vld [vmem:[#allocation3 + $0x58] sm:$0xf]
        %v1704 = vld [vmem:[#allocation3 + $0x5c] sm:$0xf]
        %v1705 = vld [vmem:[#allocation3 + $0x60] sm:$0xf]
        %v1706 = vld [vmem:[#allocation3 + $0x64] sm:$0xf]
        %v1707 = vld [vmem:[#allocation3 + $0x68] sm:$0xf]
        %v1708 = vld [vmem:[#allocation3 + $0x6c] sm:$0xf]
        %v1709 = vld [vmem:[#allocation3 + $0x70] sm:$0xf]
        %v1710 = vld [vmem:[#allocation3 + $0x74] sm:$0xf]
        %v1711 = vld [vmem:[#allocation3 + $0x78] sm:$0xf]
        %v1712 = vld [vmem:[#allocation3 + $0x7c] sm:$0xf]
        %v1713 = vld [vmem:[#allocation3 + $0x80] sm:$0xf]
        %v1714 = vld [vmem:[#allocation3 + $0x84] sm:$0xf]
        %s1715 = scalar_lea.vmem [#allocation6], 192
        %v1716 = vld [vmem:[%s1715] sm:$0xf]
        %v1717 = vld [vmem:[%s1715 + $0x4] sm:$0xf]
        %v1718 = vld [vmem:[%s1715 + $0x8] sm:$0xf]
        %v1719 = vld [vmem:[%s1715 + $0xc] sm:$0xf]
        %v1720 = vld [vmem:[%s1715 + $0x10] sm:$0xf]
        %v1721 = vld [vmem:[%s1715 + $0x14] sm:$0xf]
        %v1722 = vld [vmem:[%s1715 + $0x18] sm:$0xf]
        %v1723 = vld [vmem:[%s1715 + $0x1c] sm:$0xf]
        %v1724 = vld [vmem:[%s1715 + $0x20] sm:$0xf]
        %v1725 = vld [vmem:[%s1715 + $0x24] sm:$0xf]
        %v1726 = vld [vmem:[%s1715 + $0x28] sm:$0xf]
        %v1727 = vld [vmem:[%s1715 + $0x2c] sm:$0xf]
        %v1728 = vld [vmem:[%s1715 + $0x30] sm:$0xf]
        %v1729 = vld [vmem:[%s1715 + $0x34] sm:$0xf]
        %v1730 = vld [vmem:[%s1715 + $0x38] sm:$0xf]
        %v1731 = vld [vmem:[%s1715 + $0x3c] sm:$0xf]
        %v1764 = vunpack.c.l.b16 %v1683
        %v1765 = vunpack.c.l.b16 %v1684
        %v1766 = vunpack.c.l.b16 %v1685
        %v1767 = vunpack.c.l.b16 %v1686
        %v1768 = vunpack.c.l.b16 %v1687
        %v1769 = vunpack.c.l.b16 %v1688
        %v1770 = vunpack.c.l.b16 %v1689
        %v1771 = vunpack.c.l.b16 %v1690
        %v1772 = vunpack.c.l.b16 %v1691
        %v1773 = vunpack.c.l.b16 %v1692
        %v1774 = vunpack.c.l.b16 %v1693
        %v1775 = vunpack.c.l.b16 %v1694
        %v1776 = vunpack.c.l.b16 %v1695
        %v1777 = vunpack.c.l.b16 %v1696
        %v1778 = vunpack.c.l.b16 %v1697
        %v1779 = vunpack.c.l.b16 %v1698
        %v1780 = vunpack.c.l.b16 %v1699
        %v1781 = vunpack.c.l.b16 %v1700
        %v1782 = vunpack.c.l.b16 %v1701
        %v1783 = vunpack.c.l.b16 %v1702
        %v1784 = vunpack.c.l.b16 %v1703
        %v1785 = vunpack.c.l.b16 %v1704
        %v1786 = vunpack.c.l.b16 %v1705
        %v1787 = vunpack.c.l.b16 %v1706
        %v1788 = vunpack.c.l.b16 %v1707
        %v1789 = vunpack.c.l.b16 %v1708
        %v1790 = vunpack.c.l.b16 %v1709
        %v1791 = vunpack.c.l.b16 %v1710
        %v1792 = vunpack.c.l.b16 %v1711
        %v1793 = vunpack.c.l.b16 %v1712
        %v1794 = vunpack.c.l.b16 %v1713
        %v1795 = vunpack.c.l.b16 %v1714
        %v1796 = vpack.c.b16 %v1765, %v1764
        %v1797 = vpack.c.b16 %v1767, %v1766
        %v1798 = vpack.c.b16 %v1769, %v1768
        %v1799 = vpack.c.b16 %v1771, %v1770
        %v1800 = vpack.c.b16 %v1773, %v1772
        %v1801 = vpack.c.b16 %v1775, %v1774
        %v1802 = vpack.c.b16 %v1777, %v1776
        %v1803 = vpack.c.b16 %v1779, %v1778
        %v1804 = vpack.c.b16 %v1781, %v1780
        %v1805 = vpack.c.b16 %v1783, %v1782
        %v1806 = vpack.c.b16 %v1785, %v1784
        %v1807 = vpack.c.b16 %v1787, %v1786
        %v1808 = vpack.c.b16 %v1789, %v1788
        %v1809 = vpack.c.b16 %v1791, %v1790
        %v1810 = vpack.c.b16 %v1793, %v1792
        %v1811 = vpack.c.b16 %v1795, %v1794
        %v1844 = vunpack.c.l.b16 %v1716
        %v1845 = vunpack.c.l.b16 %v1717
        %v1846 = vunpack.c.l.b16 %v1718
        %v1847 = vunpack.c.l.b16 %v1719
        %v1848 = vunpack.c.l.b16 %v1720
        %v1849 = vunpack.c.l.b16 %v1721
        %v1850 = vunpack.c.l.b16 %v1722
        %v1851 = vunpack.c.l.b16 %v1723
        %v1852 = vunpack.c.l.b16 %v1724
        %v1853 = vunpack.c.l.b16 %v1725
        %v1854 = vunpack.c.l.b16 %v1726
        %v1855 = vunpack.c.l.b16 %v1727
        %v1856 = vunpack.c.l.b16 %v1728
        %v1857 = vunpack.c.l.b16 %v1729
        %v1858 = vunpack.c.l.b16 %v1730
        %v1859 = vunpack.c.l.b16 %v1731
        %v1860 = vpack.c.b16 %v1845, %v1844
        %v1861 = vpack.c.b16 %v1847, %v1846
        %v1862 = vpack.c.b16 %v1849, %v1848
        %v1863 = vpack.c.b16 %v1851, %v1850
        %v1864 = vpack.c.b16 %v1853, %v1852
        %v1865 = vpack.c.b16 %v1855, %v1854
        %v1866 = vpack.c.b16 %v1857, %v1856
        %v1867 = vpack.c.b16 %v1859, %v1858
        %1876 = vmatpush.bf16.msra.mxu0 %v1867
        %1877 = vmatpush.bf16.msra.mxu0 %v1866
        %1878 = vmatpush.bf16.msra.mxu0 %v1865
        %1879 = vmatpush.bf16.msra.mxu0 %v1864
        %1880 = vmatpush.bf16.msra.mxu0 %v1863
        %1881 = vmatpush.bf16.msra.mxu0 %v1862
        %1882 = vmatpush.bf16.msra.mxu0 %v1861
        %1883 = vmatpush.bf16.msra.mxu0 %v1860
        %1884 = vmatmul.bf16.gmra.mxu0 %v1796
        %v1885 = vpop.f32.mrf.mxu0
        %v1886 = vadd.f32 0.0, %v1885
        %v1887 = vpop.f32.mrf.mxu0
        %v1888 = vadd.f32 0.0, %v1887
        %1889 = vmatmul.bf16.gmra.mxu0 %v1797
        %v1890 = vpop.f32.mrf.mxu0
        %v1891 = vadd.f32 0.0, %v1890
        %v1892 = vpop.f32.mrf.mxu0
        %v1893 = vadd.f32 0.0, %v1892
        %1894 = vmatmul.bf16.gmra.mxu0 %v1798
        %v1895 = vpop.f32.mrf.mxu0
        %v1896 = vadd.f32 0.0, %v1895
        %v1897 = vpop.f32.mrf.mxu0
        %v1898 = vadd.f32 0.0, %v1897
        %1899 = vmatmul.bf16.gmra.mxu0 %v1799
        %v1900 = vpop.f32.mrf.mxu0
        %v1901 = vadd.f32 0.0, %v1900
        %v1902 = vpop.f32.mrf.mxu0
        %v1903 = vadd.f32 0.0, %v1902
        %1904 = vmatmul.bf16.gmra.mxu0 %v1800
        %v1905 = vpop.f32.mrf.mxu0
        %v1906 = vadd.f32 0.0, %v1905
        %v1907 = vpop.f32.mrf.mxu0
        %v1908 = vadd.f32 0.0, %v1907
        %1909 = vmatmul.bf16.gmra.mxu0 %v1801
        %v1910 = vpop.f32.mrf.mxu0
        %v1911 = vadd.f32 0.0, %v1910
        %v1912 = vpop.f32.mrf.mxu0
        %v1913 = vadd.f32 0.0, %v1912
        %1914 = vmatmul.bf16.gmra.mxu0 %v1802
        %v1915 = vpop.f32.mrf.mxu0
        %v1916 = vadd.f32 0.0, %v1915
        %v1917 = vpop.f32.mrf.mxu0
        %v1918 = vadd.f32 0.0, %v1917
        %1919 = vmatmul.bf16.gmra.mxu0 %v1803
        %v1920 = vpop.f32.mrf.mxu0
        %v1921 = vadd.f32 0.0, %v1920
        %v1922 = vpop.f32.mrf.mxu0
        %v1923 = vadd.f32 0.0, %v1922
        %1924 = vmatmul.bf16.gmra.mxu0 %v1804
        %v1925 = vpop.f32.mrf.mxu0
        %v1926 = vadd.f32 0.0, %v1925
        %v1927 = vpop.f32.mrf.mxu0
        %v1928 = vadd.f32 0.0, %v1927
        %1929 = vmatmul.bf16.gmra.mxu0 %v1805
        %v1930 = vpop.f32.mrf.mxu0
        %v1931 = vadd.f32 0.0, %v1930
        %v1932 = vpop.f32.mrf.mxu0
        %v1933 = vadd.f32 0.0, %v1932
        %1934 = vmatmul.bf16.gmra.mxu0 %v1806
        %v1935 = vpop.f32.mrf.mxu0
        %v1936 = vadd.f32 0.0, %v1935
        %v1937 = vpop.f32.mrf.mxu0
        %v1938 = vadd.f32 0.0, %v1937
        %1939 = vmatmul.bf16.gmra.mxu0 %v1807
        %v1940 = vpop.f32.mrf.mxu0
        %v1941 = vadd.f32 0.0, %v1940
        %v1942 = vpop.f32.mrf.mxu0
        %v1943 = vadd.f32 0.0, %v1942
        %1944 = vmatmul.bf16.gmra.mxu0 %v1808
        %v1945 = vpop.f32.mrf.mxu0
        %v1946 = vadd.f32 0.0, %v1945
        %v1947 = vpop.f32.mrf.mxu0
        %v1948 = vadd.f32 0.0, %v1947
        %1949 = vmatmul.bf16.gmra.mxu0 %v1809
        %v1950 = vpop.f32.mrf.mxu0
        %v1951 = vadd.f32 0.0, %v1950
        %v1952 = vpop.f32.mrf.mxu0
        %v1953 = vadd.f32 0.0, %v1952
        %1954 = vmatmul.bf16.gmra.mxu0 %v1810
        %v1955 = vpop.f32.mrf.mxu0
        %v1956 = vadd.f32 0.0, %v1955
        %v1957 = vpop.f32.mrf.mxu0
        %v1958 = vadd.f32 0.0, %v1957
        %1959 = vmatmul.bf16.gmra.mxu0 %v1811
        %v1960 = vpop.f32.mrf.mxu0
        %v1961 = vadd.f32 0.0, %v1960
        %v1962 = vpop.f32.mrf.mxu0
        %v1963 = vadd.f32 0.0, %v1962
        %1964 = vdwg.mxu0
        %v1965 = vld [vmem:[#allocation4] sm:$0xff]
        %v1966 = vld [vmem:[#allocation4 + $0x8] sm:$0xff]
        %v1967 = vld [vmem:[#allocation4 + $0x10] sm:$0xff]
        %v1968 = vld [vmem:[#allocation4 + $0x18] sm:$0xff]
        %v1969 = vld [vmem:[#allocation4 + $0x20] sm:$0xff]
        %v1970 = vld [vmem:[#allocation4 + $0x28] sm:$0xff]
        %v1971 = vld [vmem:[#allocation4 + $0x30] sm:$0xff]
        %v1972 = vld [vmem:[#allocation4 + $0x38] sm:$0xff]
        %v1973 = vld [vmem:[#allocation4 + $0x40] sm:$0xff]
        %v1974 = vld [vmem:[#allocation4 + $0x48] sm:$0xff]
        %v1975 = vld [vmem:[#allocation4 + $0x50] sm:$0xff]
        %v1976 = vld [vmem:[#allocation4 + $0x58] sm:$0xff]
        %v1977 = vld [vmem:[#allocation4 + $0x60] sm:$0xff]
        %v1978 = vld [vmem:[#allocation4 + $0x68] sm:$0xff]
        %v1979 = vld [vmem:[#allocation4 + $0x70] sm:$0xff]
        %v1980 = vld [vmem:[#allocation4 + $0x78] sm:$0xff]
        %v1981 = vld [vmem:[#allocation4 + $0x80] sm:$0xff]
        %v1982 = vld [vmem:[#allocation4 + $0x88] sm:$0xff]
        %v1983 = vld [vmem:[#allocation4 + $0x90] sm:$0xff]
        %v1984 = vld [vmem:[#allocation4 + $0x98] sm:$0xff]
        %v1985 = vld [vmem:[#allocation4 + $0xa0] sm:$0xff]
        %v1986 = vld [vmem:[#allocation4 + $0xa8] sm:$0xff]
        %v1987 = vld [vmem:[#allocation4 + $0xb0] sm:$0xff]
        %v1988 = vld [vmem:[#allocation4 + $0xb8] sm:$0xff]
        %v1989 = vld [vmem:[#allocation4 + $0xc0] sm:$0xff]
        %v1990 = vld [vmem:[#allocation4 + $0xc8] sm:$0xff]
        %v1991 = vld [vmem:[#allocation4 + $0xd0] sm:$0xff]
        %v1992 = vld [vmem:[#allocation4 + $0xd8] sm:$0xff]
        %v1993 = vld [vmem:[#allocation4 + $0xe0] sm:$0xff]
        %v1994 = vld [vmem:[#allocation4 + $0xe8] sm:$0xff]
        %v1995 = vld [vmem:[#allocation4 + $0xf0] sm:$0xff]
        %v1996 = vld [vmem:[#allocation4 + $0xf8] sm:$0xff]
        %v1997 = vadd.f32 %v1965, %v1886
        %v1998 = vadd.f32 %v1966, %v1888
        %v1999 = vadd.f32 %v1967, %v1891
        %v2000 = vadd.f32 %v1968, %v1893
        %v2001 = vadd.f32 %v1969, %v1896
        %v2002 = vadd.f32 %v1970, %v1898
        %v2003 = vadd.f32 %v1971, %v1901
        %v2004 = vadd.f32 %v1972, %v1903
        %v2005 = vadd.f32 %v1973, %v1906
        %v2006 = vadd.f32 %v1974, %v1908
        %v2007 = vadd.f32 %v1975, %v1911
        %v2008 = vadd.f32 %v1976, %v1913
        %v2009 = vadd.f32 %v1977, %v1916
        %v2010 = vadd.f32 %v1978, %v1918
        %v2011 = vadd.f32 %v1979, %v1921
        %v2012 = vadd.f32 %v1980, %v1923
        %v2013 = vadd.f32 %v1981, %v1926
        %v2014 = vadd.f32 %v1982, %v1928
        %v2015 = vadd.f32 %v1983, %v1931
        %v2016 = vadd.f32 %v1984, %v1933
        %v2017 = vadd.f32 %v1985, %v1936
        %v2018 = vadd.f32 %v1986, %v1938
        %v2019 = vadd.f32 %v1987, %v1941
        %v2020 = vadd.f32 %v1988, %v1943
        %v2021 = vadd.f32 %v1989, %v1946
        %v2022 = vadd.f32 %v1990, %v1948
        %v2023 = vadd.f32 %v1991, %v1951
        %v2024 = vadd.f32 %v1992, %v1953
        %v2025 = vadd.f32 %v1993, %v1956
        %v2026 = vadd.f32 %v1994, %v1958
        %v2027 = vadd.f32 %v1995, %v1961
        %v2028 = vadd.f32 %v1996, %v1963
        %2029 = vst [vmem:[#allocation4] sm:$0xff] %v1997
        %2030 = vst [vmem:[#allocation4 + $0x8] sm:$0xff] %v1998
        %2031 = vst [vmem:[#allocation4 + $0x10] sm:$0xff] %v1999
        %2032 = vst [vmem:[#allocation4 + $0x18] sm:$0xff] %v2000
        %2033 = vst [vmem:[#allocation4 + $0x20] sm:$0xff] %v2001
        %2034 = vst [vmem:[#allocation4 + $0x28] sm:$0xff] %v2002
        %2035 = vst [vmem:[#allocation4 + $0x30] sm:$0xff] %v2003
        %2036 = vst [vmem:[#allocation4 + $0x38] sm:$0xff] %v2004
        %2037 = vst [vmem:[#allocation4 + $0x40] sm:$0xff] %v2005
        %2038 = vst [vmem:[#allocation4 + $0x48] sm:$0xff] %v2006
        %2039 = vst [vmem:[#allocation4 + $0x50] sm:$0xff] %v2007
        %2040 = vst [vmem:[#allocation4 + $0x58] sm:$0xff] %v2008
        %2041 = vst [vmem:[#allocation4 + $0x60] sm:$0xff] %v2009
        %2042 = vst [vmem:[#allocation4 + $0x68] sm:$0xff] %v2010
        %2043 = vst [vmem:[#allocation4 + $0x70] sm:$0xff] %v2011
        %2044 = vst [vmem:[#allocation4 + $0x78] sm:$0xff] %v2012
        %2045 = vst [vmem:[#allocation4 + $0x80] sm:$0xff] %v2013
        %2046 = vst [vmem:[#allocation4 + $0x88] sm:$0xff] %v2014
        %2047 = vst [vmem:[#allocation4 + $0x90] sm:$0xff] %v2015
        %2048 = vst [vmem:[#allocation4 + $0x98] sm:$0xff] %v2016
        %2049 = vst [vmem:[#allocation4 + $0xa0] sm:$0xff] %v2017
        %2050 = vst [vmem:[#allocation4 + $0xa8] sm:$0xff] %v2018
        %2051 = vst [vmem:[#allocation4 + $0xb0] sm:$0xff] %v2019
        %2052 = vst [vmem:[#allocation4 + $0xb8] sm:$0xff] %v2020
        %2053 = vst [vmem:[#allocation4 + $0xc0] sm:$0xff] %v2021
        %2054 = vst [vmem:[#allocation4 + $0xc8] sm:$0xff] %v2022
        %2055 = vst [vmem:[#allocation4 + $0xd0] sm:$0xff] %v2023
        %2056 = vst [vmem:[#allocation4 + $0xd8] sm:$0xff] %v2024
        %2057 = vst [vmem:[#allocation4 + $0xe0] sm:$0xff] %v2025
        %2058 = vst [vmem:[#allocation4 + $0xe8] sm:$0xff] %v2026
        %2059 = vst [vmem:[#allocation4 + $0xf0] sm:$0xff] %v2027
        %2060 = vst [vmem:[#allocation4 + $0xf8] sm:$0xff] %v2028
        %v2061 = vld [vmem:[%s234 + $0x8] sm:$0xf]
        %v2062 = vld [vmem:[%s234 + $0xc] sm:$0xf]
        %v2063 = vld [vmem:[%s234 + $0x10] sm:$0xf]
        %v2064 = vld [vmem:[%s234 + $0x14] sm:$0xf]
        %v2065 = vld [vmem:[%s234 + $0x18] sm:$0xf]
        %v2066 = vld [vmem:[%s234 + $0x1c] sm:$0xf]
        %v2067 = vld [vmem:[%s234 + $0x20] sm:$0xf]
        %v2068 = vld [vmem:[%s234 + $0x24] sm:$0xf]
        %v2069 = vld [vmem:[%s234 + $0x28] sm:$0xf]
        %v2070 = vld [vmem:[%s234 + $0x2c] sm:$0xf]
        %v2071 = vld [vmem:[%s234 + $0x30] sm:$0xf]
        %v2072 = vld [vmem:[%s234 + $0x34] sm:$0xf]
        %v2073 = vld [vmem:[%s234 + $0x38] sm:$0xf]
        %v2074 = vld [vmem:[%s234 + $0x3c] sm:$0xf]
        %v2075 = vld [vmem:[%s234 + $0x40] sm:$0xf]
        %v2076 = vld [vmem:[%s234 + $0x44] sm:$0xf]
        %v2077 = vld [vmem:[%s234 + $0x48] sm:$0xf]
        %v2078 = vld [vmem:[%s234 + $0x4c] sm:$0xf]
        %v2079 = vld [vmem:[%s234 + $0x50] sm:$0xf]
        %v2080 = vld [vmem:[%s234 + $0x54] sm:$0xf]
        %v2081 = vld [vmem:[%s234 + $0x58] sm:$0xf]
        %v2082 = vld [vmem:[%s234 + $0x5c] sm:$0xf]
        %v2083 = vld [vmem:[%s234 + $0x60] sm:$0xf]
        %v2084 = vld [vmem:[%s234 + $0x64] sm:$0xf]
        %v2085 = vld [vmem:[%s234 + $0x68] sm:$0xf]
        %v2086 = vld [vmem:[%s234 + $0x6c] sm:$0xf]
        %v2087 = vld [vmem:[%s234 + $0x70] sm:$0xf]
        %v2088 = vld [vmem:[%s234 + $0x74] sm:$0xf]
        %v2089 = vld [vmem:[%s234 + $0x78] sm:$0xf]
        %v2090 = vld [vmem:[%s234 + $0x7c] sm:$0xf]
        %v2091 = vld [vmem:[%s234 + $0x80] sm:$0xf]
        %v2092 = vld [vmem:[%s234 + $0x84] sm:$0xf]
        %s2093 = scalar_lea.vmem [#allocation6], 256
        %v2094 = vld [vmem:[%s2093] sm:$0xf]
        %v2095 = vld [vmem:[%s2093 + $0x4] sm:$0xf]
        %v2096 = vld [vmem:[%s2093 + $0x8] sm:$0xf]
        %v2097 = vld [vmem:[%s2093 + $0xc] sm:$0xf]
        %v2098 = vld [vmem:[%s2093 + $0x10] sm:$0xf]
        %v2099 = vld [vmem:[%s2093 + $0x14] sm:$0xf]
        %v2100 = vld [vmem:[%s2093 + $0x18] sm:$0xf]
        %v2101 = vld [vmem:[%s2093 + $0x1c] sm:$0xf]
        %v2102 = vld [vmem:[%s2093 + $0x20] sm:$0xf]
        %v2103 = vld [vmem:[%s2093 + $0x24] sm:$0xf]
        %v2104 = vld [vmem:[%s2093 + $0x28] sm:$0xf]
        %v2105 = vld [vmem:[%s2093 + $0x2c] sm:$0xf]
        %v2106 = vld [vmem:[%s2093 + $0x30] sm:$0xf]
        %v2107 = vld [vmem:[%s2093 + $0x34] sm:$0xf]
        %v2108 = vld [vmem:[%s2093 + $0x38] sm:$0xf]
        %v2109 = vld [vmem:[%s2093 + $0x3c] sm:$0xf]
        %v2142 = vunpack.c.l.b16 %v2061
        %v2143 = vunpack.c.l.b16 %v2062
        %v2144 = vunpack.c.l.b16 %v2063
        %v2145 = vunpack.c.l.b16 %v2064
        %v2146 = vunpack.c.l.b16 %v2065
        %v2147 = vunpack.c.l.b16 %v2066
        %v2148 = vunpack.c.l.b16 %v2067
        %v2149 = vunpack.c.l.b16 %v2068
        %v2150 = vunpack.c.l.b16 %v2069
        %v2151 = vunpack.c.l.b16 %v2070
        %v2152 = vunpack.c.l.b16 %v2071
        %v2153 = vunpack.c.l.b16 %v2072
        %v2154 = vunpack.c.l.b16 %v2073
        %v2155 = vunpack.c.l.b16 %v2074
        %v2156 = vunpack.c.l.b16 %v2075
        %v2157 = vunpack.c.l.b16 %v2076
        %v2158 = vunpack.c.l.b16 %v2077
        %v2159 = vunpack.c.l.b16 %v2078
        %v2160 = vunpack.c.l.b16 %v2079
        %v2161 = vunpack.c.l.b16 %v2080
        %v2162 = vunpack.c.l.b16 %v2081
        %v2163 = vunpack.c.l.b16 %v2082
        %v2164 = vunpack.c.l.b16 %v2083
        %v2165 = vunpack.c.l.b16 %v2084
        %v2166 = vunpack.c.l.b16 %v2085
        %v2167 = vunpack.c.l.b16 %v2086
        %v2168 = vunpack.c.l.b16 %v2087
        %v2169 = vunpack.c.l.b16 %v2088
        %v2170 = vunpack.c.l.b16 %v2089
        %v2171 = vunpack.c.l.b16 %v2090
        %v2172 = vunpack.c.l.b16 %v2091
        %v2173 = vunpack.c.l.b16 %v2092
        %v2174 = vpack.c.b16 %v2143, %v2142
        %v2175 = vpack.c.b16 %v2145, %v2144
        %v2176 = vpack.c.b16 %v2147, %v2146
        %v2177 = vpack.c.b16 %v2149, %v2148
        %v2178 = vpack.c.b16 %v2151, %v2150
        %v2179 = vpack.c.b16 %v2153, %v2152
        %v2180 = vpack.c.b16 %v2155, %v2154
        %v2181 = vpack.c.b16 %v2157, %v2156
        %v2182 = vpack.c.b16 %v2159, %v2158
        %v2183 = vpack.c.b16 %v2161, %v2160
        %v2184 = vpack.c.b16 %v2163, %v2162
        %v2185 = vpack.c.b16 %v2165, %v2164
        %v2186 = vpack.c.b16 %v2167, %v2166
        %v2187 = vpack.c.b16 %v2169, %v2168
        %v2188 = vpack.c.b16 %v2171, %v2170
        %v2189 = vpack.c.b16 %v2173, %v2172
        %v2222 = vunpack.c.l.b16 %v2094
        %v2223 = vunpack.c.l.b16 %v2095
        %v2224 = vunpack.c.l.b16 %v2096
        %v2225 = vunpack.c.l.b16 %v2097
        %v2226 = vunpack.c.l.b16 %v2098
        %v2227 = vunpack.c.l.b16 %v2099
        %v2228 = vunpack.c.l.b16 %v2100
        %v2229 = vunpack.c.l.b16 %v2101
        %v2230 = vunpack.c.l.b16 %v2102
        %v2231 = vunpack.c.l.b16 %v2103
        %v2232 = vunpack.c.l.b16 %v2104
        %v2233 = vunpack.c.l.b16 %v2105
        %v2234 = vunpack.c.l.b16 %v2106
        %v2235 = vunpack.c.l.b16 %v2107
        %v2236 = vunpack.c.l.b16 %v2108
        %v2237 = vunpack.c.l.b16 %v2109
        %v2238 = vpack.c.b16 %v2223, %v2222
        %v2239 = vpack.c.b16 %v2225, %v2224
        %v2240 = vpack.c.b16 %v2227, %v2226
        %v2241 = vpack.c.b16 %v2229, %v2228
        %v2242 = vpack.c.b16 %v2231, %v2230
        %v2243 = vpack.c.b16 %v2233, %v2232
        %v2244 = vpack.c.b16 %v2235, %v2234
        %v2245 = vpack.c.b16 %v2237, %v2236
        %2254 = vmatpush.bf16.msra.mxu0 %v2245
        %2255 = vmatpush.bf16.msra.mxu0 %v2244
        %2256 = vmatpush.bf16.msra.mxu0 %v2243
        %2257 = vmatpush.bf16.msra.mxu0 %v2242
        %2258 = vmatpush.bf16.msra.mxu0 %v2241
        %2259 = vmatpush.bf16.msra.mxu0 %v2240
        %2260 = vmatpush.bf16.msra.mxu0 %v2239
        %2261 = vmatpush.bf16.msra.mxu0 %v2238
        %2262 = vmatmul.bf16.gmra.mxu0 %v2174
        %v2263 = vpop.f32.mrf.mxu0
        %v2264 = vadd.f32 0.0, %v2263
        %v2265 = vpop.f32.mrf.mxu0
        %v2266 = vadd.f32 0.0, %v2265
        %2267 = vmatmul.bf16.gmra.mxu0 %v2175
        %v2268 = vpop.f32.mrf.mxu0
        %v2269 = vadd.f32 0.0, %v2268
        %v2270 = vpop.f32.mrf.mxu0
        %v2271 = vadd.f32 0.0, %v2270
        %2272 = vmatmul.bf16.gmra.mxu0 %v2176
        %v2273 = vpop.f32.mrf.mxu0
        %v2274 = vadd.f32 0.0, %v2273
        %v2275 = vpop.f32.mrf.mxu0
        %v2276 = vadd.f32 0.0, %v2275
        %2277 = vmatmul.bf16.gmra.mxu0 %v2177
        %v2278 = vpop.f32.mrf.mxu0
        %v2279 = vadd.f32 0.0, %v2278
        %v2280 = vpop.f32.mrf.mxu0
        %v2281 = vadd.f32 0.0, %v2280
        %2282 = vmatmul.bf16.gmra.mxu0 %v2178
        %v2283 = vpop.f32.mrf.mxu0
        %v2284 = vadd.f32 0.0, %v2283
        %v2285 = vpop.f32.mrf.mxu0
        %v2286 = vadd.f32 0.0, %v2285
        %2287 = vmatmul.bf16.gmra.mxu0 %v2179
        %v2288 = vpop.f32.mrf.mxu0
        %v2289 = vadd.f32 0.0, %v2288
        %v2290 = vpop.f32.mrf.mxu0
        %v2291 = vadd.f32 0.0, %v2290
        %2292 = vmatmul.bf16.gmra.mxu0 %v2180
        %v2293 = vpop.f32.mrf.mxu0
        %v2294 = vadd.f32 0.0, %v2293
        %v2295 = vpop.f32.mrf.mxu0
        %v2296 = vadd.f32 0.0, %v2295
        %2297 = vmatmul.bf16.gmra.mxu0 %v2181
        %v2298 = vpop.f32.mrf.mxu0
        %v2299 = vadd.f32 0.0, %v2298
        %v2300 = vpop.f32.mrf.mxu0
        %v2301 = vadd.f32 0.0, %v2300
        %2302 = vmatmul.bf16.gmra.mxu0 %v2182
        %v2303 = vpop.f32.mrf.mxu0
        %v2304 = vadd.f32 0.0, %v2303
        %v2305 = vpop.f32.mrf.mxu0
        %v2306 = vadd.f32 0.0, %v2305
        %2307 = vmatmul.bf16.gmra.mxu0 %v2183
        %v2308 = vpop.f32.mrf.mxu0
        %v2309 = vadd.f32 0.0, %v2308
        %v2310 = vpop.f32.mrf.mxu0
        %v2311 = vadd.f32 0.0, %v2310
        %2312 = vmatmul.bf16.gmra.mxu0 %v2184
        %v2313 = vpop.f32.mrf.mxu0
        %v2314 = vadd.f32 0.0, %v2313
        %v2315 = vpop.f32.mrf.mxu0
        %v2316 = vadd.f32 0.0, %v2315
        %2317 = vmatmul.bf16.gmra.mxu0 %v2185
        %v2318 = vpop.f32.mrf.mxu0
        %v2319 = vadd.f32 0.0, %v2318
        %v2320 = vpop.f32.mrf.mxu0
        %v2321 = vadd.f32 0.0, %v2320
        %2322 = vmatmul.bf16.gmra.mxu0 %v2186
        %v2323 = vpop.f32.mrf.mxu0
        %v2324 = vadd.f32 0.0, %v2323
        %v2325 = vpop.f32.mrf.mxu0
        %v2326 = vadd.f32 0.0, %v2325
        %2327 = vmatmul.bf16.gmra.mxu0 %v2187
        %v2328 = vpop.f32.mrf.mxu0
        %v2329 = vadd.f32 0.0, %v2328
        %v2330 = vpop.f32.mrf.mxu0
        %v2331 = vadd.f32 0.0, %v2330
        %2332 = vmatmul.bf16.gmra.mxu0 %v2188
        %v2333 = vpop.f32.mrf.mxu0
        %v2334 = vadd.f32 0.0, %v2333
        %v2335 = vpop.f32.mrf.mxu0
        %v2336 = vadd.f32 0.0, %v2335
        %2337 = vmatmul.bf16.gmra.mxu0 %v2189
        %v2338 = vpop.f32.mrf.mxu0
        %v2339 = vadd.f32 0.0, %v2338
        %v2340 = vpop.f32.mrf.mxu0
        %v2341 = vadd.f32 0.0, %v2340
        %2342 = vdwg.mxu0
        %v2343 = vld [vmem:[#allocation4] sm:$0xff]
        %v2344 = vld [vmem:[#allocation4 + $0x8] sm:$0xff]
        %v2345 = vld [vmem:[#allocation4 + $0x10] sm:$0xff]
        %v2346 = vld [vmem:[#allocation4 + $0x18] sm:$0xff]
        %v2347 = vld [vmem:[#allocation4 + $0x20] sm:$0xff]
        %v2348 = vld [vmem:[#allocation4 + $0x28] sm:$0xff]
        %v2349 = vld [vmem:[#allocation4 + $0x30] sm:$0xff]
        %v2350 = vld [vmem:[#allocation4 + $0x38] sm:$0xff]
        %v2351 = vld [vmem:[#allocation4 + $0x40] sm:$0xff]
        %v2352 = vld [vmem:[#allocation4 + $0x48] sm:$0xff]
        %v2353 = vld [vmem:[#allocation4 + $0x50] sm:$0xff]
        %v2354 = vld [vmem:[#allocation4 + $0x58] sm:$0xff]
        %v2355 = vld [vmem:[#allocation4 + $0x60] sm:$0xff]
        %v2356 = vld [vmem:[#allocation4 + $0x68] sm:$0xff]
        %v2357 = vld [vmem:[#allocation4 + $0x70] sm:$0xff]
        %v2358 = vld [vmem:[#allocation4 + $0x78] sm:$0xff]
        %v2359 = vld [vmem:[#allocation4 + $0x80] sm:$0xff]
        %v2360 = vld [vmem:[#allocation4 + $0x88] sm:$0xff]
        %v2361 = vld [vmem:[#allocation4 + $0x90] sm:$0xff]
        %v2362 = vld [vmem:[#allocation4 + $0x98] sm:$0xff]
        %v2363 = vld [vmem:[#allocation4 + $0xa0] sm:$0xff]
        %v2364 = vld [vmem:[#allocation4 + $0xa8] sm:$0xff]
        %v2365 = vld [vmem:[#allocation4 + $0xb0] sm:$0xff]
        %v2366 = vld [vmem:[#allocation4 + $0xb8] sm:$0xff]
        %v2367 = vld [vmem:[#allocation4 + $0xc0] sm:$0xff]
        %v2368 = vld [vmem:[#allocation4 + $0xc8] sm:$0xff]
        %v2369 = vld [vmem:[#allocation4 + $0xd0] sm:$0xff]
        %v2370 = vld [vmem:[#allocation4 + $0xd8] sm:$0xff]
        %v2371 = vld [vmem:[#allocation4 + $0xe0] sm:$0xff]
        %v2372 = vld [vmem:[#allocation4 + $0xe8] sm:$0xff]
        %v2373 = vld [vmem:[#allocation4 + $0xf0] sm:$0xff]
        %v2374 = vld [vmem:[#allocation4 + $0xf8] sm:$0xff]
        %v2375 = vadd.f32 %v2343, %v2264
        %v2376 = vadd.f32 %v2344, %v2266
        %v2377 = vadd.f32 %v2345, %v2269
        %v2378 = vadd.f32 %v2346, %v2271
        %v2379 = vadd.f32 %v2347, %v2274
        %v2380 = vadd.f32 %v2348, %v2276
        %v2381 = vadd.f32 %v2349, %v2279
        %v2382 = vadd.f32 %v2350, %v2281
        %v2383 = vadd.f32 %v2351, %v2284
        %v2384 = vadd.f32 %v2352, %v2286
        %v2385 = vadd.f32 %v2353, %v2289
        %v2386 = vadd.f32 %v2354, %v2291
        %v2387 = vadd.f32 %v2355, %v2294
        %v2388 = vadd.f32 %v2356, %v2296
        %v2389 = vadd.f32 %v2357, %v2299
        %v2390 = vadd.f32 %v2358, %v2301
        %v2391 = vadd.f32 %v2359, %v2304
        %v2392 = vadd.f32 %v2360, %v2306
        %v2393 = vadd.f32 %v2361, %v2309
        %v2394 = vadd.f32 %v2362, %v2311
        %v2395 = vadd.f32 %v2363, %v2314
        %v2396 = vadd.f32 %v2364, %v2316
        %v2397 = vadd.f32 %v2365, %v2319
        %v2398 = vadd.f32 %v2366, %v2321
        %v2399 = vadd.f32 %v2367, %v2324
        %v2400 = vadd.f32 %v2368, %v2326
        %v2401 = vadd.f32 %v2369, %v2329
        %v2402 = vadd.f32 %v2370, %v2331
        %v2403 = vadd.f32 %v2371, %v2334
        %v2404 = vadd.f32 %v2372, %v2336
        %v2405 = vadd.f32 %v2373, %v2339
        %v2406 = vadd.f32 %v2374, %v2341
        %2407 = vst [vmem:[#allocation4] sm:$0xff] %v2375
        %2408 = vst [vmem:[#allocation4 + $0x8] sm:$0xff] %v2376
        %2409 = vst [vmem:[#allocation4 + $0x10] sm:$0xff] %v2377
        %2410 = vst [vmem:[#allocation4 + $0x18] sm:$0xff] %v2378
        %2411 = vst [vmem:[#allocation4 + $0x20] sm:$0xff] %v2379
        %2412 = vst [vmem:[#allocation4 + $0x28] sm:$0xff] %v2380
        %2413 = vst [vmem:[#allocation4 + $0x30] sm:$0xff] %v2381
        %2414 = vst [vmem:[#allocation4 + $0x38] sm:$0xff] %v2382
        %2415 = vst [vmem:[#allocation4 + $0x40] sm:$0xff] %v2383
        %2416 = vst [vmem:[#allocation4 + $0x48] sm:$0xff] %v2384
        %2417 = vst [vmem:[#allocation4 + $0x50] sm:$0xff] %v2385
        %2418 = vst [vmem:[#allocation4 + $0x58] sm:$0xff] %v2386
        %2419 = vst [vmem:[#allocation4 + $0x60] sm:$0xff] %v2387
        %2420 = vst [vmem:[#allocation4 + $0x68] sm:$0xff] %v2388
        %2421 = vst [vmem:[#allocation4 + $0x70] sm:$0xff] %v2389
        %2422 = vst [vmem:[#allocation4 + $0x78] sm:$0xff] %v2390
        %2423 = vst [vmem:[#allocation4 + $0x80] sm:$0xff] %v2391
        %2424 = vst [vmem:[#allocation4 + $0x88] sm:$0xff] %v2392
        %2425 = vst [vmem:[#allocation4 + $0x90] sm:$0xff] %v2393
        %2426 = vst [vmem:[#allocation4 + $0x98] sm:$0xff] %v2394
        %2427 = vst [vmem:[#allocation4 + $0xa0] sm:$0xff] %v2395
        %2428 = vst [vmem:[#allocation4 + $0xa8] sm:$0xff] %v2396
        %2429 = vst [vmem:[#allocation4 + $0xb0] sm:$0xff] %v2397
        %2430 = vst [vmem:[#allocation4 + $0xb8] sm:$0xff] %v2398
        %2431 = vst [vmem:[#allocation4 + $0xc0] sm:$0xff] %v2399
        %2432 = vst [vmem:[#allocation4 + $0xc8] sm:$0xff] %v2400
        %2433 = vst [vmem:[#allocation4 + $0xd0] sm:$0xff] %v2401
        %2434 = vst [vmem:[#allocation4 + $0xd8] sm:$0xff] %v2402
        %2435 = vst [vmem:[#allocation4 + $0xe0] sm:$0xff] %v2403
        %2436 = vst [vmem:[#allocation4 + $0xe8] sm:$0xff] %v2404
        %2437 = vst [vmem:[#allocation4 + $0xf0] sm:$0xff] %v2405
        %2438 = vst [vmem:[#allocation4 + $0xf8] sm:$0xff] %v2406
        %v2439 = vld [vmem:[%s239 + $0x8] sm:$0xf]
        %v2440 = vld [vmem:[%s239 + $0xc] sm:$0xf]
        %v2441 = vld [vmem:[%s239 + $0x10] sm:$0xf]
        %v2442 = vld [vmem:[%s239 + $0x14] sm:$0xf]
        %v2443 = vld [vmem:[%s239 + $0x18] sm:$0xf]
        %v2444 = vld [vmem:[%s239 + $0x1c] sm:$0xf]
        %v2445 = vld [vmem:[%s239 + $0x20] sm:$0xf]
        %v2446 = vld [vmem:[%s239 + $0x24] sm:$0xf]
        %v2447 = vld [vmem:[%s239 + $0x28] sm:$0xf]
        %v2448 = vld [vmem:[%s239 + $0x2c] sm:$0xf]
        %v2449 = vld [vmem:[%s239 + $0x30] sm:$0xf]
        %v2450 = vld [vmem:[%s239 + $0x34] sm:$0xf]
        %v2451 = vld [vmem:[%s239 + $0x38] sm:$0xf]
        %v2452 = vld [vmem:[%s239 + $0x3c] sm:$0xf]
        %v2453 = vld [vmem:[%s239 + $0x40] sm:$0xf]
        %v2454 = vld [vmem:[%s239 + $0x44] sm:$0xf]
        %v2455 = vld [vmem:[%s239 + $0x48] sm:$0xf]
        %v2456 = vld [vmem:[%s239 + $0x4c] sm:$0xf]
        %v2457 = vld [vmem:[%s239 + $0x50] sm:$0xf]
        %v2458 = vld [vmem:[%s239 + $0x54] sm:$0xf]
        %v2459 = vld [vmem:[%s239 + $0x58] sm:$0xf]
        %v2460 = vld [vmem:[%s239 + $0x5c] sm:$0xf]
        %v2461 = vld [vmem:[%s239 + $0x60] sm:$0xf]
        %v2462 = vld [vmem:[%s239 + $0x64] sm:$0xf]
        %v2463 = vld [vmem:[%s239 + $0x68] sm:$0xf]
        %v2464 = vld [vmem:[%s239 + $0x6c] sm:$0xf]
        %v2465 = vld [vmem:[%s239 + $0x70] sm:$0xf]
        %v2466 = vld [vmem:[%s239 + $0x74] sm:$0xf]
        %v2467 = vld [vmem:[%s239 + $0x78] sm:$0xf]
        %v2468 = vld [vmem:[%s239 + $0x7c] sm:$0xf]
        %v2469 = vld [vmem:[%s239 + $0x80] sm:$0xf]
        %v2470 = vld [vmem:[%s239 + $0x84] sm:$0xf]
        %s2471 = scalar_lea.vmem [#allocation6], 320
        %v2472 = vld [vmem:[%s2471] sm:$0xf]
        %v2473 = vld [vmem:[%s2471 + $0x4] sm:$0xf]
        %v2474 = vld [vmem:[%s2471 + $0x8] sm:$0xf]
        %v2475 = vld [vmem:[%s2471 + $0xc] sm:$0xf]
        %v2476 = vld [vmem:[%s2471 + $0x10] sm:$0xf]
        %v2477 = vld [vmem:[%s2471 + $0x14] sm:$0xf]
        %v2478 = vld [vmem:[%s2471 + $0x18] sm:$0xf]
        %v2479 = vld [vmem:[%s2471 + $0x1c] sm:$0xf]
        %v2480 = vld [vmem:[%s2471 + $0x20] sm:$0xf]
        %v2481 = vld [vmem:[%s2471 + $0x24] sm:$0xf]
        %v2482 = vld [vmem:[%s2471 + $0x28] sm:$0xf]
        %v2483 = vld [vmem:[%s2471 + $0x2c] sm:$0xf]
        %v2484 = vld [vmem:[%s2471 + $0x30] sm:$0xf]
        %v2485 = vld [vmem:[%s2471 + $0x34] sm:$0xf]
        %v2486 = vld [vmem:[%s2471 + $0x38] sm:$0xf]
        %v2487 = vld [vmem:[%s2471 + $0x3c] sm:$0xf]
        %v2520 = vunpack.c.l.b16 %v2439
        %v2521 = vunpack.c.l.b16 %v2440
        %v2522 = vunpack.c.l.b16 %v2441
        %v2523 = vunpack.c.l.b16 %v2442
        %v2524 = vunpack.c.l.b16 %v2443
        %v2525 = vunpack.c.l.b16 %v2444
        %v2526 = vunpack.c.l.b16 %v2445
        %v2527 = vunpack.c.l.b16 %v2446
        %v2528 = vunpack.c.l.b16 %v2447
        %v2529 = vunpack.c.l.b16 %v2448
        %v2530 = vunpack.c.l.b16 %v2449
        %v2531 = vunpack.c.l.b16 %v2450
        %v2532 = vunpack.c.l.b16 %v2451
        %v2533 = vunpack.c.l.b16 %v2452
        %v2534 = vunpack.c.l.b16 %v2453
        %v2535 = vunpack.c.l.b16 %v2454
        %v2536 = vunpack.c.l.b16 %v2455
        %v2537 = vunpack.c.l.b16 %v2456
        %v2538 = vunpack.c.l.b16 %v2457
        %v2539 = vunpack.c.l.b16 %v2458
        %v2540 = vunpack.c.l.b16 %v2459
        %v2541 = vunpack.c.l.b16 %v2460
        %v2542 = vunpack.c.l.b16 %v2461
        %v2543 = vunpack.c.l.b16 %v2462
        %v2544 = vunpack.c.l.b16 %v2463
        %v2545 = vunpack.c.l.b16 %v2464
        %v2546 = vunpack.c.l.b16 %v2465
        %v2547 = vunpack.c.l.b16 %v2466
        %v2548 = vunpack.c.l.b16 %v2467
        %v2549 = vunpack.c.l.b16 %v2468
        %v2550 = vunpack.c.l.b16 %v2469
        %v2551 = vunpack.c.l.b16 %v2470
        %v2552 = vpack.c.b16 %v2521, %v2520
        %v2553 = vpack.c.b16 %v2523, %v2522
        %v2554 = vpack.c.b16 %v2525, %v2524
        %v2555 = vpack.c.b16 %v2527, %v2526
        %v2556 = vpack.c.b16 %v2529, %v2528
        %v2557 = vpack.c.b16 %v2531, %v2530
        %v2558 = vpack.c.b16 %v2533, %v2532
        %v2559 = vpack.c.b16 %v2535, %v2534
        %v2560 = vpack.c.b16 %v2537, %v2536
        %v2561 = vpack.c.b16 %v2539, %v2538
        %v2562 = vpack.c.b16 %v2541, %v2540
        %v2563 = vpack.c.b16 %v2543, %v2542
        %v2564 = vpack.c.b16 %v2545, %v2544
        %v2565 = vpack.c.b16 %v2547, %v2546
        %v2566 = vpack.c.b16 %v2549, %v2548
        %v2567 = vpack.c.b16 %v2551, %v2550
        %v2600 = vunpack.c.l.b16 %v2472
        %v2601 = vunpack.c.l.b16 %v2473
        %v2602 = vunpack.c.l.b16 %v2474
        %v2603 = vunpack.c.l.b16 %v2475
        %v2604 = vunpack.c.l.b16 %v2476
        %v2605 = vunpack.c.l.b16 %v2477
        %v2606 = vunpack.c.l.b16 %v2478
        %v2607 = vunpack.c.l.b16 %v2479
        %v2608 = vunpack.c.l.b16 %v2480
        %v2609 = vunpack.c.l.b16 %v2481
        %v2610 = vunpack.c.l.b16 %v2482
        %v2611 = vunpack.c.l.b16 %v2483
        %v2612 = vunpack.c.l.b16 %v2484
        %v2613 = vunpack.c.l.b16 %v2485
        %v2614 = vunpack.c.l.b16 %v2486
        %v2615 = vunpack.c.l.b16 %v2487
        %v2616 = vpack.c.b16 %v2601, %v2600
        %v2617 = vpack.c.b16 %v2603, %v2602
        %v2618 = vpack.c.b16 %v2605, %v2604
        %v2619 = vpack.c.b16 %v2607, %v2606
        %v2620 = vpack.c.b16 %v2609, %v2608
        %v2621 = vpack.c.b16 %v2611, %v2610
        %v2622 = vpack.c.b16 %v2613, %v2612
        %v2623 = vpack.c.b16 %v2615, %v2614
        %2632 = vmatpush.bf16.msra.mxu0 %v2623
        %2633 = vmatpush.bf16.msra.mxu0 %v2622
        %2634 = vmatpush.bf16.msra.mxu0 %v2621
        %2635 = vmatpush.bf16.msra.mxu0 %v2620
        %2636 = vmatpush.bf16.msra.mxu0 %v2619
        %2637 = vmatpush.bf16.msra.mxu0 %v2618
        %2638 = vmatpush.bf16.msra.mxu0 %v2617
        %2639 = vmatpush.bf16.msra.mxu0 %v2616
        %2640 = vmatmul.bf16.gmra.mxu0 %v2552
        %v2641 = vpop.f32.mrf.mxu0
        %v2642 = vadd.f32 0.0, %v2641
        %v2643 = vpop.f32.mrf.mxu0
        %v2644 = vadd.f32 0.0, %v2643
        %2645 = vmatmul.bf16.gmra.mxu0 %v2553
        %v2646 = vpop.f32.mrf.mxu0
        %v2647 = vadd.f32 0.0, %v2646
        %v2648 = vpop.f32.mrf.mxu0
        %v2649 = vadd.f32 0.0, %v2648
        %2650 = vmatmul.bf16.gmra.mxu0 %v2554
        %v2651 = vpop.f32.mrf.mxu0
        %v2652 = vadd.f32 0.0, %v2651
        %v2653 = vpop.f32.mrf.mxu0
        %v2654 = vadd.f32 0.0, %v2653
        %2655 = vmatmul.bf16.gmra.mxu0 %v2555
        %v2656 = vpop.f32.mrf.mxu0
        %v2657 = vadd.f32 0.0, %v2656
        %v2658 = vpop.f32.mrf.mxu0
        %v2659 = vadd.f32 0.0, %v2658
        %2660 = vmatmul.bf16.gmra.mxu0 %v2556
        %v2661 = vpop.f32.mrf.mxu0
        %v2662 = vadd.f32 0.0, %v2661
        %v2663 = vpop.f32.mrf.mxu0
        %v2664 = vadd.f32 0.0, %v2663
        %2665 = vmatmul.bf16.gmra.mxu0 %v2557
        %v2666 = vpop.f32.mrf.mxu0
        %v2667 = vadd.f32 0.0, %v2666
        %v2668 = vpop.f32.mrf.mxu0
        %v2669 = vadd.f32 0.0, %v2668
        %2670 = vmatmul.bf16.gmra.mxu0 %v2558
        %v2671 = vpop.f32.mrf.mxu0
        %v2672 = vadd.f32 0.0, %v2671
        %v2673 = vpop.f32.mrf.mxu0
        %v2674 = vadd.f32 0.0, %v2673
        %2675 = vmatmul.bf16.gmra.mxu0 %v2559
        %v2676 = vpop.f32.mrf.mxu0
        %v2677 = vadd.f32 0.0, %v2676
        %v2678 = vpop.f32.mrf.mxu0
        %v2679 = vadd.f32 0.0, %v2678
        %2680 = vmatmul.bf16.gmra.mxu0 %v2560
        %v2681 = vpop.f32.mrf.mxu0
        %v2682 = vadd.f32 0.0, %v2681
        %v2683 = vpop.f32.mrf.mxu0
        %v2684 = vadd.f32 0.0, %v2683
        %2685 = vmatmul.bf16.gmra.mxu0 %v2561
        %v2686 = vpop.f32.mrf.mxu0
        %v2687 = vadd.f32 0.0, %v2686
        %v2688 = vpop.f32.mrf.mxu0
        %v2689 = vadd.f32 0.0, %v2688
        %2690 = vmatmul.bf16.gmra.mxu0 %v2562
        %v2691 = vpop.f32.mrf.mxu0
        %v2692 = vadd.f32 0.0, %v2691
        %v2693 = vpop.f32.mrf.mxu0
        %v2694 = vadd.f32 0.0, %v2693
        %2695 = vmatmul.bf16.gmra.mxu0 %v2563
        %v2696 = vpop.f32.mrf.mxu0
        %v2697 = vadd.f32 0.0, %v2696
        %v2698 = vpop.f32.mrf.mxu0
        %v2699 = vadd.f32 0.0, %v2698
        %2700 = vmatmul.bf16.gmra.mxu0 %v2564
        %v2701 = vpop.f32.mrf.mxu0
        %v2702 = vadd.f32 0.0, %v2701
        %v2703 = vpop.f32.mrf.mxu0
        %v2704 = vadd.f32 0.0, %v2703
        %2705 = vmatmul.bf16.gmra.mxu0 %v2565
        %v2706 = vpop.f32.mrf.mxu0
        %v2707 = vadd.f32 0.0, %v2706
        %v2708 = vpop.f32.mrf.mxu0
        %v2709 = vadd.f32 0.0, %v2708
        %2710 = vmatmul.bf16.gmra.mxu0 %v2566
        %v2711 = vpop.f32.mrf.mxu0
        %v2712 = vadd.f32 0.0, %v2711
        %v2713 = vpop.f32.mrf.mxu0
        %v2714 = vadd.f32 0.0, %v2713
        %2715 = vmatmul.bf16.gmra.mxu0 %v2567
        %v2716 = vpop.f32.mrf.mxu0
        %v2717 = vadd.f32 0.0, %v2716
        %v2718 = vpop.f32.mrf.mxu0
        %v2719 = vadd.f32 0.0, %v2718
        %2720 = vdwg.mxu0
        %v2721 = vld [vmem:[#allocation4] sm:$0xff]
        %v2722 = vld [vmem:[#allocation4 + $0x8] sm:$0xff]
        %v2723 = vld [vmem:[#allocation4 + $0x10] sm:$0xff]
        %v2724 = vld [vmem:[#allocation4 + $0x18] sm:$0xff]
        %v2725 = vld [vmem:[#allocation4 + $0x20] sm:$0xff]
        %v2726 = vld [vmem:[#allocation4 + $0x28] sm:$0xff]
        %v2727 = vld [vmem:[#allocation4 + $0x30] sm:$0xff]
        %v2728 = vld [vmem:[#allocation4 + $0x38] sm:$0xff]
        %v2729 = vld [vmem:[#allocation4 + $0x40] sm:$0xff]
        %v2730 = vld [vmem:[#allocation4 + $0x48] sm:$0xff]
        %v2731 = vld [vmem:[#allocation4 + $0x50] sm:$0xff]
        %v2732 = vld [vmem:[#allocation4 + $0x58] sm:$0xff]
        %v2733 = vld [vmem:[#allocation4 + $0x60] sm:$0xff]
        %v2734 = vld [vmem:[#allocation4 + $0x68] sm:$0xff]
        %v2735 = vld [vmem:[#allocation4 + $0x70] sm:$0xff]
        %v2736 = vld [vmem:[#allocation4 + $0x78] sm:$0xff]
        %v2737 = vld [vmem:[#allocation4 + $0x80] sm:$0xff]
        %v2738 = vld [vmem:[#allocation4 + $0x88] sm:$0xff]
        %v2739 = vld [vmem:[#allocation4 + $0x90] sm:$0xff]
        %v2740 = vld [vmem:[#allocation4 + $0x98] sm:$0xff]
        %v2741 = vld [vmem:[#allocation4 + $0xa0] sm:$0xff]
        %v2742 = vld [vmem:[#allocation4 + $0xa8] sm:$0xff]
        %v2743 = vld [vmem:[#allocation4 + $0xb0] sm:$0xff]
        %v2744 = vld [vmem:[#allocation4 + $0xb8] sm:$0xff]
        %v2745 = vld [vmem:[#allocation4 + $0xc0] sm:$0xff]
        %v2746 = vld [vmem:[#allocation4 + $0xc8] sm:$0xff]
        %v2747 = vld [vmem:[#allocation4 + $0xd0] sm:$0xff]
        %v2748 = vld [vmem:[#allocation4 + $0xd8] sm:$0xff]
        %v2749 = vld [vmem:[#allocation4 + $0xe0] sm:$0xff]
        %v2750 = vld [vmem:[#allocation4 + $0xe8] sm:$0xff]
        %v2751 = vld [vmem:[#allocation4 + $0xf0] sm:$0xff]
        %v2752 = vld [vmem:[#allocation4 + $0xf8] sm:$0xff]
        %v2753 = vadd.f32 %v2721, %v2642
        %v2754 = vadd.f32 %v2722, %v2644
        %v2755 = vadd.f32 %v2723, %v2647
        %v2756 = vadd.f32 %v2724, %v2649
        %v2757 = vadd.f32 %v2725, %v2652
        %v2758 = vadd.f32 %v2726, %v2654
        %v2759 = vadd.f32 %v2727, %v2657
        %v2760 = vadd.f32 %v2728, %v2659
        %v2761 = vadd.f32 %v2729, %v2662
        %v2762 = vadd.f32 %v2730, %v2664
        %v2763 = vadd.f32 %v2731, %v2667
        %v2764 = vadd.f32 %v2732, %v2669
        %v2765 = vadd.f32 %v2733, %v2672
        %v2766 = vadd.f32 %v2734, %v2674
        %v2767 = vadd.f32 %v2735, %v2677
        %v2768 = vadd.f32 %v2736, %v2679
        %v2769 = vadd.f32 %v2737, %v2682
        %v2770 = vadd.f32 %v2738, %v2684
        %v2771 = vadd.f32 %v2739, %v2687
        %v2772 = vadd.f32 %v2740, %v2689
        %v2773 = vadd.f32 %v2741, %v2692
        %v2774 = vadd.f32 %v2742, %v2694
        %v2775 = vadd.f32 %v2743, %v2697
        %v2776 = vadd.f32 %v2744, %v2699
        %v2777 = vadd.f32 %v2745, %v2702
        %v2778 = vadd.f32 %v2746, %v2704
        %v2779 = vadd.f32 %v2747, %v2707
        %v2780 = vadd.f32 %v2748, %v2709
        %v2781 = vadd.f32 %v2749, %v2712
        %v2782 = vadd.f32 %v2750, %v2714
        %v2783 = vadd.f32 %v2751, %v2717
        %v2784 = vadd.f32 %v2752, %v2719
        %2785 = vst [vmem:[#allocation4] sm:$0xff] %v2753
        %2786 = vst [vmem:[#allocation4 + $0x8] sm:$0xff] %v2754
        %2787 = vst [vmem:[#allocation4 + $0x10] sm:$0xff] %v2755
        %2788 = vst [vmem:[#allocation4 + $0x18] sm:$0xff] %v2756
        %2789 = vst [vmem:[#allocation4 + $0x20] sm:$0xff] %v2757
        %2790 = vst [vmem:[#allocation4 + $0x28] sm:$0xff] %v2758
        %2791 = vst [vmem:[#allocation4 + $0x30] sm:$0xff] %v2759
        %2792 = vst [vmem:[#allocation4 + $0x38] sm:$0xff] %v2760
        %2793 = vst [vmem:[#allocation4 + $0x40] sm:$0xff] %v2761
        %2794 = vst [vmem:[#allocation4 + $0x48] sm:$0xff] %v2762
        %2795 = vst [vmem:[#allocation4 + $0x50] sm:$0xff] %v2763
        %2796 = vst [vmem:[#allocation4 + $0x58] sm:$0xff] %v2764
        %2797 = vst [vmem:[#allocation4 + $0x60] sm:$0xff] %v2765
        %2798 = vst [vmem:[#allocation4 + $0x68] sm:$0xff] %v2766
        %2799 = vst [vmem:[#allocation4 + $0x70] sm:$0xff] %v2767
        %2800 = vst [vmem:[#allocation4 + $0x78] sm:$0xff] %v2768
        %2801 = vst [vmem:[#allocation4 + $0x80] sm:$0xff] %v2769
        %2802 = vst [vmem:[#allocation4 + $0x88] sm:$0xff] %v2770
        %2803 = vst [vmem:[#allocation4 + $0x90] sm:$0xff] %v2771
        %2804 = vst [vmem:[#allocation4 + $0x98] sm:$0xff] %v2772
        %2805 = vst [vmem:[#allocation4 + $0xa0] sm:$0xff] %v2773
        %2806 = vst [vmem:[#allocation4 + $0xa8] sm:$0xff] %v2774
        %2807 = vst [vmem:[#allocation4 + $0xb0] sm:$0xff] %v2775
        %2808 = vst [vmem:[#allocation4 + $0xb8] sm:$0xff] %v2776
        %2809 = vst [vmem:[#allocation4 + $0xc0] sm:$0xff] %v2777
        %2810 = vst [vmem:[#allocation4 + $0xc8] sm:$0xff] %v2778
        %2811 = vst [vmem:[#allocation4 + $0xd0] sm:$0xff] %v2779
        %2812 = vst [vmem:[#allocation4 + $0xd8] sm:$0xff] %v2780
        %2813 = vst [vmem:[#allocation4 + $0xe0] sm:$0xff] %v2781
        %2814 = vst [vmem:[#allocation4 + $0xe8] sm:$0xff] %v2782
        %2815 = vst [vmem:[#allocation4 + $0xf0] sm:$0xff] %v2783
        %2816 = vst [vmem:[#allocation4 + $0xf8] sm:$0xff] %v2784
        %v2817 = vld [vmem:[#allocation3 + $0x10] sm:$0xf]
        %v2818 = vld [vmem:[#allocation3 + $0x14] sm:$0xf]
        %v2819 = vld [vmem:[#allocation3 + $0x18] sm:$0xf]
        %v2820 = vld [vmem:[#allocation3 + $0x1c] sm:$0xf]
        %v2821 = vld [vmem:[#allocation3 + $0x20] sm:$0xf]
        %v2822 = vld [vmem:[#allocation3 + $0x24] sm:$0xf]
        %v2823 = vld [vmem:[#allocation3 + $0x28] sm:$0xf]
        %v2824 = vld [vmem:[#allocation3 + $0x2c] sm:$0xf]
        %v2825 = vld [vmem:[#allocation3 + $0x30] sm:$0xf]
        %v2826 = vld [vmem:[#allocation3 + $0x34] sm:$0xf]
        %v2827 = vld [vmem:[#allocation3 + $0x38] sm:$0xf]
        %v2828 = vld [vmem:[#allocation3 + $0x3c] sm:$0xf]
        %v2829 = vld [vmem:[#allocation3 + $0x40] sm:$0xf]
        %v2830 = vld [vmem:[#allocation3 + $0x44] sm:$0xf]
        %v2831 = vld [vmem:[#allocation3 + $0x48] sm:$0xf]
        %v2832 = vld [vmem:[#allocation3 + $0x4c] sm:$0xf]
        %v2833 = vld [vmem:[#allocation3 + $0x50] sm:$0xf]
        %v2834 = vld [vmem:[#allocation3 + $0x54] sm:$0xf]
        %v2835 = vld [vmem:[#allocation3 + $0x58] sm:$0xf]
        %v2836 = vld [vmem:[#allocation3 + $0x5c] sm:$0xf]
        %v2837 = vld [vmem:[#allocation3 + $0x60] sm:$0xf]
        %v2838 = vld [vmem:[#allocation3 + $0x64] sm:$0xf]
        %v2839 = vld [vmem:[#allocation3 + $0x68] sm:$0xf]
        %v2840 = vld [vmem:[#allocation3 + $0x6c] sm:$0xf]
        %v2841 = vld [vmem:[#allocation3 + $0x70] sm:$0xf]
        %v2842 = vld [vmem:[#allocation3 + $0x74] sm:$0xf]
        %v2843 = vld [vmem:[#allocation3 + $0x78] sm:$0xf]
        %v2844 = vld [vmem:[#allocation3 + $0x7c] sm:$0xf]
        %v2845 = vld [vmem:[#allocation3 + $0x80] sm:$0xf]
        %v2846 = vld [vmem:[#allocation3 + $0x84] sm:$0xf]
        %v2847 = vld [vmem:[#allocation3 + $0x88] sm:$0xf]
        %v2848 = vld [vmem:[#allocation3 + $0x8c] sm:$0xf]
        %s2849 = scalar_lea.vmem [#allocation6], 384
        %v2850 = vld [vmem:[%s2849] sm:$0xf]
        %v2851 = vld [vmem:[%s2849 + $0x4] sm:$0xf]
        %v2852 = vld [vmem:[%s2849 + $0x8] sm:$0xf]
        %v2853 = vld [vmem:[%s2849 + $0xc] sm:$0xf]
        %v2854 = vld [vmem:[%s2849 + $0x10] sm:$0xf]
        %v2855 = vld [vmem:[%s2849 + $0x14] sm:$0xf]
        %v2856 = vld [vmem:[%s2849 + $0x18] sm:$0xf]
        %v2857 = vld [vmem:[%s2849 + $0x1c] sm:$0xf]
        %v2858 = vld [vmem:[%s2849 + $0x20] sm:$0xf]
        %v2859 = vld [vmem:[%s2849 + $0x24] sm:$0xf]
        %v2860 = vld [vmem:[%s2849 + $0x28] sm:$0xf]
        %v2861 = vld [vmem:[%s2849 + $0x2c] sm:$0xf]
        %v2862 = vld [vmem:[%s2849 + $0x30] sm:$0xf]
        %v2863 = vld [vmem:[%s2849 + $0x34] sm:$0xf]
        %v2864 = vld [vmem:[%s2849 + $0x38] sm:$0xf]
        %v2865 = vld [vmem:[%s2849 + $0x3c] sm:$0xf]
        %v2898 = vunpack.c.l.b16 %v2817
        %v2899 = vunpack.c.l.b16 %v2818
        %v2900 = vunpack.c.l.b16 %v2819
        %v2901 = vunpack.c.l.b16 %v2820
        %v2902 = vunpack.c.l.b16 %v2821
        %v2903 = vunpack.c.l.b16 %v2822
        %v2904 = vunpack.c.l.b16 %v2823
        %v2905 = vunpack.c.l.b16 %v2824
        %v2906 = vunpack.c.l.b16 %v2825
        %v2907 = vunpack.c.l.b16 %v2826
        %v2908 = vunpack.c.l.b16 %v2827
        %v2909 = vunpack.c.l.b16 %v2828
        %v2910 = vunpack.c.l.b16 %v2829
        %v2911 = vunpack.c.l.b16 %v2830
        %v2912 = vunpack.c.l.b16 %v2831
        %v2913 = vunpack.c.l.b16 %v2832
        %v2914 = vunpack.c.l.b16 %v2833
        %v2915 = vunpack.c.l.b16 %v2834
        %v2916 = vunpack.c.l.b16 %v2835
        %v2917 = vunpack.c.l.b16 %v2836
        %v2918 = vunpack.c.l.b16 %v2837
        %v2919 = vunpack.c.l.b16 %v2838
        %v2920 = vunpack.c.l.b16 %v2839
        %v2921 = vunpack.c.l.b16 %v2840
        %v2922 = vunpack.c.l.b16 %v2841
        %v2923 = vunpack.c.l.b16 %v2842
        %v2924 = vunpack.c.l.b16 %v2843
        %v2925 = vunpack.c.l.b16 %v2844
        %v2926 = vunpack.c.l.b16 %v2845
        %v2927 = vunpack.c.l.b16 %v2846
        %v2928 = vunpack.c.l.b16 %v2847
        %v2929 = vunpack.c.l.b16 %v2848
        %v2930 = vpack.c.b16 %v2899, %v2898
        %v2931 = vpack.c.b16 %v2901, %v2900
        %v2932 = vpack.c.b16 %v2903, %v2902
        %v2933 = vpack.c.b16 %v2905, %v2904
        %v2934 = vpack.c.b16 %v2907, %v2906
        %v2935 = vpack.c.b16 %v2909, %v2908
        %v2936 = vpack.c.b16 %v2911, %v2910
        %v2937 = vpack.c.b16 %v2913, %v2912
        %v2938 = vpack.c.b16 %v2915, %v2914
        %v2939 = vpack.c.b16 %v2917, %v2916
        %v2940 = vpack.c.b16 %v2919, %v2918
        %v2941 = vpack.c.b16 %v2921, %v2920
        %v2942 = vpack.c.b16 %v2923, %v2922
        %v2943 = vpack.c.b16 %v2925, %v2924
        %v2944 = vpack.c.b16 %v2927, %v2926
        %v2945 = vpack.c.b16 %v2929, %v2928
        %v2978 = vunpack.c.l.b16 %v2850
        %v2979 = vunpack.c.l.b16 %v2851
        %v2980 = vunpack.c.l.b16 %v2852
        %v2981 = vunpack.c.l.b16 %v2853
        %v2982 = vunpack.c.l.b16 %v2854
        %v2983 = vunpack.c.l.b16 %v2855
        %v2984 = vunpack.c.l.b16 %v2856
        %v2985 = vunpack.c.l.b16 %v2857
        %v2986 = vunpack.c.l.b16 %v2858
        %v2987 = vunpack.c.l.b16 %v2859
        %v2988 = vunpack.c.l.b16 %v2860
        %v2989 = vunpack.c.l.b16 %v2861
        %v2990 = vunpack.c.l.b16 %v2862
        %v2991 = vunpack.c.l.b16 %v2863
        %v2992 = vunpack.c.l.b16 %v2864
        %v2993 = vunpack.c.l.b16 %v2865
        %v2994 = vpack.c.b16 %v2979, %v2978
        %v2995 = vpack.c.b16 %v2981, %v2980
        %v2996 = vpack.c.b16 %v2983, %v2982
        %v2997 = vpack.c.b16 %v2985, %v2984
        %v2998 = vpack.c.b16 %v2987, %v2986
        %v2999 = vpack.c.b16 %v2989, %v2988
        %v3000 = vpack.c.b16 %v2991, %v2990
        %v3001 = vpack.c.b16 %v2993, %v2992
        %3010 = vmatpush.bf16.msra.mxu0 %v3001
        %3011 = vmatpush.bf16.msra.mxu0 %v3000
        %3012 = vmatpush.bf16.msra.mxu0 %v2999
        %3013 = vmatpush.bf16.msra.mxu0 %v2998
        %3014 = vmatpush.bf16.msra.mxu0 %v2997
        %3015 = vmatpush.bf16.msra.mxu0 %v2996
        %3016 = vmatpush.bf16.msra.mxu0 %v2995
        %3017 = vmatpush.bf16.msra.mxu0 %v2994
        %3018 = vmatmul.bf16.gmra.mxu0 %v2930
        %v3019 = vpop.f32.mrf.mxu0
        %v3020 = vadd.f32 0.0, %v3019
        %v3021 = vpop.f32.mrf.mxu0
        %v3022 = vadd.f32 0.0, %v3021
        %3023 = vmatmul.bf16.gmra.mxu0 %v2931
        %v3024 = vpop.f32.mrf.mxu0
        %v3025 = vadd.f32 0.0, %v3024
        %v3026 = vpop.f32.mrf.mxu0
        %v3027 = vadd.f32 0.0, %v3026
        %3028 = vmatmul.bf16.gmra.mxu0 %v2932
        %v3029 = vpop.f32.mrf.mxu0
        %v3030 = vadd.f32 0.0, %v3029
        %v3031 = vpop.f32.mrf.mxu0
        %v3032 = vadd.f32 0.0, %v3031
        %3033 = vmatmul.bf16.gmra.mxu0 %v2933
        %v3034 = vpop.f32.mrf.mxu0
        %v3035 = vadd.f32 0.0, %v3034
        %v3036 = vpop.f32.mrf.mxu0
        %v3037 = vadd.f32 0.0, %v3036
        %3038 = vmatmul.bf16.gmra.mxu0 %v2934
        %v3039 = vpop.f32.mrf.mxu0
        %v3040 = vadd.f32 0.0, %v3039
        %v3041 = vpop.f32.mrf.mxu0
        %v3042 = vadd.f32 0.0, %v3041
        %3043 = vmatmul.bf16.gmra.mxu0 %v2935
        %v3044 = vpop.f32.mrf.mxu0
        %v3045 = vadd.f32 0.0, %v3044
        %v3046 = vpop.f32.mrf.mxu0
        %v3047 = vadd.f32 0.0, %v3046
        %3048 = vmatmul.bf16.gmra.mxu0 %v2936
        %v3049 = vpop.f32.mrf.mxu0
        %v3050 = vadd.f32 0.0, %v3049
        %v3051 = vpop.f32.mrf.mxu0
        %v3052 = vadd.f32 0.0, %v3051
        %3053 = vmatmul.bf16.gmra.mxu0 %v2937
        %v3054 = vpop.f32.mrf.mxu0
        %v3055 = vadd.f32 0.0, %v3054
        %v3056 = vpop.f32.mrf.mxu0
        %v3057 = vadd.f32 0.0, %v3056
        %3058 = vmatmul.bf16.gmra.mxu0 %v2938
        %v3059 = vpop.f32.mrf.mxu0
        %v3060 = vadd.f32 0.0, %v3059
        %v3061 = vpop.f32.mrf.mxu0
        %v3062 = vadd.f32 0.0, %v3061
        %3063 = vmatmul.bf16.gmra.mxu0 %v2939
        %v3064 = vpop.f32.mrf.mxu0
        %v3065 = vadd.f32 0.0, %v3064
        %v3066 = vpop.f32.mrf.mxu0
        %v3067 = vadd.f32 0.0, %v3066
        %3068 = vmatmul.bf16.gmra.mxu0 %v2940
        %v3069 = vpop.f32.mrf.mxu0
        %v3070 = vadd.f32 0.0, %v3069
        %v3071 = vpop.f32.mrf.mxu0
        %v3072 = vadd.f32 0.0, %v3071
        %3073 = vmatmul.bf16.gmra.mxu0 %v2941
        %v3074 = vpop.f32.mrf.mxu0
        %v3075 = vadd.f32 0.0, %v3074
        %v3076 = vpop.f32.mrf.mxu0
        %v3077 = vadd.f32 0.0, %v3076
        %3078 = vmatmul.bf16.gmra.mxu0 %v2942
        %v3079 = vpop.f32.mrf.mxu0
        %v3080 = vadd.f32 0.0, %v3079
        %v3081 = vpop.f32.mrf.mxu0
        %v3082 = vadd.f32 0.0, %v3081
        %3083 = vmatmul.bf16.gmra.mxu0 %v2943
        %v3084 = vpop.f32.mrf.mxu0
        %v3085 = vadd.f32 0.0, %v3084
        %v3086 = vpop.f32.mrf.mxu0
        %v3087 = vadd.f32 0.0, %v3086
        %3088 = vmatmul.bf16.gmra.mxu0 %v2944
        %v3089 = vpop.f32.mrf.mxu0
        %v3090 = vadd.f32 0.0, %v3089
        %v3091 = vpop.f32.mrf.mxu0
        %v3092 = vadd.f32 0.0, %v3091
        %3093 = vmatmul.bf16.gmra.mxu0 %v2945
        %v3094 = vpop.f32.mrf.mxu0
        %v3095 = vadd.f32 0.0, %v3094
        %v3096 = vpop.f32.mrf.mxu0
        %v3097 = vadd.f32 0.0, %v3096
        %3098 = vdwg.mxu0
        %v3099 = vld [vmem:[#allocation4] sm:$0xff]
        %v3100 = vld [vmem:[#allocation4 + $0x8] sm:$0xff]
        %v3101 = vld [vmem:[#allocation4 + $0x10] sm:$0xff]
        %v3102 = vld [vmem:[#allocation4 + $0x18] sm:$0xff]
        %v3103 = vld [vmem:[#allocation4 + $0x20] sm:$0xff]
        %v3104 = vld [vmem:[#allocation4 + $0x28] sm:$0xff]
        %v3105 = vld [vmem:[#allocation4 + $0x30] sm:$0xff]
        %v3106 = vld [vmem:[#allocation4 + $0x38] sm:$0xff]
        %v3107 = vld [vmem:[#allocation4 + $0x40] sm:$0xff]
        %v3108 = vld [vmem:[#allocation4 + $0x48] sm:$0xff]
        %v3109 = vld [vmem:[#allocation4 + $0x50] sm:$0xff]
        %v3110 = vld [vmem:[#allocation4 + $0x58] sm:$0xff]
        %v3111 = vld [vmem:[#allocation4 + $0x60] sm:$0xff]
        %v3112 = vld [vmem:[#allocation4 + $0x68] sm:$0xff]
        %v3113 = vld [vmem:[#allocation4 + $0x70] sm:$0xff]
        %v3114 = vld [vmem:[#allocation4 + $0x78] sm:$0xff]
        %v3115 = vld [vmem:[#allocation4 + $0x80] sm:$0xff]
        %v3116 = vld [vmem:[#allocation4 + $0x88] sm:$0xff]
        %v3117 = vld [vmem:[#allocation4 + $0x90] sm:$0xff]
        %v3118 = vld [vmem:[#allocation4 + $0x98] sm:$0xff]
        %v3119 = vld [vmem:[#allocation4 + $0xa0] sm:$0xff]
        %v3120 = vld [vmem:[#allocation4 + $0xa8] sm:$0xff]
        %v3121 = vld [vmem:[#allocation4 + $0xb0] sm:$0xff]
        %v3122 = vld [vmem:[#allocation4 + $0xb8] sm:$0xff]
        %v3123 = vld [vmem:[#allocation4 + $0xc0] sm:$0xff]
        %v3124 = vld [vmem:[#allocation4 + $0xc8] sm:$0xff]
        %v3125 = vld [vmem:[#allocation4 + $0xd0] sm:$0xff]
        %v3126 = vld [vmem:[#allocation4 + $0xd8] sm:$0xff]
        %v3127 = vld [vmem:[#allocation4 + $0xe0] sm:$0xff]
        %v3128 = vld [vmem:[#allocation4 + $0xe8] sm:$0xff]
        %v3129 = vld [vmem:[#allocation4 + $0xf0] sm:$0xff]
        %v3130 = vld [vmem:[#allocation4 + $0xf8] sm:$0xff]
        %v3131 = vadd.f32 %v3099, %v3020
        %v3132 = vadd.f32 %v3100, %v3022
        %v3133 = vadd.f32 %v3101, %v3025
        %v3134 = vadd.f32 %v3102, %v3027
        %v3135 = vadd.f32 %v3103, %v3030
        %v3136 = vadd.f32 %v3104, %v3032
        %v3137 = vadd.f32 %v3105, %v3035
        %v3138 = vadd.f32 %v3106, %v3037
        %v3139 = vadd.f32 %v3107, %v3040
        %v3140 = vadd.f32 %v3108, %v3042
        %v3141 = vadd.f32 %v3109, %v3045
        %v3142 = vadd.f32 %v3110, %v3047
        %v3143 = vadd.f32 %v3111, %v3050
        %v3144 = vadd.f32 %v3112, %v3052
        %v3145 = vadd.f32 %v3113, %v3055
        %v3146 = vadd.f32 %v3114, %v3057
        %v3147 = vadd.f32 %v3115, %v3060
        %v3148 = vadd.f32 %v3116, %v3062
        %v3149 = vadd.f32 %v3117, %v3065
        %v3150 = vadd.f32 %v3118, %v3067
        %v3151 = vadd.f32 %v3119, %v3070
        %v3152 = vadd.f32 %v3120, %v3072
        %v3153 = vadd.f32 %v3121, %v3075
        %v3154 = vadd.f32 %v3122, %v3077
        %v3155 = vadd.f32 %v3123, %v3080
        %v3156 = vadd.f32 %v3124, %v3082
        %v3157 = vadd.f32 %v3125, %v3085
        %v3158 = vadd.f32 %v3126, %v3087
        %v3159 = vadd.f32 %v3127, %v3090
        %v3160 = vadd.f32 %v3128, %v3092
        %v3161 = vadd.f32 %v3129, %v3095
        %v3162 = vadd.f32 %v3130, %v3097
        %3163 = vst [vmem:[#allocation4] sm:$0xff] %v3131
        %3164 = vst [vmem:[#allocation4 + $0x8] sm:$0xff] %v3132
        %3165 = vst [vmem:[#allocation4 + $0x10] sm:$0xff] %v3133
        %3166 = vst [vmem:[#allocation4 + $0x18] sm:$0xff] %v3134
        %3167 = vst [vmem:[#allocation4 + $0x20] sm:$0xff] %v3135
        %3168 = vst [vmem:[#allocation4 + $0x28] sm:$0xff] %v3136
        %3169 = vst [vmem:[#allocation4 + $0x30] sm:$0xff] %v3137
        %3170 = vst [vmem:[#allocation4 + $0x38] sm:$0xff] %v3138
        %3171 = vst [vmem:[#allocation4 + $0x40] sm:$0xff] %v3139
        %3172 = vst [vmem:[#allocation4 + $0x48] sm:$0xff] %v3140
        %3173 = vst [vmem:[#allocation4 + $0x50] sm:$0xff] %v3141
        %3174 = vst [vmem:[#allocation4 + $0x58] sm:$0xff] %v3142
        %3175 = vst [vmem:[#allocation4 + $0x60] sm:$0xff] %v3143
        %3176 = vst [vmem:[#allocation4 + $0x68] sm:$0xff] %v3144
        %3177 = vst [vmem:[#allocation4 + $0x70] sm:$0xff] %v3145
        %3178 = vst [vmem:[#allocation4 + $0x78] sm:$0xff] %v3146
        %3179 = vst [vmem:[#allocation4 + $0x80] sm:$0xff] %v3147
        %3180 = vst [vmem:[#allocation4 + $0x88] sm:$0xff] %v3148
        %3181 = vst [vmem:[#allocation4 + $0x90] sm:$0xff] %v3149
        %3182 = vst [vmem:[#allocation4 + $0x98] sm:$0xff] %v3150
        %3183 = vst [vmem:[#allocation4 + $0xa0] sm:$0xff] %v3151
        %3184 = vst [vmem:[#allocation4 + $0xa8] sm:$0xff] %v3152
        %3185 = vst [vmem:[#allocation4 + $0xb0] sm:$0xff] %v3153
        %3186 = vst [vmem:[#allocation4 + $0xb8] sm:$0xff] %v3154
        %3187 = vst [vmem:[#allocation4 + $0xc0] sm:$0xff] %v3155
        %3188 = vst [vmem:[#allocation4 + $0xc8] sm:$0xff] %v3156
        %3189 = vst [vmem:[#allocation4 + $0xd0] sm:$0xff] %v3157
        %3190 = vst [vmem:[#allocation4 + $0xd8] sm:$0xff] %v3158
        %3191 = vst [vmem:[#allocation4 + $0xe0] sm:$0xff] %v3159
        %3192 = vst [vmem:[#allocation4 + $0xe8] sm:$0xff] %v3160
        %3193 = vst [vmem:[#allocation4 + $0xf0] sm:$0xff] %v3161
        %3194 = vst [vmem:[#allocation4 + $0xf8] sm:$0xff] %v3162
        %v3195 = vld [vmem:[%s234 + $0x10] sm:$0xf]
        %v3196 = vld [vmem:[%s234 + $0x14] sm:$0xf]
        %v3197 = vld [vmem:[%s234 + $0x18] sm:$0xf]
        %v3198 = vld [vmem:[%s234 + $0x1c] sm:$0xf]
        %v3199 = vld [vmem:[%s234 + $0x20] sm:$0xf]
        %v3200 = vld [vmem:[%s234 + $0x24] sm:$0xf]
        %v3201 = vld [vmem:[%s234 + $0x28] sm:$0xf]
        %v3202 = vld [vmem:[%s234 + $0x2c] sm:$0xf]
        %v3203 = vld [vmem:[%s234 + $0x30] sm:$0xf]
        %v3204 = vld [vmem:[%s234 + $0x34] sm:$0xf]
        %v3205 = vld [vmem:[%s234 + $0x38] sm:$0xf]
        %v3206 = vld [vmem:[%s234 + $0x3c] sm:$0xf]
        %v3207 = vld [vmem:[%s234 + $0x40] sm:$0xf]
        %v3208 = vld [vmem:[%s234 + $0x44] sm:$0xf]
        %v3209 = vld [vmem:[%s234 + $0x48] sm:$0xf]
        %v3210 = vld [vmem:[%s234 + $0x4c] sm:$0xf]
        %v3211 = vld [vmem:[%s234 + $0x50] sm:$0xf]
        %v3212 = vld [vmem:[%s234 + $0x54] sm:$0xf]
        %v3213 = vld [vmem:[%s234 + $0x58] sm:$0xf]
        %v3214 = vld [vmem:[%s234 + $0x5c] sm:$0xf]
        %v3215 = vld [vmem:[%s234 + $0x60] sm:$0xf]
        %v3216 = vld [vmem:[%s234 + $0x64] sm:$0xf]
        %v3217 = vld [vmem:[%s234 + $0x68] sm:$0xf]
        %v3218 = vld [vmem:[%s234 + $0x6c] sm:$0xf]
        %v3219 = vld [vmem:[%s234 + $0x70] sm:$0xf]
        %v3220 = vld [vmem:[%s234 + $0x74] sm:$0xf]
        %v3221 = vld [vmem:[%s234 + $0x78] sm:$0xf]
        %v3222 = vld [vmem:[%s234 + $0x7c] sm:$0xf]
        %v3223 = vld [vmem:[%s234 + $0x80] sm:$0xf]
        %v3224 = vld [vmem:[%s234 + $0x84] sm:$0xf]
        %v3225 = vld [vmem:[%s234 + $0x88] sm:$0xf]
        %v3226 = vld [vmem:[%s234 + $0x8c] sm:$0xf]
        %s3227 = scalar_lea.vmem [#allocation6], 448
        %v3228 = vld [vmem:[%s3227] sm:$0xf]
        %v3229 = vld [vmem:[%s3227 + $0x4] sm:$0xf]
        %v3230 = vld [vmem:[%s3227 + $0x8] sm:$0xf]
        %v3231 = vld [vmem:[%s3227 + $0xc] sm:$0xf]
        %v3232 = vld [vmem:[%s3227 + $0x10] sm:$0xf]
        %v3233 = vld [vmem:[%s3227 + $0x14] sm:$0xf]
        %v3234 = vld [vmem:[%s3227 + $0x18] sm:$0xf]
        %v3235 = vld [vmem:[%s3227 + $0x1c] sm:$0xf]
        %v3236 = vld [vmem:[%s3227 + $0x20] sm:$0xf]
        %v3237 = vld [vmem:[%s3227 + $0x24] sm:$0xf]
        %v3238 = vld [vmem:[%s3227 + $0x28] sm:$0xf]
        %v3239 = vld [vmem:[%s3227 + $0x2c] sm:$0xf]
        %v3240 = vld [vmem:[%s3227 + $0x30] sm:$0xf]
        %v3241 = vld [vmem:[%s3227 + $0x34] sm:$0xf]
        %v3242 = vld [vmem:[%s3227 + $0x38] sm:$0xf]
        %v3243 = vld [vmem:[%s3227 + $0x3c] sm:$0xf]
        %v3276 = vunpack.c.l.b16 %v3195
        %v3277 = vunpack.c.l.b16 %v3196
        %v3278 = vunpack.c.l.b16 %v3197
        %v3279 = vunpack.c.l.b16 %v3198
        %v3280 = vunpack.c.l.b16 %v3199
        %v3281 = vunpack.c.l.b16 %v3200
        %v3282 = vunpack.c.l.b16 %v3201
        %v3283 = vunpack.c.l.b16 %v3202
        %v3284 = vunpack.c.l.b16 %v3203
        %v3285 = vunpack.c.l.b16 %v3204
        %v3286 = vunpack.c.l.b16 %v3205
        %v3287 = vunpack.c.l.b16 %v3206
        %v3288 = vunpack.c.l.b16 %v3207
        %v3289 = vunpack.c.l.b16 %v3208
        %v3290 = vunpack.c.l.b16 %v3209
        %v3291 = vunpack.c.l.b16 %v3210
        %v3292 = vunpack.c.l.b16 %v3211
        %v3293 = vunpack.c.l.b16 %v3212
        %v3294 = vunpack.c.l.b16 %v3213
        %v3295 = vunpack.c.l.b16 %v3214
        %v3296 = vunpack.c.l.b16 %v3215
        %v3297 = vunpack.c.l.b16 %v3216
        %v3298 = vunpack.c.l.b16 %v3217
        %v3299 = vunpack.c.l.b16 %v3218
        %v3300 = vunpack.c.l.b16 %v3219
        %v3301 = vunpack.c.l.b16 %v3220
        %v3302 = vunpack.c.l.b16 %v3221
        %v3303 = vunpack.c.l.b16 %v3222
        %v3304 = vunpack.c.l.b16 %v3223
        %v3305 = vunpack.c.l.b16 %v3224
        %v3306 = vunpack.c.l.b16 %v3225
        %v3307 = vunpack.c.l.b16 %v3226
        %v3308 = vpack.c.b16 %v3277, %v3276
        %v3309 = vpack.c.b16 %v3279, %v3278
        %v3310 = vpack.c.b16 %v3281, %v3280
        %v3311 = vpack.c.b16 %v3283, %v3282
        %v3312 = vpack.c.b16 %v3285, %v3284
        %v3313 = vpack.c.b16 %v3287, %v3286
        %v3314 = vpack.c.b16 %v3289, %v3288
        %v3315 = vpack.c.b16 %v3291, %v3290
        %v3316 = vpack.c.b16 %v3293, %v3292
        %v3317 = vpack.c.b16 %v3295, %v3294
        %v3318 = vpack.c.b16 %v3297, %v3296
        %v3319 = vpack.c.b16 %v3299, %v3298
        %v3320 = vpack.c.b16 %v3301, %v3300
        %v3321 = vpack.c.b16 %v3303, %v3302
        %v3322 = vpack.c.b16 %v3305, %v3304
        %v3323 = vpack.c.b16 %v3307, %v3306
        %v3356 = vunpack.c.l.b16 %v3228
        %v3357 = vunpack.c.l.b16 %v3229
        %v3358 = vunpack.c.l.b16 %v3230
        %v3359 = vunpack.c.l.b16 %v3231
        %v3360 = vunpack.c.l.b16 %v3232
        %v3361 = vunpack.c.l.b16 %v3233
        %v3362 = vunpack.c.l.b16 %v3234
        %v3363 = vunpack.c.l.b16 %v3235
        %v3364 = vunpack.c.l.b16 %v3236
        %v3365 = vunpack.c.l.b16 %v3237
        %v3366 = vunpack.c.l.b16 %v3238
        %v3367 = vunpack.c.l.b16 %v3239
        %v3368 = vunpack.c.l.b16 %v3240
        %v3369 = vunpack.c.l.b16 %v3241
        %v3370 = vunpack.c.l.b16 %v3242
        %v3371 = vunpack.c.l.b16 %v3243
        %v3372 = vpack.c.b16 %v3357, %v3356
        %v3373 = vpack.c.b16 %v3359, %v3358
        %v3374 = vpack.c.b16 %v3361, %v3360
        %v3375 = vpack.c.b16 %v3363, %v3362
        %v3376 = vpack.c.b16 %v3365, %v3364
        %v3377 = vpack.c.b16 %v3367, %v3366
        %v3378 = vpack.c.b16 %v3369, %v3368
        %v3379 = vpack.c.b16 %v3371, %v3370
        %3388 = vmatpush.bf16.msra.mxu0 %v3379
        %3389 = vmatpush.bf16.msra.mxu0 %v3378
        %3390 = vmatpush.bf16.msra.mxu0 %v3377
        %3391 = vmatpush.bf16.msra.mxu0 %v3376
        %3392 = vmatpush.bf16.msra.mxu0 %v3375
        %3393 = vmatpush.bf16.msra.mxu0 %v3374
        %3394 = vmatpush.bf16.msra.mxu0 %v3373
        %3395 = vmatpush.bf16.msra.mxu0 %v3372
        %3396 = vmatmul.bf16.gmra.mxu0 %v3308
        %v3397 = vpop.f32.mrf.mxu0
        %v3398 = vadd.f32 0.0, %v3397
        %v3399 = vpop.f32.mrf.mxu0
        %v3400 = vadd.f32 0.0, %v3399
        %3401 = vmatmul.bf16.gmra.mxu0 %v3309
        %v3402 = vpop.f32.mrf.mxu0
        %v3403 = vadd.f32 0.0, %v3402
        %v3404 = vpop.f32.mrf.mxu0
        %v3405 = vadd.f32 0.0, %v3404
        %3406 = vmatmul.bf16.gmra.mxu0 %v3310
        %v3407 = vpop.f32.mrf.mxu0
        %v3408 = vadd.f32 0.0, %v3407
        %v3409 = vpop.f32.mrf.mxu0
        %v3410 = vadd.f32 0.0, %v3409
        %3411 = vmatmul.bf16.gmra.mxu0 %v3311
        %v3412 = vpop.f32.mrf.mxu0
        %v3413 = vadd.f32 0.0, %v3412
        %v3414 = vpop.f32.mrf.mxu0
        %v3415 = vadd.f32 0.0, %v3414
        %3416 = vmatmul.bf16.gmra.mxu0 %v3312
        %v3417 = vpop.f32.mrf.mxu0
        %v3418 = vadd.f32 0.0, %v3417
        %v3419 = vpop.f32.mrf.mxu0
        %v3420 = vadd.f32 0.0, %v3419
        %3421 = vmatmul.bf16.gmra.mxu0 %v3313
        %v3422 = vpop.f32.mrf.mxu0
        %v3423 = vadd.f32 0.0, %v3422
        %v3424 = vpop.f32.mrf.mxu0
        %v3425 = vadd.f32 0.0, %v3424
        %3426 = vmatmul.bf16.gmra.mxu0 %v3314
        %v3427 = vpop.f32.mrf.mxu0
        %v3428 = vadd.f32 0.0, %v3427
        %v3429 = vpop.f32.mrf.mxu0
        %v3430 = vadd.f32 0.0, %v3429
        %3431 = vmatmul.bf16.gmra.mxu0 %v3315
        %v3432 = vpop.f32.mrf.mxu0
        %v3433 = vadd.f32 0.0, %v3432
        %v3434 = vpop.f32.mrf.mxu0
        %v3435 = vadd.f32 0.0, %v3434
        %3436 = vmatmul.bf16.gmra.mxu0 %v3316
        %v3437 = vpop.f32.mrf.mxu0
        %v3438 = vadd.f32 0.0, %v3437
        %v3439 = vpop.f32.mrf.mxu0
        %v3440 = vadd.f32 0.0, %v3439
        %3441 = vmatmul.bf16.gmra.mxu0 %v3317
        %v3442 = vpop.f32.mrf.mxu0
        %v3443 = vadd.f32 0.0, %v3442
        %v3444 = vpop.f32.mrf.mxu0
        %v3445 = vadd.f32 0.0, %v3444
        %3446 = vmatmul.bf16.gmra.mxu0 %v3318
        %v3447 = vpop.f32.mrf.mxu0
        %v3448 = vadd.f32 0.0, %v3447
        %v3449 = vpop.f32.mrf.mxu0
        %v3450 = vadd.f32 0.0, %v3449
        %3451 = vmatmul.bf16.gmra.mxu0 %v3319
        %v3452 = vpop.f32.mrf.mxu0
        %v3453 = vadd.f32 0.0, %v3452
        %v3454 = vpop.f32.mrf.mxu0
        %v3455 = vadd.f32 0.0, %v3454
        %3456 = vmatmul.bf16.gmra.mxu0 %v3320
        %v3457 = vpop.f32.mrf.mxu0
        %v3458 = vadd.f32 0.0, %v3457
        %v3459 = vpop.f32.mrf.mxu0
        %v3460 = vadd.f32 0.0, %v3459
        %3461 = vmatmul.bf16.gmra.mxu0 %v3321
        %v3462 = vpop.f32.mrf.mxu0
        %v3463 = vadd.f32 0.0, %v3462
        %v3464 = vpop.f32.mrf.mxu0
        %v3465 = vadd.f32 0.0, %v3464
        %3466 = vmatmul.bf16.gmra.mxu0 %v3322
        %v3467 = vpop.f32.mrf.mxu0
        %v3468 = vadd.f32 0.0, %v3467
        %v3469 = vpop.f32.mrf.mxu0
        %v3470 = vadd.f32 0.0, %v3469
        %3471 = vmatmul.bf16.gmra.mxu0 %v3323
        %v3472 = vpop.f32.mrf.mxu0
        %v3473 = vadd.f32 0.0, %v3472
        %v3474 = vpop.f32.mrf.mxu0
        %v3475 = vadd.f32 0.0, %v3474
        %3476 = vdwg.mxu0
        %v3477 = vld [vmem:[#allocation4] sm:$0xff]
        %v3478 = vld [vmem:[#allocation4 + $0x8] sm:$0xff]
        %v3479 = vld [vmem:[#allocation4 + $0x10] sm:$0xff]
        %v3480 = vld [vmem:[#allocation4 + $0x18] sm:$0xff]
        %v3481 = vld [vmem:[#allocation4 + $0x20] sm:$0xff]
        %v3482 = vld [vmem:[#allocation4 + $0x28] sm:$0xff]
        %v3483 = vld [vmem:[#allocation4 + $0x30] sm:$0xff]
        %v3484 = vld [vmem:[#allocation4 + $0x38] sm:$0xff]
        %v3485 = vld [vmem:[#allocation4 + $0x40] sm:$0xff]
        %v3486 = vld [vmem:[#allocation4 + $0x48] sm:$0xff]
        %v3487 = vld [vmem:[#allocation4 + $0x50] sm:$0xff]
        %v3488 = vld [vmem:[#allocation4 + $0x58] sm:$0xff]
        %v3489 = vld [vmem:[#allocation4 + $0x60] sm:$0xff]
        %v3490 = vld [vmem:[#allocation4 + $0x68] sm:$0xff]
        %v3491 = vld [vmem:[#allocation4 + $0x70] sm:$0xff]
        %v3492 = vld [vmem:[#allocation4 + $0x78] sm:$0xff]
        %v3493 = vld [vmem:[#allocation4 + $0x80] sm:$0xff]
        %v3494 = vld [vmem:[#allocation4 + $0x88] sm:$0xff]
        %v3495 = vld [vmem:[#allocation4 + $0x90] sm:$0xff]
        %v3496 = vld [vmem:[#allocation4 + $0x98] sm:$0xff]
        %v3497 = vld [vmem:[#allocation4 + $0xa0] sm:$0xff]
        %v3498 = vld [vmem:[#allocation4 + $0xa8] sm:$0xff]
        %v3499 = vld [vmem:[#allocation4 + $0xb0] sm:$0xff]
        %v3500 = vld [vmem:[#allocation4 + $0xb8] sm:$0xff]
        %v3501 = vld [vmem:[#allocation4 + $0xc0] sm:$0xff]
        %v3502 = vld [vmem:[#allocation4 + $0xc8] sm:$0xff]
        %v3503 = vld [vmem:[#allocation4 + $0xd0] sm:$0xff]
        %v3504 = vld [vmem:[#allocation4 + $0xd8] sm:$0xff]
        %v3505 = vld [vmem:[#allocation4 + $0xe0] sm:$0xff]
        %v3506 = vld [vmem:[#allocation4 + $0xe8] sm:$0xff]
        %v3507 = vld [vmem:[#allocation4 + $0xf0] sm:$0xff]
        %v3508 = vld [vmem:[#allocation4 + $0xf8] sm:$0xff]
        %v3509 = vadd.f32 %v3477, %v3398
        %v3510 = vadd.f32 %v3478, %v3400
        %v3511 = vadd.f32 %v3479, %v3403
        %v3512 = vadd.f32 %v3480, %v3405
        %v3513 = vadd.f32 %v3481, %v3408
        %v3514 = vadd.f32 %v3482, %v3410
        %v3515 = vadd.f32 %v3483, %v3413
        %v3516 = vadd.f32 %v3484, %v3415
        %v3517 = vadd.f32 %v3485, %v3418
        %v3518 = vadd.f32 %v3486, %v3420
        %v3519 = vadd.f32 %v3487, %v3423
        %v3520 = vadd.f32 %v3488, %v3425
        %v3521 = vadd.f32 %v3489, %v3428
        %v3522 = vadd.f32 %v3490, %v3430
        %v3523 = vadd.f32 %v3491, %v3433
        %v3524 = vadd.f32 %v3492, %v3435
        %v3525 = vadd.f32 %v3493, %v3438
        %v3526 = vadd.f32 %v3494, %v3440
        %v3527 = vadd.f32 %v3495, %v3443
        %v3528 = vadd.f32 %v3496, %v3445
        %v3529 = vadd.f32 %v3497, %v3448
        %v3530 = vadd.f32 %v3498, %v3450
        %v3531 = vadd.f32 %v3499, %v3453
        %v3532 = vadd.f32 %v3500, %v3455
        %v3533 = vadd.f32 %v3501, %v3458
        %v3534 = vadd.f32 %v3502, %v3460
        %v3535 = vadd.f32 %v3503, %v3463
        %v3536 = vadd.f32 %v3504, %v3465
        %v3537 = vadd.f32 %v3505, %v3468
        %v3538 = vadd.f32 %v3506, %v3470
        %v3539 = vadd.f32 %v3507, %v3473
        %v3540 = vadd.f32 %v3508, %v3475
        %3541 = vst [vmem:[#allocation4] sm:$0xff] %v3509
        %3542 = vst [vmem:[#allocation4 + $0x8] sm:$0xff] %v3510
        %3543 = vst [vmem:[#allocation4 + $0x10] sm:$0xff] %v3511
        %3544 = vst [vmem:[#allocation4 + $0x18] sm:$0xff] %v3512
        %3545 = vst [vmem:[#allocation4 + $0x20] sm:$0xff] %v3513
        %3546 = vst [vmem:[#allocation4 + $0x28] sm:$0xff] %v3514
        %3547 = vst [vmem:[#allocation4 + $0x30] sm:$0xff] %v3515
        %3548 = vst [vmem:[#allocation4 + $0x38] sm:$0xff] %v3516
        %3549 = vst [vmem:[#allocation4 + $0x40] sm:$0xff] %v3517
        %3550 = vst [vmem:[#allocation4 + $0x48] sm:$0xff] %v3518
        %3551 = vst [vmem:[#allocation4 + $0x50] sm:$0xff] %v3519
        %3552 = vst [vmem:[#allocation4 + $0x58] sm:$0xff] %v3520
        %3553 = vst [vmem:[#allocation4 + $0x60] sm:$0xff] %v3521
        %3554 = vst [vmem:[#allocation4 + $0x68] sm:$0xff] %v3522
        %3555 = vst [vmem:[#allocation4 + $0x70] sm:$0xff] %v3523
        %3556 = vst [vmem:[#allocation4 + $0x78] sm:$0xff] %v3524
        %3557 = vst [vmem:[#allocation4 + $0x80] sm:$0xff] %v3525
        %3558 = vst [vmem:[#allocation4 + $0x88] sm:$0xff] %v3526
        %3559 = vst [vmem:[#allocation4 + $0x90] sm:$0xff] %v3527
        %3560 = vst [vmem:[#allocation4 + $0x98] sm:$0xff] %v3528
        %3561 = vst [vmem:[#allocation4 + $0xa0] sm:$0xff] %v3529
        %3562 = vst [vmem:[#allocation4 + $0xa8] sm:$0xff] %v3530
        %3563 = vst [vmem:[#allocation4 + $0xb0] sm:$0xff] %v3531
        %3564 = vst [vmem:[#allocation4 + $0xb8] sm:$0xff] %v3532
        %3565 = vst [vmem:[#allocation4 + $0xc0] sm:$0xff] %v3533
        %3566 = vst [vmem:[#allocation4 + $0xc8] sm:$0xff] %v3534
        %3567 = vst [vmem:[#allocation4 + $0xd0] sm:$0xff] %v3535
        %3568 = vst [vmem:[#allocation4 + $0xd8] sm:$0xff] %v3536
        %3569 = vst [vmem:[#allocation4 + $0xe0] sm:$0xff] %v3537
        %3570 = vst [vmem:[#allocation4 + $0xe8] sm:$0xff] %v3538
        %3571 = vst [vmem:[#allocation4 + $0xf0] sm:$0xff] %v3539
        %3572 = vst [vmem:[#allocation4 + $0xf8] sm:$0xff] %v3540
        %v3573 = vld [vmem:[%s239 + $0x10] sm:$0xf]
        %v3574 = vld [vmem:[%s239 + $0x14] sm:$0xf]
        %v3575 = vld [vmem:[%s239 + $0x18] sm:$0xf]
        %v3576 = vld [vmem:[%s239 + $0x1c] sm:$0xf]
        %v3577 = vld [vmem:[%s239 + $0x20] sm:$0xf]
        %v3578 = vld [vmem:[%s239 + $0x24] sm:$0xf]
        %v3579 = vld [vmem:[%s239 + $0x28] sm:$0xf]
        %v3580 = vld [vmem:[%s239 + $0x2c] sm:$0xf]
        %v3581 = vld [vmem:[%s239 + $0x30] sm:$0xf]
        %v3582 = vld [vmem:[%s239 + $0x34] sm:$0xf]
        %v3583 = vld [vmem:[%s239 + $0x38] sm:$0xf]
        %v3584 = vld [vmem:[%s239 + $0x3c] sm:$0xf]
        %v3585 = vld [vmem:[%s239 + $0x40] sm:$0xf]
        %v3586 = vld [vmem:[%s239 + $0x44] sm:$0xf]
        %v3587 = vld [vmem:[%s239 + $0x48] sm:$0xf]
        %v3588 = vld [vmem:[%s239 + $0x4c] sm:$0xf]
        %v3589 = vld [vmem:[%s239 + $0x50] sm:$0xf]
        %v3590 = vld [vmem:[%s239 + $0x54] sm:$0xf]
        %v3591 = vld [vmem:[%s239 + $0x58] sm:$0xf]
        %v3592 = vld [vmem:[%s239 + $0x5c] sm:$0xf]
        %v3593 = vld [vmem:[%s239 + $0x60] sm:$0xf]
        %v3594 = vld [vmem:[%s239 + $0x64] sm:$0xf]
        %v3595 = vld [vmem:[%s239 + $0x68] sm:$0xf]
        %v3596 = vld [vmem:[%s239 + $0x6c] sm:$0xf]
        %v3597 = vld [vmem:[%s239 + $0x70] sm:$0xf]
        %v3598 = vld [vmem:[%s239 + $0x74] sm:$0xf]
        %v3599 = vld [vmem:[%s239 + $0x78] sm:$0xf]
        %v3600 = vld [vmem:[%s239 + $0x7c] sm:$0xf]
        %v3601 = vld [vmem:[%s239 + $0x80] sm:$0xf]
        %v3602 = vld [vmem:[%s239 + $0x84] sm:$0xf]
        %v3603 = vld [vmem:[%s239 + $0x88] sm:$0xf]
        %v3604 = vld [vmem:[%s239 + $0x8c] sm:$0xf]
        %s3605 = scalar_lea.vmem [#allocation6], 512
        %v3606 = vld [vmem:[%s3605] sm:$0xf]
        %v3607 = vld [vmem:[%s3605 + $0x4] sm:$0xf]
        %v3608 = vld [vmem:[%s3605 + $0x8] sm:$0xf]
        %v3609 = vld [vmem:[%s3605 + $0xc] sm:$0xf]
        %v3610 = vld [vmem:[%s3605 + $0x10] sm:$0xf]
        %v3611 = vld [vmem:[%s3605 + $0x14] sm:$0xf]
        %v3612 = vld [vmem:[%s3605 + $0x18] sm:$0xf]
        %v3613 = vld [vmem:[%s3605 + $0x1c] sm:$0xf]
        %v3614 = vld [vmem:[%s3605 + $0x20] sm:$0xf]
        %v3615 = vld [vmem:[%s3605 + $0x24] sm:$0xf]
        %v3616 = vld [vmem:[%s3605 + $0x28] sm:$0xf]
        %v3617 = vld [vmem:[%s3605 + $0x2c] sm:$0xf]
        %v3618 = vld [vmem:[%s3605 + $0x30] sm:$0xf]
        %v3619 = vld [vmem:[%s3605 + $0x34] sm:$0xf]
        %v3620 = vld [vmem:[%s3605 + $0x38] sm:$0xf]
        %v3621 = vld [vmem:[%s3605 + $0x3c] sm:$0xf]
        %v3654 = vunpack.c.l.b16 %v3573
        %v3655 = vunpack.c.l.b16 %v3574
        %v3656 = vunpack.c.l.b16 %v3575
        %v3657 = vunpack.c.l.b16 %v3576
        %v3658 = vunpack.c.l.b16 %v3577
        %v3659 = vunpack.c.l.b16 %v3578
        %v3660 = vunpack.c.l.b16 %v3579
        %v3661 = vunpack.c.l.b16 %v3580
        %v3662 = vunpack.c.l.b16 %v3581
        %v3663 = vunpack.c.l.b16 %v3582
        %v3664 = vunpack.c.l.b16 %v3583
        %v3665 = vunpack.c.l.b16 %v3584
        %v3666 = vunpack.c.l.b16 %v3585
        %v3667 = vunpack.c.l.b16 %v3586
        %v3668 = vunpack.c.l.b16 %v3587
        %v3669 = vunpack.c.l.b16 %v3588
        %v3670 = vunpack.c.l.b16 %v3589
        %v3671 = vunpack.c.l.b16 %v3590
        %v3672 = vunpack.c.l.b16 %v3591
        %v3673 = vunpack.c.l.b16 %v3592
        %v3674 = vunpack.c.l.b16 %v3593
        %v3675 = vunpack.c.l.b16 %v3594
        %v3676 = vunpack.c.l.b16 %v3595
        %v3677 = vunpack.c.l.b16 %v3596
        %v3678 = vunpack.c.l.b16 %v3597
        %v3679 = vunpack.c.l.b16 %v3598
        %v3680 = vunpack.c.l.b16 %v3599
        %v3681 = vunpack.c.l.b16 %v3600
        %v3682 = vunpack.c.l.b16 %v3601
        %v3683 = vunpack.c.l.b16 %v3602
        %v3684 = vunpack.c.l.b16 %v3603
        %v3685 = vunpack.c.l.b16 %v3604
        %v3686 = vpack.c.b16 %v3655, %v3654
        %v3687 = vpack.c.b16 %v3657, %v3656
        %v3688 = vpack.c.b16 %v3659, %v3658
        %v3689 = vpack.c.b16 %v3661, %v3660
        %v3690 = vpack.c.b16 %v3663, %v3662
        %v3691 = vpack.c.b16 %v3665, %v3664
        %v3692 = vpack.c.b16 %v3667, %v3666
        %v3693 = vpack.c.b16 %v3669, %v3668
        %v3694 = vpack.c.b16 %v3671, %v3670
        %v3695 = vpack.c.b16 %v3673, %v3672
        %v3696 = vpack.c.b16 %v3675, %v3674
        %v3697 = vpack.c.b16 %v3677, %v3676
        %v3698 = vpack.c.b16 %v3679, %v3678
        %v3699 = vpack.c.b16 %v3681, %v3680
        %v3700 = vpack.c.b16 %v3683, %v3682
        %v3701 = vpack.c.b16 %v3685, %v3684
        %v3734 = vunpack.c.l.b16 %v3606
        %v3735 = vunpack.c.l.b16 %v3607
        %v3736 = vunpack.c.l.b16 %v3608
        %v3737 = vunpack.c.l.b16 %v3609
        %v3738 = vunpack.c.l.b16 %v3610
        %v3739 = vunpack.c.l.b16 %v3611
        %v3740 = vunpack.c.l.b16 %v3612
        %v3741 = vunpack.c.l.b16 %v3613
        %v3742 = vunpack.c.l.b16 %v3614
        %v3743 = vunpack.c.l.b16 %v3615
        %v3744 = vunpack.c.l.b16 %v3616
        %v3745 = vunpack.c.l.b16 %v3617
        %v3746 = vunpack.c.l.b16 %v3618
        %v3747 = vunpack.c.l.b16 %v3619
        %v3748 = vunpack.c.l.b16 %v3620
        %v3749 = vunpack.c.l.b16 %v3621
        %v3750 = vpack.c.b16 %v3735, %v3734
        %v3751 = vpack.c.b16 %v3737, %v3736
        %v3752 = vpack.c.b16 %v3739, %v3738
        %v3753 = vpack.c.b16 %v3741, %v3740
        %v3754 = vpack.c.b16 %v3743, %v3742
        %v3755 = vpack.c.b16 %v3745, %v3744
        %v3756 = vpack.c.b16 %v3747, %v3746
        %v3757 = vpack.c.b16 %v3749, %v3748
        %3766 = vmatpush.bf16.msra.mxu0 %v3757
        %3767 = vmatpush.bf16.msra.mxu0 %v3756
        %3768 = vmatpush.bf16.msra.mxu0 %v3755
        %3769 = vmatpush.bf16.msra.mxu0 %v3754
        %3770 = vmatpush.bf16.msra.mxu0 %v3753
        %3771 = vmatpush.bf16.msra.mxu0 %v3752
        %3772 = vmatpush.bf16.msra.mxu0 %v3751
        %3773 = vmatpush.bf16.msra.mxu0 %v3750
        %3774 = vmatmul.bf16.gmra.mxu0 %v3686
        %v3775 = vpop.f32.mrf.mxu0
        %v3776 = vadd.f32 0.0, %v3775
        %v3777 = vpop.f32.mrf.mxu0
        %v3778 = vadd.f32 0.0, %v3777
        %3779 = vmatmul.bf16.gmra.mxu0 %v3687
        %v3780 = vpop.f32.mrf.mxu0
        %v3781 = vadd.f32 0.0, %v3780
        %v3782 = vpop.f32.mrf.mxu0
        %v3783 = vadd.f32 0.0, %v3782
        %3784 = vmatmul.bf16.gmra.mxu0 %v3688
        %v3785 = vpop.f32.mrf.mxu0
        %v3786 = vadd.f32 0.0, %v3785
        %v3787 = vpop.f32.mrf.mxu0
        %v3788 = vadd.f32 0.0, %v3787
        %3789 = vmatmul.bf16.gmra.mxu0 %v3689
        %v3790 = vpop.f32.mrf.mxu0
        %v3791 = vadd.f32 0.0, %v3790
        %v3792 = vpop.f32.mrf.mxu0
        %v3793 = vadd.f32 0.0, %v3792
        %3794 = vmatmul.bf16.gmra.mxu0 %v3690
        %v3795 = vpop.f32.mrf.mxu0
        %v3796 = vadd.f32 0.0, %v3795
        %v3797 = vpop.f32.mrf.mxu0
        %v3798 = vadd.f32 0.0, %v3797
        %3799 = vmatmul.bf16.gmra.mxu0 %v3691
        %v3800 = vpop.f32.mrf.mxu0
        %v3801 = vadd.f32 0.0, %v3800
        %v3802 = vpop.f32.mrf.mxu0
        %v3803 = vadd.f32 0.0, %v3802
        %3804 = vmatmul.bf16.gmra.mxu0 %v3692
        %v3805 = vpop.f32.mrf.mxu0
        %v3806 = vadd.f32 0.0, %v3805
        %v3807 = vpop.f32.mrf.mxu0
        %v3808 = vadd.f32 0.0, %v3807
        %3809 = vmatmul.bf16.gmra.mxu0 %v3693
        %v3810 = vpop.f32.mrf.mxu0
        %v3811 = vadd.f32 0.0, %v3810
        %v3812 = vpop.f32.mrf.mxu0
        %v3813 = vadd.f32 0.0, %v3812
        %3814 = vmatmul.bf16.gmra.mxu0 %v3694
        %v3815 = vpop.f32.mrf.mxu0
        %v3816 = vadd.f32 0.0, %v3815
        %v3817 = vpop.f32.mrf.mxu0
        %v3818 = vadd.f32 0.0, %v3817
        %3819 = vmatmul.bf16.gmra.mxu0 %v3695
        %v3820 = vpop.f32.mrf.mxu0
        %v3821 = vadd.f32 0.0, %v3820
        %v3822 = vpop.f32.mrf.mxu0
        %v3823 = vadd.f32 0.0, %v3822
        %3824 = vmatmul.bf16.gmra.mxu0 %v3696
        %v3825 = vpop.f32.mrf.mxu0
        %v3826 = vadd.f32 0.0, %v3825
        %v3827 = vpop.f32.mrf.mxu0
        %v3828 = vadd.f32 0.0, %v3827
        %3829 = vmatmul.bf16.gmra.mxu0 %v3697
        %v3830 = vpop.f32.mrf.mxu0
        %v3831 = vadd.f32 0.0, %v3830
        %v3832 = vpop.f32.mrf.mxu0
        %v3833 = vadd.f32 0.0, %v3832
        %3834 = vmatmul.bf16.gmra.mxu0 %v3698
        %v3835 = vpop.f32.mrf.mxu0
        %v3836 = vadd.f32 0.0, %v3835
        %v3837 = vpop.f32.mrf.mxu0
        %v3838 = vadd.f32 0.0, %v3837
        %3839 = vmatmul.bf16.gmra.mxu0 %v3699
        %v3840 = vpop.f32.mrf.mxu0
        %v3841 = vadd.f32 0.0, %v3840
        %v3842 = vpop.f32.mrf.mxu0
        %v3843 = vadd.f32 0.0, %v3842
        %3844 = vmatmul.bf16.gmra.mxu0 %v3700
        %v3845 = vpop.f32.mrf.mxu0
        %v3846 = vadd.f32 0.0, %v3845
        %v3847 = vpop.f32.mrf.mxu0
        %v3848 = vadd.f32 0.0, %v3847
        %3849 = vmatmul.bf16.gmra.mxu0 %v3701
        %v3850 = vpop.f32.mrf.mxu0
        %v3851 = vadd.f32 0.0, %v3850
        %v3852 = vpop.f32.mrf.mxu0
        %v3853 = vadd.f32 0.0, %v3852
        %3854 = vdwg.mxu0
        %v3855 = vld [vmem:[#allocation4] sm:$0xff]
        %v3856 = vld [vmem:[#allocation4 + $0x8] sm:$0xff]
        %v3857 = vld [vmem:[#allocation4 + $0x10] sm:$0xff]
        %v3858 = vld [vmem:[#allocation4 + $0x18] sm:$0xff]
        %v3859 = vld [vmem:[#allocation4 + $0x20] sm:$0xff]
        %v3860 = vld [vmem:[#allocation4 + $0x28] sm:$0xff]
        %v3861 = vld [vmem:[#allocation4 + $0x30] sm:$0xff]
        %v3862 = vld [vmem:[#allocation4 + $0x38] sm:$0xff]
        %v3863 = vld [vmem:[#allocation4 + $0x40] sm:$0xff]
        %v3864 = vld [vmem:[#allocation4 + $0x48] sm:$0xff]
        %v3865 = vld [vmem:[#allocation4 + $0x50] sm:$0xff]
        %v3866 = vld [vmem:[#allocation4 + $0x58] sm:$0xff]
        %v3867 = vld [vmem:[#allocation4 + $0x60] sm:$0xff]
        %v3868 = vld [vmem:[#allocation4 + $0x68] sm:$0xff]
        %v3869 = vld [vmem:[#allocation4 + $0x70] sm:$0xff]
        %v3870 = vld [vmem:[#allocation4 + $0x78] sm:$0xff]
        %v3871 = vld [vmem:[#allocation4 + $0x80] sm:$0xff]
        %v3872 = vld [vmem:[#allocation4 + $0x88] sm:$0xff]
        %v3873 = vld [vmem:[#allocation4 + $0x90] sm:$0xff]
        %v3874 = vld [vmem:[#allocation4 + $0x98] sm:$0xff]
        %v3875 = vld [vmem:[#allocation4 + $0xa0] sm:$0xff]
        %v3876 = vld [vmem:[#allocation4 + $0xa8] sm:$0xff]
        %v3877 = vld [vmem:[#allocation4 + $0xb0] sm:$0xff]
        %v3878 = vld [vmem:[#allocation4 + $0xb8] sm:$0xff]
        %v3879 = vld [vmem:[#allocation4 + $0xc0] sm:$0xff]
        %v3880 = vld [vmem:[#allocation4 + $0xc8] sm:$0xff]
        %v3881 = vld [vmem:[#allocation4 + $0xd0] sm:$0xff]
        %v3882 = vld [vmem:[#allocation4 + $0xd8] sm:$0xff]
        %v3883 = vld [vmem:[#allocation4 + $0xe0] sm:$0xff]
        %v3884 = vld [vmem:[#allocation4 + $0xe8] sm:$0xff]
        %v3885 = vld [vmem:[#allocation4 + $0xf0] sm:$0xff]
        %v3886 = vld [vmem:[#allocation4 + $0xf8] sm:$0xff]
        %v3887 = vadd.f32 %v3855, %v3776
        %v3888 = vadd.f32 %v3856, %v3778
        %v3889 = vadd.f32 %v3857, %v3781
        %v3890 = vadd.f32 %v3858, %v3783
        %v3891 = vadd.f32 %v3859, %v3786
        %v3892 = vadd.f32 %v3860, %v3788
        %v3893 = vadd.f32 %v3861, %v3791
        %v3894 = vadd.f32 %v3862, %v3793
        %v3895 = vadd.f32 %v3863, %v3796
        %v3896 = vadd.f32 %v3864, %v3798
        %v3897 = vadd.f32 %v3865, %v3801
        %v3898 = vadd.f32 %v3866, %v3803
        %v3899 = vadd.f32 %v3867, %v3806
        %v3900 = vadd.f32 %v3868, %v3808
        %v3901 = vadd.f32 %v3869, %v3811
        %v3902 = vadd.f32 %v3870, %v3813
        %v3903 = vadd.f32 %v3871, %v3816
        %v3904 = vadd.f32 %v3872, %v3818
        %v3905 = vadd.f32 %v3873, %v3821
        %v3906 = vadd.f32 %v3874, %v3823
        %v3907 = vadd.f32 %v3875, %v3826
        %v3908 = vadd.f32 %v3876, %v3828
        %v3909 = vadd.f32 %v3877, %v3831
        %v3910 = vadd.f32 %v3878, %v3833
        %v3911 = vadd.f32 %v3879, %v3836
        %v3912 = vadd.f32 %v3880, %v3838
        %v3913 = vadd.f32 %v3881, %v3841
        %v3914 = vadd.f32 %v3882, %v3843
        %v3915 = vadd.f32 %v3883, %v3846
        %v3916 = vadd.f32 %v3884, %v3848
        %v3917 = vadd.f32 %v3885, %v3851
        %v3918 = vadd.f32 %v3886, %v3853
        %3919 = vst [vmem:[#allocation4] sm:$0xff] %v3887
        %3920 = vst [vmem:[#allocation4 + $0x8] sm:$0xff] %v3888
        %3921 = vst [vmem:[#allocation4 + $0x10] sm:$0xff] %v3889
        %3922 = vst [vmem:[#allocation4 + $0x18] sm:$0xff] %v3890
        %3923 = vst [vmem:[#allocation4 + $0x20] sm:$0xff] %v3891
        %3924 = vst [vmem:[#allocation4 + $0x28] sm:$0xff] %v3892
        %3925 = vst [vmem:[#allocation4 + $0x30] sm:$0xff] %v3893
        %3926 = vst [vmem:[#allocation4 + $0x38] sm:$0xff] %v3894
        %3927 = vst [vmem:[#allocation4 + $0x40] sm:$0xff] %v3895
        %3928 = vst [vmem:[#allocation4 + $0x48] sm:$0xff] %v3896
        %3929 = vst [vmem:[#allocation4 + $0x50] sm:$0xff] %v3897
        %3930 = vst [vmem:[#allocation4 + $0x58] sm:$0xff] %v3898
        %3931 = vst [vmem:[#allocation4 + $0x60] sm:$0xff] %v3899
        %3932 = vst [vmem:[#allocation4 + $0x68] sm:$0xff] %v3900
        %3933 = vst [vmem:[#allocation4 + $0x70] sm:$0xff] %v3901
        %3934 = vst [vmem:[#allocation4 + $0x78] sm:$0xff] %v3902
        %3935 = vst [vmem:[#allocation4 + $0x80] sm:$0xff] %v3903
        %3936 = vst [vmem:[#allocation4 + $0x88] sm:$0xff] %v3904
        %3937 = vst [vmem:[#allocation4 + $0x90] sm:$0xff] %v3905
        %3938 = vst [vmem:[#allocation4 + $0x98] sm:$0xff] %v3906
        %3939 = vst [vmem:[#allocation4 + $0xa0] sm:$0xff] %v3907
        %3940 = vst [vmem:[#allocation4 + $0xa8] sm:$0xff] %v3908
        %3941 = vst [vmem:[#allocation4 + $0xb0] sm:$0xff] %v3909
        %3942 = vst [vmem:[#allocation4 + $0xb8] sm:$0xff] %v3910
        %3943 = vst [vmem:[#allocation4 + $0xc0] sm:$0xff] %v3911
        %3944 = vst [vmem:[#allocation4 + $0xc8] sm:$0xff] %v3912
        %3945 = vst [vmem:[#allocation4 + $0xd0] sm:$0xff] %v3913
        %3946 = vst [vmem:[#allocation4 + $0xd8] sm:$0xff] %v3914
        %3947 = vst [vmem:[#allocation4 + $0xe0] sm:$0xff] %v3915
        %3948 = vst [vmem:[#allocation4 + $0xe8] sm:$0xff] %v3916
        %3949 = vst [vmem:[#allocation4 + $0xf0] sm:$0xff] %v3917
        %3950 = vst [vmem:[#allocation4 + $0xf8] sm:$0xff] %v3918
        %v3951 = vld [vmem:[#allocation4] sm:$0xff]
        %v3952 = vld [vmem:[#allocation4 + $0x8] sm:$0xff]
        %v3953 = vld [vmem:[#allocation4 + $0x10] sm:$0xff]
        %v3954 = vld [vmem:[#allocation4 + $0x18] sm:$0xff]
        %v3955 = vld [vmem:[#allocation4 + $0x20] sm:$0xff]
        %v3956 = vld [vmem:[#allocation4 + $0x28] sm:$0xff]
        %v3957 = vld [vmem:[#allocation4 + $0x30] sm:$0xff]
        %v3958 = vld [vmem:[#allocation4 + $0x38] sm:$0xff]
        %v3959 = vld [vmem:[#allocation4 + $0x40] sm:$0xff]
        %v3960 = vld [vmem:[#allocation4 + $0x48] sm:$0xff]
        %v3961 = vld [vmem:[#allocation4 + $0x50] sm:$0xff]
        %v3962 = vld [vmem:[#allocation4 + $0x58] sm:$0xff]
        %v3963 = vld [vmem:[#allocation4 + $0x60] sm:$0xff]
        %v3964 = vld [vmem:[#allocation4 + $0x68] sm:$0xff]
        %v3965 = vld [vmem:[#allocation4 + $0x70] sm:$0xff]
        %v3966 = vld [vmem:[#allocation4 + $0x78] sm:$0xff]
        %v3967 = vld [vmem:[#allocation4 + $0x80] sm:$0xff]
        %v3968 = vld [vmem:[#allocation4 + $0x88] sm:$0xff]
        %v3969 = vld [vmem:[#allocation4 + $0x90] sm:$0xff]
        %v3970 = vld [vmem:[#allocation4 + $0x98] sm:$0xff]
        %v3971 = vld [vmem:[#allocation4 + $0xa0] sm:$0xff]
        %v3972 = vld [vmem:[#allocation4 + $0xa8] sm:$0xff]
        %v3973 = vld [vmem:[#allocation4 + $0xb0] sm:$0xff]
        %v3974 = vld [vmem:[#allocation4 + $0xb8] sm:$0xff]
        %v3975 = vld [vmem:[#allocation4 + $0xc0] sm:$0xff]
        %v3976 = vld [vmem:[#allocation4 + $0xc8] sm:$0xff]
        %v3977 = vld [vmem:[#allocation4 + $0xd0] sm:$0xff]
        %v3978 = vld [vmem:[#allocation4 + $0xd8] sm:$0xff]
        %v3979 = vld [vmem:[#allocation4 + $0xe0] sm:$0xff]
        %v3980 = vld [vmem:[#allocation4 + $0xe8] sm:$0xff]
        %v3981 = vld [vmem:[#allocation4 + $0xf0] sm:$0xff]
        %v3982 = vld [vmem:[#allocation4 + $0xf8] sm:$0xff]
        %v3983 = vld [vmem:[%s2] sm:$0x1]
        %v3985 = vperm.slane %v3983, 0
        %v3987 = vadd.f32 %v3951, %v3985
        %v3988 = vadd.f32 %v3952, %v3985
        %v3989 = vadd.f32 %v3953, %v3985
        %v3990 = vadd.f32 %v3954, %v3985
        %v3991 = vadd.f32 %v3955, %v3985
        %v3992 = vadd.f32 %v3956, %v3985
        %v3993 = vadd.f32 %v3957, %v3985
        %v3994 = vadd.f32 %v3958, %v3985
        %v3995 = vadd.f32 %v3959, %v3985
        %v3996 = vadd.f32 %v3960, %v3985
        %v3997 = vadd.f32 %v3961, %v3985
        %v3998 = vadd.f32 %v3962, %v3985
        %v3999 = vadd.f32 %v3963, %v3985
        %v4000 = vadd.f32 %v3964, %v3985
        %v4001 = vadd.f32 %v3965, %v3985
        %v4002 = vadd.f32 %v3966, %v3985
        %v4003 = vadd.f32 %v3967, %v3985
        %v4004 = vadd.f32 %v3968, %v3985
        %v4005 = vadd.f32 %v3969, %v3985
        %v4006 = vadd.f32 %v3970, %v3985
        %v4007 = vadd.f32 %v3971, %v3985
        %v4008 = vadd.f32 %v3972, %v3985
        %v4009 = vadd.f32 %v3973, %v3985
        %v4010 = vadd.f32 %v3974, %v3985
        %v4011 = vadd.f32 %v3975, %v3985
        %v4012 = vadd.f32 %v3976, %v3985
        %v4013 = vadd.f32 %v3977, %v3985
        %v4014 = vadd.f32 %v3978, %v3985
        %v4015 = vadd.f32 %v3979, %v3985
        %v4016 = vadd.f32 %v3980, %v3985
        %v4017 = vadd.f32 %v3981, %v3985
        %v4018 = vadd.f32 %v3982, %v3985
        %v4019 = vmul.f32 %v3987, 0.01
        %v4020 = vmul.f32 %v3988, 0.01
        %v4021 = vmul.f32 %v3989, 0.01
        %v4022 = vmul.f32 %v3990, 0.01
        %v4023 = vmul.f32 %v3991, 0.01
        %v4024 = vmul.f32 %v3992, 0.01
        %v4025 = vmul.f32 %v3993, 0.01
        %v4026 = vmul.f32 %v3994, 0.01
        %v4027 = vmul.f32 %v3995, 0.01
        %v4028 = vmul.f32 %v3996, 0.01
        %v4029 = vmul.f32 %v3997, 0.01
        %v4030 = vmul.f32 %v3998, 0.01
        %v4031 = vmul.f32 %v3999, 0.01
        %v4032 = vmul.f32 %v4000, 0.01
        %v4033 = vmul.f32 %v4001, 0.01
        %v4034 = vmul.f32 %v4002, 0.01
        %v4035 = vmul.f32 %v4003, 0.01
        %v4036 = vmul.f32 %v4004, 0.01
        %v4037 = vmul.f32 %v4005, 0.01
        %v4038 = vmul.f32 %v4006, 0.01
        %v4039 = vmul.f32 %v4007, 0.01
        %v4040 = vmul.f32 %v4008, 0.01
        %v4041 = vmul.f32 %v4009, 0.01
        %v4042 = vmul.f32 %v4010, 0.01
        %v4043 = vmul.f32 %v4011, 0.01
        %v4044 = vmul.f32 %v4012, 0.01
        %v4045 = vmul.f32 %v4013, 0.01
        %v4046 = vmul.f32 %v4014, 0.01
        %v4047 = vmul.f32 %v4015, 0.01
        %v4048 = vmul.f32 %v4016, 0.01
        %v4049 = vmul.f32 %v4017, 0.01
        %v4050 = vmul.f32 %v4018, 0.01
        %v4051 = vmax.f32 %v3987, %v4019
        %v4052 = vmax.f32 %v3988, %v4020
        %v4053 = vmax.f32 %v3989, %v4021
        %v4054 = vmax.f32 %v3990, %v4022
        %v4055 = vmax.f32 %v3991, %v4023
        %v4056 = vmax.f32 %v3992, %v4024
        %v4057 = vmax.f32 %v3993, %v4025
        %v4058 = vmax.f32 %v3994, %v4026
        %v4059 = vmax.f32 %v3995, %v4027
        %v4060 = vmax.f32 %v3996, %v4028
        %v4061 = vmax.f32 %v3997, %v4029
        %v4062 = vmax.f32 %v3998, %v4030
        %v4063 = vmax.f32 %v3999, %v4031
        %v4064 = vmax.f32 %v4000, %v4032
        %v4065 = vmax.f32 %v4001, %v4033
        %v4066 = vmax.f32 %v4002, %v4034
        %v4067 = vmax.f32 %v4003, %v4035
        %v4068 = vmax.f32 %v4004, %v4036
        %v4069 = vmax.f32 %v4005, %v4037
        %v4070 = vmax.f32 %v4006, %v4038
        %v4071 = vmax.f32 %v4007, %v4039
        %v4072 = vmax.f32 %v4008, %v4040
        %v4073 = vmax.f32 %v4009, %v4041
        %v4074 = vmax.f32 %v4010, %v4042
        %v4075 = vmax.f32 %v4011, %v4043
        %v4076 = vmax.f32 %v4012, %v4044
        %v4077 = vmax.f32 %v4013, %v4045
        %v4078 = vmax.f32 %v4014, %v4046
        %v4079 = vmax.f32 %v4015, %v4047
        %v4080 = vmax.f32 %v4016, %v4048
        %v4081 = vmax.f32 %v4017, %v4049
        %v4082 = vmax.f32 %v4018, %v4050
        %v4083 = vadd.f32 %v4051, %v4052
        %v4084 = vadd.f32 %v4083, %v4053
        %v4085 = vadd.f32 %v4084, %v4054
        %v4086 = vadd.f32 %v4085, %v4055
        %v4087 = vadd.f32 %v4086, %v4056
        %v4088 = vadd.f32 %v4087, %v4057
        %v4089 = vadd.f32 %v4088, %v4058
        %v4090 = vadd.f32 %v4089, %v4059
        %v4091 = vadd.f32 %v4090, %v4060
        %v4092 = vadd.f32 %v4091, %v4061
        %v4093 = vadd.f32 %v4092, %v4062
        %v4094 = vadd.f32 %v4093, %v4063
        %v4095 = vadd.f32 %v4094, %v4064
        %v4096 = vadd.f32 %v4095, %v4065
        %v4097 = vadd.f32 %v4096, %v4066
        %v4098 = vadd.f32 %v4097, %v4067
        %v4099 = vadd.f32 %v4098, %v4068
        %v4100 = vadd.f32 %v4099, %v4069
        %v4101 = vadd.f32 %v4100, %v4070
        %v4102 = vadd.f32 %v4101, %v4071
        %v4103 = vadd.f32 %v4102, %v4072
        %v4104 = vadd.f32 %v4103, %v4073
        %v4105 = vadd.f32 %v4104, %v4074
        %v4106 = vadd.f32 %v4105, %v4075
        %v4107 = vadd.f32 %v4106, %v4076
        %v4108 = vadd.f32 %v4107, %v4077
        %v4109 = vadd.f32 %v4108, %v4078
        %v4110 = vadd.f32 %v4109, %v4079
        %v4111 = vadd.f32 %v4110, %v4080
        %v4112 = vadd.f32 %v4111, %v4081
        %v4113 = vadd.f32 %v4112, %v4082
        %v4114 = vrot.slane %v4113, 4
        %v4115 = vadd.f32 %v4113, %v4114
        %v4116 = vrot.slane %v4115, 2
        %v4117 = vadd.f32 %v4115, %v4116
        %v4118 = vrot.slane %v4117, 1
        %v4119 = vadd.f32 %v4117, %v4118
        %v4120 = vmul.f32 %v4119, 0.00390625
        %v4121 = vld [vmem:[#allocation9] sm:$0xff]
        %v4122 = vld [vmem:[#allocation9 + $0x8] sm:$0xff]
        %v4123 = vld [vmem:[#allocation9 + $0x10] sm:$0xff]
        %v4124 = vld [vmem:[#allocation9 + $0x18] sm:$0xff]
        %v4125 = vld [vmem:[#allocation9 + $0x20] sm:$0xff]
        %v4126 = vld [vmem:[#allocation9 + $0x28] sm:$0xff]
        %v4127 = vld [vmem:[#allocation9 + $0x30] sm:$0xff]
        %v4128 = vld [vmem:[#allocation9 + $0x38] sm:$0xff]
        %v4129 = vld [vmem:[#allocation9 + $0x40] sm:$0xff]
        %v4130 = vld [vmem:[#allocation9 + $0x48] sm:$0xff]
        %v4131 = vld [vmem:[#allocation9 + $0x50] sm:$0xff]
        %v4132 = vld [vmem:[#allocation9 + $0x58] sm:$0xff]
        %v4133 = vld [vmem:[#allocation9 + $0x60] sm:$0xff]
        %v4134 = vld [vmem:[#allocation9 + $0x68] sm:$0xff]
        %v4135 = vld [vmem:[#allocation9 + $0x70] sm:$0xff]
        %v4136 = vld [vmem:[#allocation9 + $0x78] sm:$0xff]
        %v4137 = vld [vmem:[%s4] sm:$0x1]
        %4138 = vmatpush.msra.mxu0 %v4136
        %4139 = vmatpush.msra.mxu0 %v4135
        %4140 = vmatpush.msra.mxu0 %v4134
        %4141 = vmatpush.msra.mxu0 %v4133
        %4142 = vmatpush.msra.mxu0 %v4132
        %4143 = vmatpush.msra.mxu0 %v4131
        %4144 = vmatpush.msra.mxu0 %v4130
        %4145 = vmatpush.msra.mxu0 %v4129
        %4146 = vmatpush.msra.mxu0 %v4128
        %4147 = vmatpush.msra.mxu0 %v4127
        %4148 = vmatpush.msra.mxu0 %v4126
        %4149 = vmatpush.msra.mxu0 %v4125
        %4150 = vmatpush.msra.mxu0 %v4124
        %4151 = vmatpush.msra.mxu0 %v4123
        %4152 = vmatpush.msra.mxu0 %v4122
        %4153 = vmatpush.msra.mxu0 %v4121
        %4154 = vmatmul.f32.gmra.mxu0 %v4120
        %v4155 = vpop.f32.mrf.mxu0
        %v4156 = vadd.f32 %v4137, %v4155
        %4157 = vdwg.mxu0
        %v4158 = vxor.u32 %v4156, 2147483648
        %v4159 = vmul.f32 %v4158, 1.442695
        %v4160 = vpow.pop %v4159
        %v4161 = vadd.f32 %v4160, 1.0
        %v4162 = vrcp.pop %v4161
        %v4163 = vmul.f32 %v4161, %v4162
        %v4164 = vsub.f32 1.0, %v4163
        %v4165 = vmul.f32 %v4162, %v4164
        %v4166 = vadd.f32 %v4162, %v4165
        %vm4167 = vweird.f32 %v4161
        %vm4168 = vweird.f32 %v4162
        %vm4169 = vmor %vm4167, %vm4168
        %v4170 = vsel %vm4169, %v4162, %v4166
        %v4171 = vand.u32 2147483647, %v4161
        %vm4172 = vcmp.eq.f32.partialorder %v4171, 8.507059e+37
        %v4173 = vand.u32 %v4161, 2147483648
        %v4174 = vor.u32 1.1754944e-38, %v4173
        %v4175 = vsel %vm4172, %v4174, %v4170
        %v4176 = vmul.f32 1.0, %v4175
        %v4177 = vperm.slane %v4176, 0
        %v4178 = vmul.f32 %v4051, %v4177
        %v4179 = vmul.f32 %v4052, %v4177
        %v4180 = vmul.f32 %v4053, %v4177
        %v4181 = vmul.f32 %v4054, %v4177
        %v4182 = vmul.f32 %v4055, %v4177
        %v4183 = vmul.f32 %v4056, %v4177
        %v4184 = vmul.f32 %v4057, %v4177
        %v4185 = vmul.f32 %v4058, %v4177
        %v4186 = vmul.f32 %v4059, %v4177
        %v4187 = vmul.f32 %v4060, %v4177
        %v4188 = vmul.f32 %v4061, %v4177
        %v4189 = vmul.f32 %v4062, %v4177
        %v4190 = vmul.f32 %v4063, %v4177
        %v4191 = vmul.f32 %v4064, %v4177
        %v4192 = vmul.f32 %v4065, %v4177
        %v4193 = vmul.f32 %v4066, %v4177
        %v4194 = vmul.f32 %v4067, %v4177
        %v4195 = vmul.f32 %v4068, %v4177
        %v4196 = vmul.f32 %v4069, %v4177
        %v4197 = vmul.f32 %v4070, %v4177
        %v4198 = vmul.f32 %v4071, %v4177
        %v4199 = vmul.f32 %v4072, %v4177
        %v4200 = vmul.f32 %v4073, %v4177
        %v4201 = vmul.f32 %v4074, %v4177
        %v4202 = vmul.f32 %v4075, %v4177
        %v4203 = vmul.f32 %v4076, %v4177
        %v4204 = vmul.f32 %v4077, %v4177
        %v4205 = vmul.f32 %v4078, %v4177
        %v4206 = vmul.f32 %v4079, %v4177
        %v4207 = vmul.f32 %v4080, %v4177
        %v4208 = vmul.f32 %v4081, %v4177
        %v4209 = vmul.f32 %v4082, %v4177
        %4210 = vst [vmem:[%s210] sm:$0xff] %v4178
        %4211 = vst [vmem:[%s210 + $0x8] sm:$0xff] %v4179
        %4212 = vst [vmem:[%s210 + $0x10] sm:$0xff] %v4180
        %4213 = vst [vmem:[%s210 + $0x18] sm:$0xff] %v4181
        %4214 = vst [vmem:[%s210 + $0x20] sm:$0xff] %v4182
        %4215 = vst [vmem:[%s210 + $0x28] sm:$0xff] %v4183
        %4216 = vst [vmem:[%s210 + $0x30] sm:$0xff] %v4184
        %4217 = vst [vmem:[%s210 + $0x38] sm:$0xff] %v4185
        %4218 = vst [vmem:[%s210 + $0x40] sm:$0xff] %v4186
        %4219 = vst [vmem:[%s210 + $0x48] sm:$0xff] %v4187
        %4220 = vst [vmem:[%s210 + $0x50] sm:$0xff] %v4188
        %4221 = vst [vmem:[%s210 + $0x58] sm:$0xff] %v4189
        %4222 = vst [vmem:[%s210 + $0x60] sm:$0xff] %v4190
        %4223 = vst [vmem:[%s210 + $0x68] sm:$0xff] %v4191
        %4224 = vst [vmem:[%s210 + $0x70] sm:$0xff] %v4192
        %4225 = vst [vmem:[%s210 + $0x78] sm:$0xff] %v4193
        %4226 = vst [vmem:[%s210 + $0x80] sm:$0xff] %v4194
        %4227 = vst [vmem:[%s210 + $0x88] sm:$0xff] %v4195
        %4228 = vst [vmem:[%s210 + $0x90] sm:$0xff] %v4196
        %4229 = vst [vmem:[%s210 + $0x98] sm:$0xff] %v4197
        %4230 = vst [vmem:[%s210 + $0xa0] sm:$0xff] %v4198
        %4231 = vst [vmem:[%s210 + $0xa8] sm:$0xff] %v4199
        %4232 = vst [vmem:[%s210 + $0xb0] sm:$0xff] %v4200
        %4233 = vst [vmem:[%s210 + $0xb8] sm:$0xff] %v4201
        %4234 = vst [vmem:[%s210 + $0xc0] sm:$0xff] %v4202
        %4235 = vst [vmem:[%s210 + $0xc8] sm:$0xff] %v4203
        %4236 = vst [vmem:[%s210 + $0xd0] sm:$0xff] %v4204
        %4237 = vst [vmem:[%s210 + $0xd8] sm:$0xff] %v4205
        %4238 = vst [vmem:[%s210 + $0xe0] sm:$0xff] %v4206
        %4239 = vst [vmem:[%s210 + $0xe8] sm:$0xff] %v4207
        %4240 = vst [vmem:[%s210 + $0xf0] sm:$0xff] %v4208
        %4241 = vst [vmem:[%s210 + $0xf8] sm:$0xff] %v4209
        %s4242 = sand.u32 %s113, 1
        %s4243 = scalar_lea.sflag [#allocation8], %s4242
        %s4244 = sand.u32 %s113, 1
        %s4245 = smul.addr %s4244, 256
        %s4246 = scalar_lea.vmem [#allocation11], %s4245
        // Predicated region
        $region49: #{tpu_custom_call.1} parent=35 // pred_check
          %p4247 = pneg %p123
        $region50: #{tpu_custom_call.1} parent=35 // pred_check_branch
          %4249 = sbr.rel (%p4247) target = $region52
        $region51: #{tpu_custom_call.1} parent=35 // pred_region
          %4251 = vsyncadd %s4243, 0
          %s4252 = smul.addr %s21, 32
          %s4253 = smul.addr %s4252, 8
          %s4254 = scalar_lea.hbm %s5, %s4253
          %s4255 = sshll.u32 %s4246, 4
          %s4256 = int_to_ptr.vmem [resolvable:$true] %s4255
          %s4257 = sshll.u32 %s4254, 4
          %s4258 = int_to_ptr.hbm [resolvable:$true] %s4257
          %4263 = dma.vmem_to_hbm [thread:$0]  %s4256, 4096, %s4258, %s4243, 128, 128, 8
        $region52: #{tpu_custom_call.1} parent=35 // pred_fallthru
          _
      $region36: #{tpu_custom_call.1} parent=5 // pred_fallthru
        _
      %p4264 = scmp.le.s32.totalorder 2, %s16
      // Predicated region
      $region53: #{tpu_custom_call.1} parent=5 // pred_check
        %p4265 = pneg %p4264
      $region54: #{tpu_custom_call.1} parent=5 // pred_check_branch
        %4267 = sbr.rel (%p4265) target = $region56
      $region55: #{tpu_custom_call.1} parent=5 // pred_region
        %s4268 = ssub.s32 %s16, 2
        // Predicated region
        $region57: #{tpu_custom_call.1} parent=55 // pred_check
          %p4269 = pneg %p129
        $region58: #{tpu_custom_call.1} parent=55 // pred_check_branch
          %4271 = sbr.rel (%p4269) target = $region60
        $region59: #{tpu_custom_call.1} parent=55 // pred_region
          %s4272 = sand.u32 %s114, 1
          %s4273 = scalar_lea.sflag [#allocation8], %s4272
          %s4274 = sand.u32 %s114, 1
          %s4275 = smul.addr %s4274, 256
          %s4276 = scalar_lea.vmem [#allocation11], %s4275
          %4278 = dma.done %s4273, 4096
        $region60: #{tpu_custom_call.1} parent=55 // pred_fallthru
          _
      $region56: #{tpu_custom_call.1} parent=5 // pred_fallthru
        _
    $region6: #{tpu_custom_call.1} parent=1 // loop_footer
      %s20 = sadd.s32 1, %s16
    $region7: #{tpu_custom_call.1} parent=1 // loop_footer_branch
      %15 = sbr.rel target = $region3
    $region8: #{tpu_custom_call.1} parent=1 // loop_exit
      _
    %4279 = vsyncpa [#allocation7], 1
    %s4280 = scalar_lea.sflag [#allocation7], 1
    %4281 = vsyncpa %s4280, 1
    %4282 = vsyncpa [#allocation10], 1
    %4283 = vsyncpa [#allocation8], 1
    %s4284 = scalar_lea.sflag [#allocation8], 1
    %4285 = vsyncpa %s4284, 1
  %4286 = vsyncmov [#allocation5]
  %s4287 = vpop.sfrf %4286
  %p4288 = scmp.eq.s32.totalorder %s4287, 0
  %p4289 = pneg %p4288
  %4291 = shalt.err (%p4289)

</llo_original>
